<compile_context>
chip_gen: v6e
topology: v6e:2x2x1
jax: 0.10.0
libtpu: 0.0.40
codegen_flags: <defaults>
</compile_context>

<pallas_src>
import functools

import jax
import jax.numpy as jnp
from jax import lax
from jax.experimental import pallas as pl
from jax.experimental.pallas import tpu as pltpu


# ----------------------------------------------------------------------------
# Fused kernel: maxpool2 -> gated conv 1 -> gated conv 2 (single invocation)
# ----------------------------------------------------------------------------
def _gated_down_kernel(x_ref, w1_ref, w2_ref, misc_ref, o_ref,
                       pad1_ref, pad2_ref, *, mxu_dtype):
    # x_ref    : (N, H, W, Cin)         NHWC input (permute fused into the call)
    # w*_ref   : (9*Cin_l, 2*Cout)      fused value|gate conv weights
    # misc_ref : (8, Cout)              rows = [ba1, bg1, g1, be1, ba2, bg2, g2, be2]
    # o_ref    : (N*Cout, Hc*Wc)        NCHW-major output slab
    # pad*_ref : halo-padded VMEM scratch buffers
    N, H, W, Cin = x_ref.shape
    Cout = misc_ref.shape[-1]
    Hc, Wc = H // 2, W // 2
    P = N * Hc * Wc
    eps = 1e-5

    m = misc_ref[...]                                   # (8, Cout)
    ba1, bg1, g1, be1 = m[0:1], m[1:2], m[2:3], m[3:4]
    ba2, bg2, g2, be2 = m[4:5], m[5:6], m[6:7], m[7:8]

    def zero_halo_ring(pad_ref, c):
        # zero only the 1-pixel ring; the interior is fully overwritten below.
        n_, hp, wp, _ = pad_ref.shape
        row = jnp.zeros((n_, 1, wp, c), jnp.float32)
        col = jnp.zeros((n_, hp, 1, c), jnp.float32)
        pad_ref[:, 0:1, :, :] = row
        pad_ref[:, hp - 1:hp, :, :] = row
        pad_ref[:, :, 0:1, :] = col
        pad_ref[:, :, wp - 1:wp, :] = col

    # ---------------- MaxPool2d(2): batched, single interior store ----------
    xr = x_ref[...].reshape(N * Hc, 2, W, Cin)                     # split H
    xh = jnp.maximum(xr[:, 0, :, :], xr[:, 1, :, :])               # pool H
    xw = xh.reshape(N * Hc, Wc, 2, Cin)                            # split W (sublane)
    pooled = jnp.maximum(xw[:, :, 0, :], xw[:, :, 1, :])           # pool W
    zero_halo_ring(pad1_ref, Cin)
    pad1_ref[:, 1:Hc + 1, 1:Wc + 1, :] = pooled.reshape(N, Hc, Wc, Cin)

    # ------------- gated conv = in-register im2col matmul + gate + BN + ReLU
    def gated_conv(pad_ref, w_ref, ba, bg, gamma, beta, cin):
        taps = []
        for dy in range(3):
            for dx in range(3):
                taps.append(pad_ref[:, dy:dy + Hc, dx:dx + Wc, :].reshape(P, cin))
        col = jnp.concatenate(taps, axis=-1).astype(mxu_dtype)     # (P, 9*cin)
        acc = jnp.dot(col, w_ref[...].astype(mxu_dtype),
                      preferred_element_type=jnp.float32)          # (P, 2*Cout)
        val = acc[:, :Cout] + ba
        gate = acc[:, Cout:] + bg
        z = val * jax.nn.sigmoid(gate)                             # (P, Cout)
        # BatchNorm2d training-mode forward: whole-batch stats, biased variance.
        mean = jnp.mean(z, axis=0, keepdims=True)
        var = jnp.mean((z - mean) ** 2, axis=0, keepdims=True)
        y = (z - mean) * lax.rsqrt(var + eps) * gamma + beta
        return jnp.maximum(y, 0.0)                                 # ReLU

    y1 = gated_conv(pad1_ref, w1_ref, ba1, bg1, g1, be1, Cin)       # (P, Cout)

    # conv2 halo buffer fed directly from conv1's output (padding = 1)
    zero_halo_ring(pad2_ref, Cout)
    pad2_ref[:, 1:Hc + 1, 1:Wc + 1, :] = y1.reshape(N, Hc, Wc, Cout)

    y2 = gated_conv(pad2_ref, w2_ref, ba2, bg2, g2, be2, Cout)      # (P, Cout)

    # Emit NCHW-major: (N, Hc*Wc, Cout) -> minor-dims transpose -> (N, Cout, Hc*Wc)
    y2t = jnp.swapaxes(y2.reshape(N, Hc * Wc, Cout), 1, 2)
    o_ref[...] = y2t.reshape(N * Cout, Hc * Wc).astype(o_ref.dtype)


# ----------------------------------------------------------------------------
# Parameter construction / one-time packing (OUTSIDE the jitted path)
# ----------------------------------------------------------------------------
def init_gated_conv_params(key, cin, cout):
    k1, k2, k3, k4 = jax.random.split(key, 4)
    fan_in = cin * 9
    scale = 1.0 / jnp.sqrt(jnp.float32(fan_in))
    wa = jax.random.normal(k1, (9, cin, cout), jnp.float32) * scale   # value conv
    wg = jax.random.normal(k2, (9, cin, cout), jnp.float32) * scale   # gate conv
    ba = jax.random.normal(k3, (1, cout), jnp.float32) * scale
    bg = jax.random.normal(k4, (1, cout), jnp.float32) * scale
    gamma = jnp.ones((1, cout), jnp.float32)    # BatchNorm default weight
    beta = jnp.zeros((1, cout), jnp.float32)    # BatchNorm default bias
    return (wa, wg, ba, bg, gamma, beta)


def pack_gated_down_params(p1, p2):
    """Called once at init time (not inside jit): fuse value|gate weights along the
    output-channel axis, flatten taps, and pack the 8 small vectors into one array."""
    wa1, wg1, ba1, bg1, g1, be1 = p1
    wa2, wg2, ba2, bg2, g2, be2 = p2
    cin, cout = wa1.shape[1], wa1.shape[2]
    cmid = wa2.shape[1]
    w1 = jnp.concatenate([wa1, wg1], axis=-1).reshape(9 * cin, 2 * cout)
    w2 = jnp.concatenate([wa2, wg2], axis=-1).reshape(9 * cmid, 2 * cout)
    misc = jnp.concatenate([ba1, bg1, g1, be1, ba2, bg2, g2, be2], axis=0)  # (8, cout)
    return w1, w2, misc


# ----------------------------------------------------------------------------
# Wrapper
# ----------------------------------------------------------------------------
@functools.partial(jax.jit, static_argnames=("mxu_dtype",))
def gated_down(x_nchw, w1, w2, misc, mxu_dtype=jnp.float32):
    N, Cin, H, W = x_nchw.shape
    assert H % 2 == 0 and W % 2 == 0, "MaxPool2d(2) kernel assumes even H, W"
    Hc, Wc = H // 2, W // 2
    Cout = misc.shape[-1]

    # Input permute; allowed to fuse into the kernel input (allow_input_fusion).
    x = jnp.transpose(x_nchw, (0, 2, 3, 1))                    # NCHW -> NHWC

    out2d = pl.pallas_call(
        functools.partial(_gated_down_kernel, mxu_dtype=mxu_dtype),
        out_shape=jax.ShapeDtypeStruct((N * Cout, Hc * Wc), jnp.float32),
        scratch_shapes=[
            pltpu.VMEM((N, Hc + 2, Wc + 2, Cin), jnp.float32),   # conv1 halo
            pltpu.VMEM((N, Hc + 2, Wc + 2, Cout), jnp.float32),  # conv2 halo
        ],
        compiler_params=pltpu.CompilerParams(
            vmem_limit_bytes=32 * 1024 * 1024,
            allow_input_fusion=[True, False, False, False],
        ),
    )(x, w1, w2, misc)

    # NCHW-major slab -> (N, Cout, Hc, Wc): pure-metadata reshape, no transpose.
    return out2d.reshape(N, Cout, Hc, Wc)


# ----------------------------------------------------------------------------
# Pure-JAX reference (for correctness check)
# ----------------------------------------------------------------------------
def _ref_gated_conv(x, wa, wg, ba, bg, gamma, beta):
    cin, cout = wa.shape[1], wa.shape[2]
    w = jnp.concatenate([wa, wg], axis=-1).reshape(3, 3, cin, 2 * cout)
    b = jnp.concatenate([ba, bg], axis=-1)[0]
    out = lax.conv_general_dilated(
        x, w, window_strides=(1, 1), padding="SAME",
        dimension_numbers=("NHWC", "HWIO", "NHWC")) + b
    a, g = out[..., :cout], out[..., cout:]
    z = a * jax.nn.sigmoid(g)
    mean = jnp.mean(z, axis=(0, 1, 2), keepdims=True)
    var = jnp.mean((z - mean) ** 2, axis=(0, 1, 2), keepdims=True)
    z = (z - mean) * lax.rsqrt(var + 1e-5) * gamma[0] + beta[0]
    return jnp.maximum(z, 0.0)


def _ref_gated_down(x_nchw, p1, p2):
    x = jnp.transpose(x_nchw, (0, 2, 3, 1))
    N, H, W, C = x.shape
    x = x.reshape(N, H // 2, 2, W // 2, 2, C).max(axis=(2, 4))
    x = _ref_gated_conv(x, *p1)
    x = _ref_gated_conv(x, *p2)
    return jnp.transpose(x, (0, 3, 1, 2))


# ----------------------------------------------------------------------------
if __name__ == "__main__":
    key = jax.random.PRNGKey(0)
    kx, kp1, kp2 = jax.random.split(key, 3)

    in_channels, out_channels = 4, 8
    x = jax.random.normal(kx, (2, in_channels, 16, 16), jnp.float32)  # NCHW

    p1 = init_gated_conv_params(kp1, in_channels, out_channels)
    p2 = init_gated_conv_params(kp2, out_channels, out_channels)

    # One-time packing, outside the jitted path (perf-review item 1 / 9).
    w1, w2, misc = pack_gated_down_params(p1, p2)
    w1, w2, misc = jax.block_until_ready((w1, w2, misc))

    out = gated_down(x, w1, w2, misc)           # mxu_dtype=f32 (bf16 switch for v5e/v6e)
    out = jax.block_until_ready(out)
    assert out.shape == (2, out_channels, 8, 8), out.shape

    ref = _ref_gated_down(x, p1, p2)
    assert jnp.allclose(out, ref, atol=1e-3, rtol=1e-3), (
        float(jnp.max(jnp.abs(out - ref))))

    print("KERNEL_OK")
</pallas_src>

<mosaic_0001>
module attributes {stable_mosaic.version = 11 : i64} {
  func.func @_gated_down_kernel(%arg0: memref<2x16x16x4xf32, #tpu.memory_space<vmem>>, %arg1: memref<36x16xf32, #tpu.memory_space<vmem>>, %arg2: memref<72x16xf32, #tpu.memory_space<vmem>>, %arg3: memref<8x8xf32, #tpu.memory_space<vmem>>, %arg4: memref<16x64xf32, #tpu.memory_space<vmem>>, %arg5: memref<2x10x10x4xf32, #tpu.memory_space<vmem>>, %arg6: memref<2x10x10x8xf32, #tpu.memory_space<vmem>>) attributes {dimension_semantics = [], scalar_prefetch = 0 : i64, scratch_operands = 2 : i64, tpu.core_type = #tpu.core_type<tc>} {
    %c0 = arith.constant 0 : index
    %c0_0 = arith.constant 0 : index
    %0 = vector.load %arg3[%c0, %c0_0] : memref<8x8xf32, #tpu.memory_space<vmem>>, vector<8x8xf32>
    %1 = vector.extract_strided_slice %0 {offsets = [0, 0], sizes = [1, 8], strides = [1, 1]} : vector<8x8xf32> to vector<1x8xf32>
    %2 = vector.extract_strided_slice %0 {offsets = [1, 0], sizes = [1, 8], strides = [1, 1]} : vector<8x8xf32> to vector<1x8xf32>
    %3 = vector.extract_strided_slice %0 {offsets = [2, 0], sizes = [1, 8], strides = [1, 1]} : vector<8x8xf32> to vector<1x8xf32>
    %4 = vector.extract_strided_slice %0 {offsets = [3, 0], sizes = [1, 8], strides = [1, 1]} : vector<8x8xf32> to vector<1x8xf32>
    %5 = vector.extract_strided_slice %0 {offsets = [4, 0], sizes = [1, 8], strides = [1, 1]} : vector<8x8xf32> to vector<1x8xf32>
    %6 = vector.extract_strided_slice %0 {offsets = [5, 0], sizes = [1, 8], strides = [1, 1]} : vector<8x8xf32> to vector<1x8xf32>
    %7 = vector.extract_strided_slice %0 {offsets = [6, 0], sizes = [1, 8], strides = [1, 1]} : vector<8x8xf32> to vector<1x8xf32>
    %8 = vector.extract_strided_slice %0 {offsets = [7, 0], sizes = [1, 8], strides = [1, 1]} : vector<8x8xf32> to vector<1x8xf32>
    %c0_1 = arith.constant 0 : index
    %c0_2 = arith.constant 0 : index
    %c0_3 = arith.constant 0 : index
    %c0_4 = arith.constant 0 : index
    %9 = vector.load %arg0[%c0_1, %c0_2, %c0_3, %c0_4] : memref<2x16x16x4xf32, #tpu.memory_space<vmem>>, vector<2x16x16x4xf32>
    %10 = vector.shape_cast %9 : vector<2x16x16x4xf32> to vector<16x2x16x4xf32>
    %11 = vector.extract_strided_slice %10 {offsets = [0, 0, 0, 0], sizes = [16, 1, 16, 4], strides = [1, 1, 1, 1]} : vector<16x2x16x4xf32> to vector<16x1x16x4xf32>
    %12 = vector.shape_cast %11 : vector<16x1x16x4xf32> to vector<16x16x4xf32>
    %13 = vector.extract_strided_slice %10 {offsets = [0, 1, 0, 0], sizes = [16, 1, 16, 4], strides = [1, 1, 1, 1]} : vector<16x2x16x4xf32> to vector<16x1x16x4xf32>
    %14 = vector.shape_cast %13 : vector<16x1x16x4xf32> to vector<16x16x4xf32>
    %15 = arith.maximumf %12, %14 : vector<16x16x4xf32>
    %16 = vector.shape_cast %15 : vector<16x16x4xf32> to vector<16x8x2x4xf32>
    %17 = vector.extract_strided_slice %16 {offsets = [0, 0, 0, 0], sizes = [16, 8, 1, 4], strides = [1, 1, 1, 1]} : vector<16x8x2x4xf32> to vector<16x8x1x4xf32>
    %18 = vector.shape_cast %17 : vector<16x8x1x4xf32> to vector<16x8x4xf32>
    %19 = vector.extract_strided_slice %16 {offsets = [0, 0, 1, 0], sizes = [16, 8, 1, 4], strides = [1, 1, 1, 1]} : vector<16x8x2x4xf32> to vector<16x8x1x4xf32>
    %20 = vector.shape_cast %19 : vector<16x8x1x4xf32> to vector<16x8x4xf32>
    %21 = arith.maximumf %18, %20 : vector<16x8x4xf32>
    %cst = arith.constant 0.000000e+00 : f32
    %22 = vector.broadcast %cst : f32 to vector<2x1x10x4xf32>
    %cst_5 = arith.constant 0.000000e+00 : f32
    %23 = vector.broadcast %cst_5 : f32 to vector<2x10x1x4xf32>
    %c0_6 = arith.constant 0 : index
    %c0_7 = arith.constant 0 : index
    %c0_8 = arith.constant 0 : index
    %c0_9 = arith.constant 0 : index
    %24 = vector.load %arg5[%c0_6, %c0_7, %c0_8, %c0_9] : memref<2x10x10x4xf32, #tpu.memory_space<vmem>>, vector<2x1x10x4xf32>
    tpu.vector_store %arg5[%c0_6, %c0_7, %c0_8, %c0_9], %22 {strides = array<i32>} : memref<2x10x10x4xf32, #tpu.memory_space<vmem>>, vector<2x1x10x4xf32>,
    %c0_10 = arith.constant 0 : index
    %c9 = arith.constant 9 : index
    %c0_11 = arith.constant 0 : index
    %c0_12 = arith.constant 0 : index
    %25 = vector.load %arg5[%c0_10, %c9, %c0_11, %c0_12] : memref<2x10x10x4xf32, #tpu.memory_space<vmem>>, vector<2x1x10x4xf32>
    tpu.vector_store %arg5[%c0_10, %c9, %c0_11, %c0_12], %22 {strides = array<i32>} : memref<2x10x10x4xf32, #tpu.memory_space<vmem>>, vector<2x1x10x4xf32>,
    %c0_13 = arith.constant 0 : index
    %c0_14 = arith.constant 0 : index
    %c0_15 = arith.constant 0 : index
    %c0_16 = arith.constant 0 : index
    %26 = vector.load %arg5[%c0_13, %c0_14, %c0_15, %c0_16] : memref<2x10x10x4xf32, #tpu.memory_space<vmem>>, vector<2x10x1x4xf32>
    tpu.vector_store %arg5[%c0_13, %c0_14, %c0_15, %c0_16], %23 {strides = array<i32>} : memref<2x10x10x4xf32, #tpu.memory_space<vmem>>, vector<2x10x1x4xf32>,
    %c0_17 = arith.constant 0 : index
    %c0_18 = arith.constant 0 : index
    %c9_19 = arith.constant 9 : index
    %c0_20 = arith.constant 0 : index
    %27 = vector.load %arg5[%c0_17, %c0_18, %c9_19, %c0_20] : memref<2x10x10x4xf32, #tpu.memory_space<vmem>>, vector<2x10x1x4xf32>
    tpu.vector_store %arg5[%c0_17, %c0_18, %c9_19, %c0_20], %23 {strides = array<i32>} : memref<2x10x10x4xf32, #tpu.memory_space<vmem>>, vector<2x10x1x4xf32>,
    %28 = vector.shape_cast %21 : vector<16x8x4xf32> to vector<2x8x8x4xf32>
    %c0_21 = arith.constant 0 : index
    %c1 = arith.constant 1 : index
    %c1_22 = arith.constant 1 : index
    %c0_23 = arith.constant 0 : index
    %29 = vector.load %arg5[%c0_21, %c1, %c1_22, %c0_23] : memref<2x10x10x4xf32, #tpu.memory_space<vmem>>, vector<2x8x8x4xf32>
    tpu.vector_store %arg5[%c0_21, %c1, %c1_22, %c0_23], %28 {strides = array<i32>} : memref<2x10x10x4xf32, #tpu.memory_space<vmem>>, vector<2x8x8x4xf32>,
    %c0_24 = arith.constant 0 : index
    %c0_25 = arith.constant 0 : index
    %c0_26 = arith.constant 0 : index
    %c0_27 = arith.constant 0 : index
    %30 = vector.load %arg5[%c0_24, %c0_25, %c0_26, %c0_27] : memref<2x10x10x4xf32, #tpu.memory_space<vmem>>, vector<2x8x8x4xf32>
    %31 = vector.shape_cast %30 : vector<2x8x8x4xf32> to vector<128x4xf32>
    %c0_28 = arith.constant 0 : index
    %c0_29 = arith.constant 0 : index
    %c1_30 = arith.constant 1 : index
    %c0_31 = arith.constant 0 : index
    %32 = vector.load %arg5[%c0_28, %c0_29, %c1_30, %c0_31] : memref<2x10x10x4xf32, #tpu.memory_space<vmem>>, vector<2x8x8x4xf32>
    %33 = vector.shape_cast %32 : vector<2x8x8x4xf32> to vector<128x4xf32>
    %c0_32 = arith.constant 0 : index
    %c0_33 = arith.constant 0 : index
    %c2 = arith.constant 2 : index
    %c0_34 = arith.constant 0 : index
    %34 = vector.load %arg5[%c0_32, %c0_33, %c2, %c0_34] : memref<2x10x10x4xf32, #tpu.memory_space<vmem>>, vector<2x8x8x4xf32>
    %35 = vector.shape_cast %34 : vector<2x8x8x4xf32> to vector<128x4xf32>
    %c0_35 = arith.constant 0 : index
    %c1_36 = arith.constant 1 : index
    %c0_37 = arith.constant 0 : index
    %c0_38 = arith.constant 0 : index
    %36 = vector.load %arg5[%c0_35, %c1_36, %c0_37, %c0_38] : memref<2x10x10x4xf32, #tpu.memory_space<vmem>>, vector<2x8x8x4xf32>
    %37 = vector.shape_cast %36 : vector<2x8x8x4xf32> to vector<128x4xf32>
    %c0_39 = arith.constant 0 : index
    %c1_40 = arith.constant 1 : index
    %c1_41 = arith.constant 1 : index
    %c0_42 = arith.constant 0 : index
    %38 = vector.load %arg5[%c0_39, %c1_40, %c1_41, %c0_42] : memref<2x10x10x4xf32, #tpu.memory_space<vmem>>, vector<2x8x8x4xf32>
    %39 = vector.shape_cast %38 : vector<2x8x8x4xf32> to vector<128x4xf32>
    %c0_43 = arith.constant 0 : index
    %c1_44 = arith.constant 1 : index
    %c2_45 = arith.constant 2 : index
    %c0_46 = arith.constant 0 : index
    %40 = vector.load %arg5[%c0_43, %c1_44, %c2_45, %c0_46] : memref<2x10x10x4xf32, #tpu.memory_space<vmem>>, vector<2x8x8x4xf32>
    %41 = vector.shape_cast %40 : vector<2x8x8x4xf32> to vector<128x4xf32>
    %c0_47 = arith.constant 0 : index
    %c2_48 = arith.constant 2 : index
    %c0_49 = arith.constant 0 : index
    %c0_50 = arith.constant 0 : index
    %42 = vector.load %arg5[%c0_47, %c2_48, %c0_49, %c0_50] : memref<2x10x10x4xf32, #tpu.memory_space<vmem>>, vector<2x8x8x4xf32>
    %43 = vector.shape_cast %42 : vector<2x8x8x4xf32> to vector<128x4xf32>
    %c0_51 = arith.constant 0 : index
    %c2_52 = arith.constant 2 : index
    %c1_53 = arith.constant 1 : index
    %c0_54 = arith.constant 0 : index
    %44 = vector.load %arg5[%c0_51, %c2_52, %c1_53, %c0_54] : memref<2x10x10x4xf32, #tpu.memory_space<vmem>>, vector<2x8x8x4xf32>
    %45 = vector.shape_cast %44 : vector<2x8x8x4xf32> to vector<128x4xf32>
    %c0_55 = arith.constant 0 : index
    %c2_56 = arith.constant 2 : index
    %c2_57 = arith.constant 2 : index
    %c0_58 = arith.constant 0 : index
    %46 = vector.load %arg5[%c0_55, %c2_56, %c2_57, %c0_58] : memref<2x10x10x4xf32, #tpu.memory_space<vmem>>, vector<2x8x8x4xf32>
    %47 = vector.shape_cast %46 : vector<2x8x8x4xf32> to vector<128x4xf32>
    %48 = tpu.concatenate %31, %33, %35, %37, %39, %41, %43, %45, %47 in 1 : vector<128x4xf32>, vector<128x4xf32>, vector<128x4xf32>, vector<128x4xf32>, vector<128x4xf32>, vector<128x4xf32>, vector<128x4xf32>, vector<128x4xf32>, vector<128x4xf32> -> vector<128x36xf32>
    %c0_59 = arith.constant 0 : index
    %c0_60 = arith.constant 0 : index
    %49 = vector.load %arg1[%c0_59, %c0_60] : memref<36x16xf32, #tpu.memory_space<vmem>>, vector<36x16xf32>
    %cst_61 = arith.constant dense<0.000000e+00> : vector<128x16xf32>
    %50 = tpu.matmul %48, %49, %cst_61 {dimension_numbers = #tpu.dot_dimension_numbers<[1], [0], [0], [1], [0, 0, 1, 1], [], []>} : vector<128x36xf32>, vector<36x16xf32>, vector<128x16xf32> -> vector<128x16xf32>
    %51 = vector.extract_strided_slice %50 {offsets = [0, 0], sizes = [128, 8], strides = [1, 1]} : vector<128x16xf32> to vector<128x8xf32>
    %52 = vector.broadcast %1 : vector<1x8xf32> to vector<128x8xf32>
    %53 = arith.addf %51, %52 : vector<128x8xf32>
    %54 = vector.extract_strided_slice %50 {offsets = [0, 8], sizes = [128, 8], strides = [1, 1]} : vector<128x16xf32> to vector<128x8xf32>
    %55 = vector.broadcast %2 : vector<1x8xf32> to vector<128x8xf32>
    %56 = arith.addf %54, %55 : vector<128x8xf32>
    %57 = arith.negf %56 : vector<128x8xf32>
    %58 = math.exp %57 : vector<128x8xf32>
    %cst_62 = arith.constant 1.000000e+00 : f32
    %59 = vector.broadcast %cst_62 : f32 to vector<128x8xf32>
    %60 = arith.addf %59, %58 : vector<128x8xf32>
    %61 = arith.divf %59, %60 : vector<128x8xf32>
    %62 = arith.mulf %53, %61 : vector<128x8xf32>
    %cst_63 = arith.constant dense<0.000000e+00> : vector<8xf32>
    %63 = vector.multi_reduction <add>, %62, %cst_63 [0] : vector<128x8xf32> to vector<8xf32>
    %64 = vector.shape_cast %63 : vector<8xf32> to vector<1x8xf32>
    %cst_64 = arith.constant 1.280000e+02 : f32
    %65 = vector.broadcast %cst_64 : f32 to vector<1x8xf32>
    %66 = arith.divf %64, %65 : vector<1x8xf32>
    %67 = vector.broadcast %66 : vector<1x8xf32> to vector<128x8xf32>
    %68 = arith.subf %62, %67 : vector<128x8xf32>
    %69 = arith.mulf %68, %68 : vector<128x8xf32>
    %cst_65 = arith.constant dense<0.000000e+00> : vector<8xf32>
    %70 = vector.multi_reduction <add>, %69, %cst_65 [0] : vector<128x8xf32> to vector<8xf32>
    %71 = vector.shape_cast %70 : vector<8xf32> to vector<1x8xf32>
    %cst_66 = arith.constant 1.280000e+02 : f32
    %72 = vector.broadcast %cst_66 : f32 to vector<1x8xf32>
    %73 = arith.divf %71, %72 : vector<1x8xf32>
    %74 = vector.broadcast %66 : vector<1x8xf32> to vector<128x8xf32>
    %75 = arith.subf %62, %74 : vector<128x8xf32>
    %cst_67 = arith.constant 9.99999974E-6 : f32
    %76 = vector.broadcast %cst_67 : f32 to vector<1x8xf32>
    %77 = arith.addf %73, %76 : vector<1x8xf32>
    %78 = math.rsqrt %77 : vector<1x8xf32>
    %79 = vector.broadcast %78 : vector<1x8xf32> to vector<128x8xf32>
    %80 = arith.mulf %75, %79 : vector<128x8xf32>
    %81 = vector.broadcast %3 : vector<1x8xf32> to vector<128x8xf32>
    %82 = arith.mulf %80, %81 : vector<128x8xf32>
    %83 = vector.broadcast %4 : vector<1x8xf32> to vector<128x8xf32>
    %84 = arith.addf %82, %83 : vector<128x8xf32>
    %cst_68 = arith.constant 0.000000e+00 : f32
    %85 = vector.broadcast %cst_68 : f32 to vector<128x8xf32>
    %86 = arith.maximumf %84, %85 : vector<128x8xf32>
    %cst_69 = arith.constant 0.000000e+00 : f32
    %87 = vector.broadcast %cst_69 : f32 to vector<2x1x10x8xf32>
    %cst_70 = arith.constant 0.000000e+00 : f32
    %88 = vector.broadcast %cst_70 : f32 to vector<2x10x1x8xf32>
    %c0_71 = arith.constant 0 : index
    %c0_72 = arith.constant 0 : index
    %c0_73 = arith.constant 0 : index
    %c0_74 = arith.constant 0 : index
    %89 = vector.load %arg6[%c0_71, %c0_72, %c0_73, %c0_74] : memref<2x10x10x8xf32, #tpu.memory_space<vmem>>, vector<2x1x10x8xf32>
    tpu.vector_store %arg6[%c0_71, %c0_72, %c0_73, %c0_74], %87 {strides = array<i32>} : memref<2x10x10x8xf32, #tpu.memory_space<vmem>>, vector<2x1x10x8xf32>,
    %c0_75 = arith.constant 0 : index
    %c9_76 = arith.constant 9 : index
    %c0_77 = arith.constant 0 : index
    %c0_78 = arith.constant 0 : index
    %90 = vector.load %arg6[%c0_75, %c9_76, %c0_77, %c0_78] : memref<2x10x10x8xf32, #tpu.memory_space<vmem>>, vector<2x1x10x8xf32>
    tpu.vector_store %arg6[%c0_75, %c9_76, %c0_77, %c0_78], %87 {strides = array<i32>} : memref<2x10x10x8xf32, #tpu.memory_space<vmem>>, vector<2x1x10x8xf32>,
    %c0_79 = arith.constant 0 : index
    %c0_80 = arith.constant 0 : index
    %c0_81 = arith.constant 0 : index
    %c0_82 = arith.constant 0 : index
    %91 = vector.load %arg6[%c0_79, %c0_80, %c0_81, %c0_82] : memref<2x10x10x8xf32, #tpu.memory_space<vmem>>, vector<2x10x1x8xf32>
    tpu.vector_store %arg6[%c0_79, %c0_80, %c0_81, %c0_82], %88 {strides = array<i32>} : memref<2x10x10x8xf32, #tpu.memory_space<vmem>>, vector<2x10x1x8xf32>,
    %c0_83 = arith.constant 0 : index
    %c0_84 = arith.constant 0 : index
    %c9_85 = arith.constant 9 : index
    %c0_86 = arith.constant 0 : index
    %92 = vector.load %arg6[%c0_83, %c0_84, %c9_85, %c0_86] : memref<2x10x10x8xf32, #tpu.memory_space<vmem>>, vector<2x10x1x8xf32>
    tpu.vector_store %arg6[%c0_83, %c0_84, %c9_85, %c0_86], %88 {strides = array<i32>} : memref<2x10x10x8xf32, #tpu.memory_space<vmem>>, vector<2x10x1x8xf32>,
    %93 = vector.shape_cast %86 : vector<128x8xf32> to vector<2x8x8x8xf32>
    %c0_87 = arith.constant 0 : index
    %c1_88 = arith.constant 1 : index
    %c1_89 = arith.constant 1 : index
    %c0_90 = arith.constant 0 : index
    %94 = vector.load %arg6[%c0_87, %c1_88, %c1_89, %c0_90] : memref<2x10x10x8xf32, #tpu.memory_space<vmem>>, vector<2x8x8x8xf32>
    tpu.vector_store %arg6[%c0_87, %c1_88, %c1_89, %c0_90], %93 {strides = array<i32>} : memref<2x10x10x8xf32, #tpu.memory_space<vmem>>, vector<2x8x8x8xf32>,
    %c0_91 = arith.constant 0 : index
    %c0_92 = arith.constant 0 : index
    %c0_93 = arith.constant 0 : index
    %c0_94 = arith.constant 0 : index
    %95 = vector.load %arg6[%c0_91, %c0_92, %c0_93, %c0_94] : memref<2x10x10x8xf32, #tpu.memory_space<vmem>>, vector<2x8x8x8xf32>
    %96 = vector.shape_cast %95 : vector<2x8x8x8xf32> to vector<128x8xf32>
    %c0_95 = arith.constant 0 : index
    %c0_96 = arith.constant 0 : index
    %c1_97 = arith.constant 1 : index
    %c0_98 = arith.constant 0 : index
    %97 = vector.load %arg6[%c0_95, %c0_96, %c1_97, %c0_98] : memref<2x10x10x8xf32, #tpu.memory_space<vmem>>, vector<2x8x8x8xf32>
    %98 = vector.shape_cast %97 : vector<2x8x8x8xf32> to vector<128x8xf32>
    %c0_99 = arith.constant 0 : index
    %c0_100 = arith.constant 0 : index
    %c2_101 = arith.constant 2 : index
    %c0_102 = arith.constant 0 : index
    %99 = vector.load %arg6[%c0_99, %c0_100, %c2_101, %c0_102] : memref<2x10x10x8xf32, #tpu.memory_space<vmem>>, vector<2x8x8x8xf32>
    %100 = vector.shape_cast %99 : vector<2x8x8x8xf32> to vector<128x8xf32>
    %c0_103 = arith.constant 0 : index
    %c1_104 = arith.constant 1 : index
    %c0_105 = arith.constant 0 : index
    %c0_106 = arith.constant 0 : index
    %101 = vector.load %arg6[%c0_103, %c1_104, %c0_105, %c0_106] : memref<2x10x10x8xf32, #tpu.memory_space<vmem>>, vector<2x8x8x8xf32>
    %102 = vector.shape_cast %101 : vector<2x8x8x8xf32> to vector<128x8xf32>
    %c0_107 = arith.constant 0 : index
    %c1_108 = arith.constant 1 : index
    %c1_109 = arith.constant 1 : index
    %c0_110 = arith.constant 0 : index
    %103 = vector.load %arg6[%c0_107, %c1_108, %c1_109, %c0_110] : memref<2x10x10x8xf32, #tpu.memory_space<vmem>>, vector<2x8x8x8xf32>
    %104 = vector.shape_cast %103 : vector<2x8x8x8xf32> to vector<128x8xf32>
    %c0_111 = arith.constant 0 : index
    %c1_112 = arith.constant 1 : index
    %c2_113 = arith.constant 2 : index
    %c0_114 = arith.constant 0 : index
    %105 = vector.load %arg6[%c0_111, %c1_112, %c2_113, %c0_114] : memref<2x10x10x8xf32, #tpu.memory_space<vmem>>, vector<2x8x8x8xf32>
    %106 = vector.shape_cast %105 : vector<2x8x8x8xf32> to vector<128x8xf32>
    %c0_115 = arith.constant 0 : index
    %c2_116 = arith.constant 2 : index
    %c0_117 = arith.constant 0 : index
    %c0_118 = arith.constant 0 : index
    %107 = vector.load %arg6[%c0_115, %c2_116, %c0_117, %c0_118] : memref<2x10x10x8xf32, #tpu.memory_space<vmem>>, vector<2x8x8x8xf32>
    %108 = vector.shape_cast %107 : vector<2x8x8x8xf32> to vector<128x8xf32>
    %c0_119 = arith.constant 0 : index
    %c2_120 = arith.constant 2 : index
    %c1_121 = arith.constant 1 : index
    %c0_122 = arith.constant 0 : index
    %109 = vector.load %arg6[%c0_119, %c2_120, %c1_121, %c0_122] : memref<2x10x10x8xf32, #tpu.memory_space<vmem>>, vector<2x8x8x8xf32>
    %110 = vector.shape_cast %109 : vector<2x8x8x8xf32> to vector<128x8xf32>
    %c0_123 = arith.constant 0 : index
    %c2_124 = arith.constant 2 : index
    %c2_125 = arith.constant 2 : index
    %c0_126 = arith.constant 0 : index
    %111 = vector.load %arg6[%c0_123, %c2_124, %c2_125, %c0_126] : memref<2x10x10x8xf32, #tpu.memory_space<vmem>>, vector<2x8x8x8xf32>
    %112 = vector.shape_cast %111 : vector<2x8x8x8xf32> to vector<128x8xf32>
    %113 = tpu.concatenate %96, %98, %100, %102, %104, %106, %108, %110, %112 in 1 : vector<128x8xf32>, vector<128x8xf32>, vector<128x8xf32>, vector<128x8xf32>, vector<128x8xf32>, vector<128x8xf32>, vector<128x8xf32>, vector<128x8xf32>, vector<128x8xf32> -> vector<128x72xf32>
    %c0_127 = arith.constant 0 : index
    %c0_128 = arith.constant 0 : index
    %114 = vector.load %arg2[%c0_127, %c0_128] : memref<72x16xf32, #tpu.memory_space<vmem>>, vector<72x16xf32>
    %cst_129 = arith.constant dense<0.000000e+00> : vector<128x16xf32>
    %115 = tpu.matmul %113, %114, %cst_129 {dimension_numbers = #tpu.dot_dimension_numbers<[1], [0], [0], [1], [0, 0, 1, 1], [], []>} : vector<128x72xf32>, vector<72x16xf32>, vector<128x16xf32> -> vector<128x16xf32>
    %116 = vector.extract_strided_slice %115 {offsets = [0, 0], sizes = [128, 8], strides = [1, 1]} : vector<128x16xf32> to vector<128x8xf32>
    %117 = vector.broadcast %5 : vector<1x8xf32> to vector<128x8xf32>
    %118 = arith.addf %116, %117 : vector<128x8xf32>
    %119 = vector.extract_strided_slice %115 {offsets = [0, 8], sizes = [128, 8], strides = [1, 1]} : vector<128x16xf32> to vector<128x8xf32>
    %120 = vector.broadcast %6 : vector<1x8xf32> to vector<128x8xf32>
    %121 = arith.addf %119, %120 : vector<128x8xf32>
    %122 = arith.negf %121 : vector<128x8xf32>
    %123 = math.exp %122 : vector<128x8xf32>
    %cst_130 = arith.constant 1.000000e+00 : f32
    %124 = vector.broadcast %cst_130 : f32 to vector<128x8xf32>
    %125 = arith.addf %124, %123 : vector<128x8xf32>
    %126 = arith.divf %124, %125 : vector<128x8xf32>
    %127 = arith.mulf %118, %126 : vector<128x8xf32>
    %cst_131 = arith.constant dense<0.000000e+00> : vector<8xf32>
    %128 = vector.multi_reduction <add>, %127, %cst_131 [0] : vector<128x8xf32> to vector<8xf32>
    %129 = vector.shape_cast %128 : vector<8xf32> to vector<1x8xf32>
    %cst_132 = arith.constant 1.280000e+02 : f32
    %130 = vector.broadcast %cst_132 : f32 to vector<1x8xf32>
    %131 = arith.divf %129, %130 : vector<1x8xf32>
    %132 = vector.broadcast %131 : vector<1x8xf32> to vector<128x8xf32>
    %133 = arith.subf %127, %132 : vector<128x8xf32>
    %134 = arith.mulf %133, %133 : vector<128x8xf32>
    %cst_133 = arith.constant dense<0.000000e+00> : vector<8xf32>
    %135 = vector.multi_reduction <add>, %134, %cst_133 [0] : vector<128x8xf32> to vector<8xf32>
    %136 = vector.shape_cast %135 : vector<8xf32> to vector<1x8xf32>
    %cst_134 = arith.constant 1.280000e+02 : f32
    %137 = vector.broadcast %cst_134 : f32 to vector<1x8xf32>
    %138 = arith.divf %136, %137 : vector<1x8xf32>
    %139 = vector.broadcast %131 : vector<1x8xf32> to vector<128x8xf32>
    %140 = arith.subf %127, %139 : vector<128x8xf32>
    %cst_135 = arith.constant 9.99999974E-6 : f32
    %141 = vector.broadcast %cst_135 : f32 to vector<1x8xf32>
    %142 = arith.addf %138, %141 : vector<1x8xf32>
    %143 = math.rsqrt %142 : vector<1x8xf32>
    %144 = vector.broadcast %143 : vector<1x8xf32> to vector<128x8xf32>
    %145 = arith.mulf %140, %144 : vector<128x8xf32>
    %146 = vector.broadcast %7 : vector<1x8xf32> to vector<128x8xf32>
    %147 = arith.mulf %145, %146 : vector<128x8xf32>
    %148 = vector.broadcast %8 : vector<1x8xf32> to vector<128x8xf32>
    %149 = arith.addf %147, %148 : vector<128x8xf32>
    %cst_136 = arith.constant 0.000000e+00 : f32
    %150 = vector.broadcast %cst_136 : f32 to vector<128x8xf32>
    %151 = arith.maximumf %149, %150 : vector<128x8xf32>
    %152 = vector.shape_cast %151 : vector<128x8xf32> to vector<2x64x8xf32>
    %153 = tpu.transpose %152, [0, 2, 1] : vector<2x64x8xf32> -> vector<2x8x64xf32>
    %154 = vector.shape_cast %153 : vector<2x8x64xf32> to vector<16x64xf32>
    %c0_137 = arith.constant 0 : index
    %c0_138 = arith.constant 0 : index
    %155 = vector.load %arg4[%c0_137, %c0_138] : memref<16x64xf32, #tpu.memory_space<vmem>>, vector<16x64xf32>
    tpu.vector_store %arg4[%c0_137, %c0_138], %154 {strides = array<i32>} : memref<16x64xf32, #tpu.memory_space<vmem>>, vector<16x64xf32>,
    return
  }
}

</mosaic_0001>

<llo_original>
// kernel: gated_down.2
$region0: #{gated_down.2}
  #allocation0 [shape = 'u32[]', space=smem, size = 0x4, offset = 0x4, fixed_abs, tag = 'smem constant byte address 0x4 - core index']
  #allocation1 [shape = 'u32[144,128]{1,0:T(1,128)}', space=vmem, size = 0x12000, scoped, tag = 'internal scratch']
  #allocation2 [shape = 'f32[2,10,10,4]{3,2,1,0:T(8,128)}', space=vmem, size = 0x28000, scoped, tag = 'scratch operand']
  #allocation3 [shape = 'f32[2,10,10,8]{3,2,1,0:T(8,128)}', space=vmem, size = 0x28000, scoped, tag = 'scratch operand']
  %s0 = inlined_call_operand.vmem [shape: f32[36,16], index: 0, kind: input, shape index: {}]
  %s1 = inlined_call_operand.vmem [shape: f32[72,16], index: 1, kind: input, shape index: {}]
  %s2 = inlined_call_operand.vmem [shape: f32[8,8], index: 2, kind: input, shape index: {}]
  %s3 = inlined_call_operand.vmem [shape: f32[2,4,16,16], index: 3, kind: input, shape index: {}]
  %s4 = inlined_call_operand.vmem [shape: f32[16,64], index: 4, kind: output, shape index: {}]
  %s5 = sld [smem:[#allocation0]]
  $region26: #{gated_down.2} parent=0
    _
  %s7 = ssub.s32 1, %s5
  %s8 = scalar_select 0, %s7, %s5
  $region1: #{gated_down.2} parent=0
    #allocation4 [shape = 'u8[262144]{0}', space=vmem, size = 0x40000, dematerialized = true, scoped, tag = 'FusionAdapter Buffer %fusion.1 = f32[2,16,16,4]{3,2,1,0:T(8,128)} fusion(%param_3.1), kind=kLoop, calls=%fused_computation.1.clone, metadata={op_name="jit(gated_down)/transpose" stack_frame_id=7}']
    // Predicated region
    $region2: #{gated_down.2} parent=1 // pred_check
      _
    $region3: #{gated_down.2} parent=1 // pred_check_branch
      %10 = sbr.rel (0) target = $region5
    $region4: #{gated_down.2} parent=1 // pred_region
      _
    $region5: #{gated_down.2} parent=1 // pred_fallthru
      _
    // Predicated region
    $region6: #{gated_down.2} parent=1 // pred_check
      _
    $region7: #{gated_down.2} parent=1 // pred_check_branch
      %12 = sbr.rel (0) target = $region9
    $region8: #{gated_down.2} parent=1 // pred_region
      _
    $region9: #{gated_down.2} parent=1 // pred_fallthru
      _
    // Predicated region
    $region10: #{gated_down.2} parent=1 // pred_check
      _
    $region11: #{gated_down.2} parent=1 // pred_check_branch
      %14 = sbr.rel (0) target = $region13
    $region12: #{gated_down.2} parent=1 // pred_region
      _
    $region13: #{gated_down.2} parent=1 // pred_fallthru
      _
    // Predicated region
    $region14: #{gated_down.2} parent=1 // pred_check
      _
    $region15: #{gated_down.2} parent=1 // pred_check_branch
      %16 = sbr.rel (0) target = $region17
    $region16: #{gated_down.2} parent=1 // pred_region
      _
    $region17: #{gated_down.2} parent=1 // pred_fallthru
      _
    %v17 = vld [vmem:[%s3] sm:$0xff]
    %s19 = ssub.s32 256, 1
    %20 = vst [vmem:[#allocation4] sm:%s19] %v17
    %s21 = scalar_lea.vmem %s3, 8
    %v22 = vld [vmem:[%s21] sm:$0xff]
    %s23 = scalar_lea.vmem [#allocation4], 8
    %s25 = ssub.s32 256, 1
    %26 = vst [vmem:[%s23] sm:%s25] %v22
    %s27 = scalar_lea.vmem %s3, 16
    %v28 = vld [vmem:[%s27] sm:$0xff]
    %s29 = scalar_lea.vmem [#allocation4], 16
    %s31 = ssub.s32 256, 1
    %32 = vst [vmem:[%s29] sm:%s31] %v28
    %s33 = scalar_lea.vmem %s3, 24
    %v34 = vld [vmem:[%s33] sm:$0xff]
    %s35 = scalar_lea.vmem [#allocation4], 24
    %s37 = ssub.s32 256, 1
    %38 = vst [vmem:[%s35] sm:%s37] %v34
    %s39 = scalar_lea.vmem %s3, 32
    %v40 = vld [vmem:[%s39] sm:$0xff]
    %s41 = scalar_lea.vmem [#allocation4], 32
    %s43 = ssub.s32 256, 1
    %44 = vst [vmem:[%s41] sm:%s43] %v40
    %s45 = scalar_lea.vmem %s3, 40
    %v46 = vld [vmem:[%s45] sm:$0xff]
    %s47 = scalar_lea.vmem [#allocation4], 40
    %s49 = ssub.s32 256, 1
    %50 = vst [vmem:[%s47] sm:%s49] %v46
    %s51 = scalar_lea.vmem %s3, 48
    %v52 = vld [vmem:[%s51] sm:$0xff]
    %s53 = scalar_lea.vmem [#allocation4], 48
    %s55 = ssub.s32 256, 1
    %56 = vst [vmem:[%s53] sm:%s55] %v52
    %s57 = scalar_lea.vmem %s3, 56
    %v58 = vld [vmem:[%s57] sm:$0xff]
    %s59 = scalar_lea.vmem [#allocation4], 56
    %s61 = ssub.s32 256, 1
    %62 = vst [vmem:[%s59] sm:%s61] %v58
    %s63 = scalar_lea.vmem %s3, 64
    %v64 = vld [vmem:[%s63] sm:$0xff]
    %s65 = scalar_lea.vmem [#allocation4], 64
    %s67 = ssub.s32 256, 1
    %68 = vst [vmem:[%s65] sm:%s67] %v64
    %s69 = scalar_lea.vmem %s3, 72
    %v70 = vld [vmem:[%s69] sm:$0xff]
    %s71 = scalar_lea.vmem [#allocation4], 72
    %s73 = ssub.s32 256, 1
    %74 = vst [vmem:[%s71] sm:%s73] %v70
    %s75 = scalar_lea.vmem %s3, 80
    %v76 = vld [vmem:[%s75] sm:$0xff]
    %s77 = scalar_lea.vmem [#allocation4], 80
    %s79 = ssub.s32 256, 1
    %80 = vst [vmem:[%s77] sm:%s79] %v76
    %s81 = scalar_lea.vmem %s3, 88
    %v82 = vld [vmem:[%s81] sm:$0xff]
    %s83 = scalar_lea.vmem [#allocation4], 88
    %s85 = ssub.s32 256, 1
    %86 = vst [vmem:[%s83] sm:%s85] %v82
    %s87 = scalar_lea.vmem %s3, 96
    %v88 = vld [vmem:[%s87] sm:$0xff]
    %s89 = scalar_lea.vmem [#allocation4], 96
    %s91 = ssub.s32 256, 1
    %92 = vst [vmem:[%s89] sm:%s91] %v88
    %s93 = scalar_lea.vmem %s3, 104
    %v94 = vld [vmem:[%s93] sm:$0xff]
    %s95 = scalar_lea.vmem [#allocation4], 104
    %s97 = ssub.s32 256, 1
    %98 = vst [vmem:[%s95] sm:%s97] %v94
    %s99 = scalar_lea.vmem %s3, 112
    %v100 = vld [vmem:[%s99] sm:$0xff]
    %s101 = scalar_lea.vmem [#allocation4], 112
    %s103 = ssub.s32 256, 1
    %104 = vst [vmem:[%s101] sm:%s103] %v100
    %s105 = scalar_lea.vmem %s3, 120
    %v106 = vld [vmem:[%s105] sm:$0xff]
    %s107 = scalar_lea.vmem [#allocation4], 120
    %s109 = ssub.s32 256, 1
    %110 = vst [vmem:[%s107] sm:%s109] %v106
    %s111 = scalar_lea.vmem %s3, 128
    %v112 = vld [vmem:[%s111] sm:$0xff]
    %s113 = scalar_lea.vmem [#allocation4], 128
    %s115 = ssub.s32 256, 1
    %116 = vst [vmem:[%s113] sm:%s115] %v112
    %s117 = scalar_lea.vmem %s3, 136
    %v118 = vld [vmem:[%s117] sm:$0xff]
    %s119 = scalar_lea.vmem [#allocation4], 136
    %s121 = ssub.s32 256, 1
    %122 = vst [vmem:[%s119] sm:%s121] %v118
    %s123 = scalar_lea.vmem %s3, 144
    %v124 = vld [vmem:[%s123] sm:$0xff]
    %s125 = scalar_lea.vmem [#allocation4], 144
    %s127 = ssub.s32 256, 1
    %128 = vst [vmem:[%s125] sm:%s127] %v124
    %s129 = scalar_lea.vmem %s3, 152
    %v130 = vld [vmem:[%s129] sm:$0xff]
    %s131 = scalar_lea.vmem [#allocation4], 152
    %s133 = ssub.s32 256, 1
    %134 = vst [vmem:[%s131] sm:%s133] %v130
    %s135 = scalar_lea.vmem %s3, 160
    %v136 = vld [vmem:[%s135] sm:$0xff]
    %s137 = scalar_lea.vmem [#allocation4], 160
    %s139 = ssub.s32 256, 1
    %140 = vst [vmem:[%s137] sm:%s139] %v136
    %s141 = scalar_lea.vmem %s3, 168
    %v142 = vld [vmem:[%s141] sm:$0xff]
    %s143 = scalar_lea.vmem [#allocation4], 168
    %s145 = ssub.s32 256, 1
    %146 = vst [vmem:[%s143] sm:%s145] %v142
    %s147 = scalar_lea.vmem %s3, 176
    %v148 = vld [vmem:[%s147] sm:$0xff]
    %s149 = scalar_lea.vmem [#allocation4], 176
    %s151 = ssub.s32 256, 1
    %152 = vst [vmem:[%s149] sm:%s151] %v148
    %s153 = scalar_lea.vmem %s3, 184
    %v154 = vld [vmem:[%s153] sm:$0xff]
    %s155 = scalar_lea.vmem [#allocation4], 184
    %s157 = ssub.s32 256, 1
    %158 = vst [vmem:[%s155] sm:%s157] %v154
    %s159 = scalar_lea.vmem %s3, 192
    %v160 = vld [vmem:[%s159] sm:$0xff]
    %s161 = scalar_lea.vmem [#allocation4], 192
    %s163 = ssub.s32 256, 1
    %164 = vst [vmem:[%s161] sm:%s163] %v160
    %s165 = scalar_lea.vmem %s3, 200
    %v166 = vld [vmem:[%s165] sm:$0xff]
    %s167 = scalar_lea.vmem [#allocation4], 200
    %s169 = ssub.s32 256, 1
    %170 = vst [vmem:[%s167] sm:%s169] %v166
    %s171 = scalar_lea.vmem %s3, 208
    %v172 = vld [vmem:[%s171] sm:$0xff]
    %s173 = scalar_lea.vmem [#allocation4], 208
    %s175 = ssub.s32 256, 1
    %176 = vst [vmem:[%s173] sm:%s175] %v172
    %s177 = scalar_lea.vmem %s3, 216
    %v178 = vld [vmem:[%s177] sm:$0xff]
    %s179 = scalar_lea.vmem [#allocation4], 216
    %s181 = ssub.s32 256, 1
    %182 = vst [vmem:[%s179] sm:%s181] %v178
    %s183 = scalar_lea.vmem %s3, 224
    %v184 = vld [vmem:[%s183] sm:$0xff]
    %s185 = scalar_lea.vmem [#allocation4], 224
    %s187 = ssub.s32 256, 1
    %188 = vst [vmem:[%s185] sm:%s187] %v184
    %s189 = scalar_lea.vmem %s3, 232
    %v190 = vld [vmem:[%s189] sm:$0xff]
    %s191 = scalar_lea.vmem [#allocation4], 232
    %s193 = ssub.s32 256, 1
    %194 = vst [vmem:[%s191] sm:%s193] %v190
    %s195 = scalar_lea.vmem %s3, 240
    %v196 = vld [vmem:[%s195] sm:$0xff]
    %s197 = scalar_lea.vmem [#allocation4], 240
    %s199 = ssub.s32 256, 1
    %200 = vst [vmem:[%s197] sm:%s199] %v196
    %s201 = scalar_lea.vmem %s3, 248
    %v202 = vld [vmem:[%s201] sm:$0xff]
    %s203 = scalar_lea.vmem [#allocation4], 248
    %s205 = ssub.s32 256, 1
    %206 = vst [vmem:[%s203] sm:%s205] %v202
    %s207 = scalar_lea.vmem %s3, 256
    %v208 = vld [vmem:[%s207] sm:$0xff]
    %s209 = scalar_lea.vmem [#allocation4], 256
    %s211 = ssub.s32 256, 1
    %212 = vst [vmem:[%s209] sm:%s211] %v208
    %s213 = scalar_lea.vmem %s3, 264
    %v214 = vld [vmem:[%s213] sm:$0xff]
    %s215 = scalar_lea.vmem [#allocation4], 264
    %s217 = ssub.s32 256, 1
    %218 = vst [vmem:[%s215] sm:%s217] %v214
    %s219 = scalar_lea.vmem %s3, 272
    %v220 = vld [vmem:[%s219] sm:$0xff]
    %s221 = scalar_lea.vmem [#allocation4], 272
    %s223 = ssub.s32 256, 1
    %224 = vst [vmem:[%s221] sm:%s223] %v220
    %s225 = scalar_lea.vmem %s3, 280
    %v226 = vld [vmem:[%s225] sm:$0xff]
    %s227 = scalar_lea.vmem [#allocation4], 280
    %s229 = ssub.s32 256, 1
    %230 = vst [vmem:[%s227] sm:%s229] %v226
    %s231 = scalar_lea.vmem %s3, 288
    %v232 = vld [vmem:[%s231] sm:$0xff]
    %s233 = scalar_lea.vmem [#allocation4], 288
    %s235 = ssub.s32 256, 1
    %236 = vst [vmem:[%s233] sm:%s235] %v232
    %s237 = scalar_lea.vmem %s3, 296
    %v238 = vld [vmem:[%s237] sm:$0xff]
    %s239 = scalar_lea.vmem [#allocation4], 296
    %s241 = ssub.s32 256, 1
    %242 = vst [vmem:[%s239] sm:%s241] %v238
    %s243 = scalar_lea.vmem %s3, 304
    %v244 = vld [vmem:[%s243] sm:$0xff]
    %s245 = scalar_lea.vmem [#allocation4], 304
    %s247 = ssub.s32 256, 1
    %248 = vst [vmem:[%s245] sm:%s247] %v244
    %s249 = scalar_lea.vmem %s3, 312
    %v250 = vld [vmem:[%s249] sm:$0xff]
    %s251 = scalar_lea.vmem [#allocation4], 312
    %s253 = ssub.s32 256, 1
    %254 = vst [vmem:[%s251] sm:%s253] %v250
    %s255 = scalar_lea.vmem %s3, 320
    %v256 = vld [vmem:[%s255] sm:$0xff]
    %s257 = scalar_lea.vmem [#allocation4], 320
    %s259 = ssub.s32 256, 1
    %260 = vst [vmem:[%s257] sm:%s259] %v256
    %s261 = scalar_lea.vmem %s3, 328
    %v262 = vld [vmem:[%s261] sm:$0xff]
    %s263 = scalar_lea.vmem [#allocation4], 328
    %s265 = ssub.s32 256, 1
    %266 = vst [vmem:[%s263] sm:%s265] %v262
    %s267 = scalar_lea.vmem %s3, 336
    %v268 = vld [vmem:[%s267] sm:$0xff]
    %s269 = scalar_lea.vmem [#allocation4], 336
    %s271 = ssub.s32 256, 1
    %272 = vst [vmem:[%s269] sm:%s271] %v268
    %s273 = scalar_lea.vmem %s3, 344
    %v274 = vld [vmem:[%s273] sm:$0xff]
    %s275 = scalar_lea.vmem [#allocation4], 344
    %s277 = ssub.s32 256, 1
    %278 = vst [vmem:[%s275] sm:%s277] %v274
    %s279 = scalar_lea.vmem %s3, 352
    %v280 = vld [vmem:[%s279] sm:$0xff]
    %s281 = scalar_lea.vmem [#allocation4], 352
    %s283 = ssub.s32 256, 1
    %284 = vst [vmem:[%s281] sm:%s283] %v280
    %s285 = scalar_lea.vmem %s3, 360
    %v286 = vld [vmem:[%s285] sm:$0xff]
    %s287 = scalar_lea.vmem [#allocation4], 360
    %s289 = ssub.s32 256, 1
    %290 = vst [vmem:[%s287] sm:%s289] %v286
    %s291 = scalar_lea.vmem %s3, 368
    %v292 = vld [vmem:[%s291] sm:$0xff]
    %s293 = scalar_lea.vmem [#allocation4], 368
    %s295 = ssub.s32 256, 1
    %296 = vst [vmem:[%s293] sm:%s295] %v292
    %s297 = scalar_lea.vmem %s3, 376
    %v298 = vld [vmem:[%s297] sm:$0xff]
    %s299 = scalar_lea.vmem [#allocation4], 376
    %s301 = ssub.s32 256, 1
    %302 = vst [vmem:[%s299] sm:%s301] %v298
    %s303 = scalar_lea.vmem %s3, 384
    %v304 = vld [vmem:[%s303] sm:$0xff]
    %s305 = scalar_lea.vmem [#allocation4], 384
    %s307 = ssub.s32 256, 1
    %308 = vst [vmem:[%s305] sm:%s307] %v304
    %s309 = scalar_lea.vmem %s3, 392
    %v310 = vld [vmem:[%s309] sm:$0xff]
    %s311 = scalar_lea.vmem [#allocation4], 392
    %s313 = ssub.s32 256, 1
    %314 = vst [vmem:[%s311] sm:%s313] %v310
    %s315 = scalar_lea.vmem %s3, 400
    %v316 = vld [vmem:[%s315] sm:$0xff]
    %s317 = scalar_lea.vmem [#allocation4], 400
    %s319 = ssub.s32 256, 1
    %320 = vst [vmem:[%s317] sm:%s319] %v316
    %s321 = scalar_lea.vmem %s3, 408
    %v322 = vld [vmem:[%s321] sm:$0xff]
    %s323 = scalar_lea.vmem [#allocation4], 408
    %s325 = ssub.s32 256, 1
    %326 = vst [vmem:[%s323] sm:%s325] %v322
    %s327 = scalar_lea.vmem %s3, 416
    %v328 = vld [vmem:[%s327] sm:$0xff]
    %s329 = scalar_lea.vmem [#allocation4], 416
    %s331 = ssub.s32 256, 1
    %332 = vst [vmem:[%s329] sm:%s331] %v328
    %s333 = scalar_lea.vmem %s3, 424
    %v334 = vld [vmem:[%s333] sm:$0xff]
    %s335 = scalar_lea.vmem [#allocation4], 424
    %s337 = ssub.s32 256, 1
    %338 = vst [vmem:[%s335] sm:%s337] %v334
    %s339 = scalar_lea.vmem %s3, 432
    %v340 = vld [vmem:[%s339] sm:$0xff]
    %s341 = scalar_lea.vmem [#allocation4], 432
    %s343 = ssub.s32 256, 1
    %344 = vst [vmem:[%s341] sm:%s343] %v340
    %s345 = scalar_lea.vmem %s3, 440
    %v346 = vld [vmem:[%s345] sm:$0xff]
    %s347 = scalar_lea.vmem [#allocation4], 440
    %s349 = ssub.s32 256, 1
    %350 = vst [vmem:[%s347] sm:%s349] %v346
    %s351 = scalar_lea.vmem %s3, 448
    %v352 = vld [vmem:[%s351] sm:$0xff]
    %s353 = scalar_lea.vmem [#allocation4], 448
    %s355 = ssub.s32 256, 1
    %356 = vst [vmem:[%s353] sm:%s355] %v352
    %s357 = scalar_lea.vmem %s3, 456
    %v358 = vld [vmem:[%s357] sm:$0xff]
    %s359 = scalar_lea.vmem [#allocation4], 456
    %s361 = ssub.s32 256, 1
    %362 = vst [vmem:[%s359] sm:%s361] %v358
    %s363 = scalar_lea.vmem %s3, 464
    %v364 = vld [vmem:[%s363] sm:$0xff]
    %s365 = scalar_lea.vmem [#allocation4], 464
    %s367 = ssub.s32 256, 1
    %368 = vst [vmem:[%s365] sm:%s367] %v364
    %s369 = scalar_lea.vmem %s3, 472
    %v370 = vld [vmem:[%s369] sm:$0xff]
    %s371 = scalar_lea.vmem [#allocation4], 472
    %s373 = ssub.s32 256, 1
    %374 = vst [vmem:[%s371] sm:%s373] %v370
    %s375 = scalar_lea.vmem %s3, 480
    %v376 = vld [vmem:[%s375] sm:$0xff]
    %s377 = scalar_lea.vmem [#allocation4], 480
    %s379 = ssub.s32 256, 1
    %380 = vst [vmem:[%s377] sm:%s379] %v376
    %s381 = scalar_lea.vmem %s3, 488
    %v382 = vld [vmem:[%s381] sm:$0xff]
    %s383 = scalar_lea.vmem [#allocation4], 488
    %s385 = ssub.s32 256, 1
    %386 = vst [vmem:[%s383] sm:%s385] %v382
    %s387 = scalar_lea.vmem %s3, 496
    %v388 = vld [vmem:[%s387] sm:$0xff]
    %s389 = scalar_lea.vmem [#allocation4], 496
    %s391 = ssub.s32 256, 1
    %392 = vst [vmem:[%s389] sm:%s391] %v388
    %s393 = scalar_lea.vmem %s3, 504
    %v394 = vld [vmem:[%s393] sm:$0xff]
    %s395 = scalar_lea.vmem [#allocation4], 504
    %s397 = ssub.s32 256, 1
    %398 = vst [vmem:[%s395] sm:%s397] %v394
    %v399 = vld [vmem:[%s2] sm:$0xff]
    %v400 = vld [vmem:[#allocation4] sm:$0xff]
    %v401 = vld [vmem:[#allocation4 + $0x8] sm:$0xff]
    %v402 = vld [vmem:[#allocation4 + $0x10] sm:$0xff]
    %v403 = vld [vmem:[#allocation4 + $0x18] sm:$0xff]
    %v404 = vld [vmem:[#allocation4 + $0x20] sm:$0xff]
    %v405 = vld [vmem:[#allocation4 + $0x28] sm:$0xff]
    %v406 = vld [vmem:[#allocation4 + $0x30] sm:$0xff]
    %v407 = vld [vmem:[#allocation4 + $0x38] sm:$0xff]
    %v408 = vld [vmem:[#allocation4 + $0x40] sm:$0xff]
    %v409 = vld [vmem:[#allocation4 + $0x48] sm:$0xff]
    %v410 = vld [vmem:[#allocation4 + $0x50] sm:$0xff]
    %v411 = vld [vmem:[#allocation4 + $0x58] sm:$0xff]
    %v412 = vld [vmem:[#allocation4 + $0x60] sm:$0xff]
    %v413 = vld [vmem:[#allocation4 + $0x68] sm:$0xff]
    %v414 = vld [vmem:[#allocation4 + $0x70] sm:$0xff]
    %v415 = vld [vmem:[#allocation4 + $0x78] sm:$0xff]
    %v416 = vld [vmem:[#allocation4 + $0x80] sm:$0xff]
    %v417 = vld [vmem:[#allocation4 + $0x88] sm:$0xff]
    %v418 = vld [vmem:[#allocation4 + $0x90] sm:$0xff]
    %v419 = vld [vmem:[#allocation4 + $0x98] sm:$0xff]
    %v420 = vld [vmem:[#allocation4 + $0xa0] sm:$0xff]
    %v421 = vld [vmem:[#allocation4 + $0xa8] sm:$0xff]
    %v422 = vld [vmem:[#allocation4 + $0xb0] sm:$0xff]
    %v423 = vld [vmem:[#allocation4 + $0xb8] sm:$0xff]
    %v424 = vld [vmem:[#allocation4 + $0xc0] sm:$0xff]
    %v425 = vld [vmem:[#allocation4 + $0xc8] sm:$0xff]
    %v426 = vld [vmem:[#allocation4 + $0xd0] sm:$0xff]
    %v427 = vld [vmem:[#allocation4 + $0xd8] sm:$0xff]
    %v428 = vld [vmem:[#allocation4 + $0xe0] sm:$0xff]
    %v429 = vld [vmem:[#allocation4 + $0xe8] sm:$0xff]
    %v430 = vld [vmem:[#allocation4 + $0xf0] sm:$0xff]
    %v431 = vld [vmem:[#allocation4 + $0xf8] sm:$0xff]
    %v432 = vld [vmem:[#allocation4 + $0x100] sm:$0xff]
    %v433 = vld [vmem:[#allocation4 + $0x108] sm:$0xff]
    %v434 = vld [vmem:[#allocation4 + $0x110] sm:$0xff]
    %v435 = vld [vmem:[#allocation4 + $0x118] sm:$0xff]
    %v436 = vld [vmem:[#allocation4 + $0x120] sm:$0xff]
    %v437 = vld [vmem:[#allocation4 + $0x128] sm:$0xff]
    %v438 = vld [vmem:[#allocation4 + $0x130] sm:$0xff]
    %v439 = vld [vmem:[#allocation4 + $0x138] sm:$0xff]
    %v440 = vld [vmem:[#allocation4 + $0x140] sm:$0xff]
    %v441 = vld [vmem:[#allocation4 + $0x148] sm:$0xff]
    %v442 = vld [vmem:[#allocation4 + $0x150] sm:$0xff]
    %v443 = vld [vmem:[#allocation4 + $0x158] sm:$0xff]
    %v444 = vld [vmem:[#allocation4 + $0x160] sm:$0xff]
    %v445 = vld [vmem:[#allocation4 + $0x168] sm:$0xff]
    %v446 = vld [vmem:[#allocation4 + $0x170] sm:$0xff]
    %v447 = vld [vmem:[#allocation4 + $0x178] sm:$0xff]
    %v448 = vld [vmem:[#allocation4 + $0x180] sm:$0xff]
    %v449 = vld [vmem:[#allocation4 + $0x188] sm:$0xff]
    %v450 = vld [vmem:[#allocation4 + $0x190] sm:$0xff]
    %v451 = vld [vmem:[#allocation4 + $0x198] sm:$0xff]
    %v452 = vld [vmem:[#allocation4 + $0x1a0] sm:$0xff]
    %v453 = vld [vmem:[#allocation4 + $0x1a8] sm:$0xff]
    %v454 = vld [vmem:[#allocation4 + $0x1b0] sm:$0xff]
    %v455 = vld [vmem:[#allocation4 + $0x1b8] sm:$0xff]
    %v456 = vld [vmem:[#allocation4 + $0x1c0] sm:$0xff]
    %v457 = vld [vmem:[#allocation4 + $0x1c8] sm:$0xff]
    %v458 = vld [vmem:[#allocation4 + $0x1d0] sm:$0xff]
    %v459 = vld [vmem:[#allocation4 + $0x1d8] sm:$0xff]
    %v460 = vld [vmem:[#allocation4 + $0x1e0] sm:$0xff]
    %v461 = vld [vmem:[#allocation4 + $0x1e8] sm:$0xff]
    %v462 = vld [vmem:[#allocation4 + $0x1f0] sm:$0xff]
    %v463 = vld [vmem:[#allocation4 + $0x1f8] sm:$0xff]
    %v464 = vmax.f32 %v400, %v402
    %v465 = vmax.f32 %v401, %v403
    %v466 = vmax.f32 %v404, %v406
    %v467 = vmax.f32 %v405, %v407
    %v468 = vmax.f32 %v408, %v410
    %v469 = vmax.f32 %v409, %v411
    %v470 = vmax.f32 %v412, %v414
    %v471 = vmax.f32 %v413, %v415
    %v472 = vmax.f32 %v416, %v418
    %v473 = vmax.f32 %v417, %v419
    %v474 = vmax.f32 %v420, %v422
    %v475 = vmax.f32 %v421, %v423
    %v476 = vmax.f32 %v424, %v426
    %v477 = vmax.f32 %v425, %v427
    %v478 = vmax.f32 %v428, %v430
    %v479 = vmax.f32 %v429, %v431
    %v480 = vmax.f32 %v432, %v434
    %v481 = vmax.f32 %v433, %v435
    %v482 = vmax.f32 %v436, %v438
    %v483 = vmax.f32 %v437, %v439
    %v484 = vmax.f32 %v440, %v442
    %v485 = vmax.f32 %v441, %v443
    %v486 = vmax.f32 %v444, %v446
    %v487 = vmax.f32 %v445, %v447
    %v488 = vmax.f32 %v448, %v450
    %v489 = vmax.f32 %v449, %v451
    %v490 = vmax.f32 %v452, %v454
    %v491 = vmax.f32 %v453, %v455
    %v492 = vmax.f32 %v456, %v458
    %v493 = vmax.f32 %v457, %v459
    %v494 = vmax.f32 %v460, %v462
    %v495 = vmax.f32 %v461, %v463
    %v528 = vcombine.high %v464, %v464
    %v530 = vunpack.c.l.s4 1983009808
    %v531 = vunpack.c.0.s8 %v530
    %v532 = vlaneseq
    %v533 = vshrl.u32 %v532, 7
    %v534 = vsub.s32 %v531, %v533
    %v535 = vrot.slane %v464, %v534
    %v537 = vunpack.c.l.s4 1983009808
    %v538 = vunpack.c.0.s8 %v537
    %v539 = vlaneseq
    %v540 = vshrl.u32 %v539, 7
    %v541 = vsub.s32 %v538, %v540
    %v542 = vrot.slane %v528, %v541
    %v543 = vcombine.high %v535, %v535
    %v544 = vcombine.high %v542, %v542
    %v545 = vcombine.high %v465, %v465
    %v547 = vunpack.c.l.s4 1983009808
    %v548 = vunpack.c.0.s8 %v547
    %v549 = vlaneseq
    %v550 = vshrl.u32 %v549, 7
    %v551 = vsub.s32 %v548, %v550
    %v552 = vrot.slane %v465, %v551
    %v554 = vunpack.c.l.s4 1983009808
    %v555 = vunpack.c.0.s8 %v554
    %v556 = vlaneseq
    %v557 = vshrl.u32 %v556, 7
    %v558 = vsub.s32 %v555, %v557
    %v559 = vrot.slane %v545, %v558
    %v560 = vcombine.high %v552, %v552
    %v561 = vcombine.high %v559, %v559
    %v562 = vcombine.high %v466, %v466
    %v564 = vunpack.c.l.s4 1983009808
    %v565 = vunpack.c.0.s8 %v564
    %v566 = vlaneseq
    %v567 = vshrl.u32 %v566, 7
    %v568 = vsub.s32 %v565, %v567
    %v569 = vrot.slane %v466, %v568
    %v571 = vunpack.c.l.s4 1983009808
    %v572 = vunpack.c.0.s8 %v571
    %v573 = vlaneseq
    %v574 = vshrl.u32 %v573, 7
    %v575 = vsub.s32 %v572, %v574
    %v576 = vrot.slane %v562, %v575
    %v577 = vcombine.high %v569, %v569
    %v578 = vcombine.high %v576, %v576
    %v579 = vcombine.high %v467, %v467
    %v581 = vunpack.c.l.s4 1983009808
    %v582 = vunpack.c.0.s8 %v581
    %v583 = vlaneseq
    %v584 = vshrl.u32 %v583, 7
    %v585 = vsub.s32 %v582, %v584
    %v586 = vrot.slane %v467, %v585
    %v588 = vunpack.c.l.s4 1983009808
    %v589 = vunpack.c.0.s8 %v588
    %v590 = vlaneseq
    %v591 = vshrl.u32 %v590, 7
    %v592 = vsub.s32 %v589, %v591
    %v593 = vrot.slane %v579, %v592
    %v594 = vcombine.high %v586, %v586
    %v595 = vcombine.high %v593, %v593
    %v596 = vcombine.high %v468, %v468
    %v598 = vunpack.c.l.s4 1983009808
    %v599 = vunpack.c.0.s8 %v598
    %v600 = vlaneseq
    %v601 = vshrl.u32 %v600, 7
    %v602 = vsub.s32 %v599, %v601
    %v603 = vrot.slane %v468, %v602
    %v605 = vunpack.c.l.s4 1983009808
    %v606 = vunpack.c.0.s8 %v605
    %v607 = vlaneseq
    %v608 = vshrl.u32 %v607, 7
    %v609 = vsub.s32 %v606, %v608
    %v610 = vrot.slane %v596, %v609
    %v611 = vcombine.high %v603, %v603
    %v612 = vcombine.high %v610, %v610
    %v613 = vcombine.high %v469, %v469
    %v615 = vunpack.c.l.s4 1983009808
    %v616 = vunpack.c.0.s8 %v615
    %v617 = vlaneseq
    %v618 = vshrl.u32 %v617, 7
    %v619 = vsub.s32 %v616, %v618
    %v620 = vrot.slane %v469, %v619
    %v622 = vunpack.c.l.s4 1983009808
    %v623 = vunpack.c.0.s8 %v622
    %v624 = vlaneseq
    %v625 = vshrl.u32 %v624, 7
    %v626 = vsub.s32 %v623, %v625
    %v627 = vrot.slane %v613, %v626
    %v628 = vcombine.high %v620, %v620
    %v629 = vcombine.high %v627, %v627
    %v630 = vcombine.high %v470, %v470
    %v632 = vunpack.c.l.s4 1983009808
    %v633 = vunpack.c.0.s8 %v632
    %v634 = vlaneseq
    %v635 = vshrl.u32 %v634, 7
    %v636 = vsub.s32 %v633, %v635
    %v637 = vrot.slane %v470, %v636
    %v639 = vunpack.c.l.s4 1983009808
    %v640 = vunpack.c.0.s8 %v639
    %v641 = vlaneseq
    %v642 = vshrl.u32 %v641, 7
    %v643 = vsub.s32 %v640, %v642
    %v644 = vrot.slane %v630, %v643
    %v645 = vcombine.high %v637, %v637
    %v646 = vcombine.high %v644, %v644
    %v647 = vcombine.high %v471, %v471
    %v649 = vunpack.c.l.s4 1983009808
    %v650 = vunpack.c.0.s8 %v649
    %v651 = vlaneseq
    %v652 = vshrl.u32 %v651, 7
    %v653 = vsub.s32 %v650, %v652
    %v654 = vrot.slane %v471, %v653
    %v656 = vunpack.c.l.s4 1983009808
    %v657 = vunpack.c.0.s8 %v656
    %v658 = vlaneseq
    %v659 = vshrl.u32 %v658, 7
    %v660 = vsub.s32 %v657, %v659
    %v661 = vrot.slane %v647, %v660
    %v662 = vcombine.high %v654, %v654
    %v663 = vcombine.high %v661, %v661
    %v664 = vcombine.high %v472, %v472
    %v666 = vunpack.c.l.s4 1983009808
    %v667 = vunpack.c.0.s8 %v666
    %v668 = vlaneseq
    %v669 = vshrl.u32 %v668, 7
    %v670 = vsub.s32 %v667, %v669
    %v671 = vrot.slane %v472, %v670
    %v673 = vunpack.c.l.s4 1983009808
    %v674 = vunpack.c.0.s8 %v673
    %v675 = vlaneseq
    %v676 = vshrl.u32 %v675, 7
    %v677 = vsub.s32 %v674, %v676
    %v678 = vrot.slane %v664, %v677
    %v679 = vcombine.high %v671, %v671
    %v680 = vcombine.high %v678, %v678
    %v681 = vcombine.high %v473, %v473
    %v683 = vunpack.c.l.s4 1983009808
    %v684 = vunpack.c.0.s8 %v683
    %v685 = vlaneseq
    %v686 = vshrl.u32 %v685, 7
    %v687 = vsub.s32 %v684, %v686
    %v688 = vrot.slane %v473, %v687
    %v690 = vunpack.c.l.s4 1983009808
    %v691 = vunpack.c.0.s8 %v690
    %v692 = vlaneseq
    %v693 = vshrl.u32 %v692, 7
    %v694 = vsub.s32 %v691, %v693
    %v695 = vrot.slane %v681, %v694
    %v696 = vcombine.high %v688, %v688
    %v697 = vcombine.high %v695, %v695
    %v698 = vcombine.high %v474, %v474
    %v700 = vunpack.c.l.s4 1983009808
    %v701 = vunpack.c.0.s8 %v700
    %v702 = vlaneseq
    %v703 = vshrl.u32 %v702, 7
    %v704 = vsub.s32 %v701, %v703
    %v705 = vrot.slane %v474, %v704
    %v707 = vunpack.c.l.s4 1983009808
    %v708 = vunpack.c.0.s8 %v707
    %v709 = vlaneseq
    %v710 = vshrl.u32 %v709, 7
    %v711 = vsub.s32 %v708, %v710
    %v712 = vrot.slane %v698, %v711
    %v713 = vcombine.high %v705, %v705
    %v714 = vcombine.high %v712, %v712
    %v715 = vcombine.high %v475, %v475
    %v717 = vunpack.c.l.s4 1983009808
    %v718 = vunpack.c.0.s8 %v717
    %v719 = vlaneseq
    %v720 = vshrl.u32 %v719, 7
    %v721 = vsub.s32 %v718, %v720
    %v722 = vrot.slane %v475, %v721
    %v724 = vunpack.c.l.s4 1983009808
    %v725 = vunpack.c.0.s8 %v724
    %v726 = vlaneseq
    %v727 = vshrl.u32 %v726, 7
    %v728 = vsub.s32 %v725, %v727
    %v729 = vrot.slane %v715, %v728
    %v730 = vcombine.high %v722, %v722
    %v731 = vcombine.high %v729, %v729
    %v732 = vcombine.high %v476, %v476
    %v734 = vunpack.c.l.s4 1983009808
    %v735 = vunpack.c.0.s8 %v734
    %v736 = vlaneseq
    %v737 = vshrl.u32 %v736, 7
    %v738 = vsub.s32 %v735, %v737
    %v739 = vrot.slane %v476, %v738
    %v741 = vunpack.c.l.s4 1983009808
    %v742 = vunpack.c.0.s8 %v741
    %v743 = vlaneseq
    %v744 = vshrl.u32 %v743, 7
    %v745 = vsub.s32 %v742, %v744
    %v746 = vrot.slane %v732, %v745
    %v747 = vcombine.high %v739, %v739
    %v748 = vcombine.high %v746, %v746
    %v749 = vcombine.high %v477, %v477
    %v751 = vunpack.c.l.s4 1983009808
    %v752 = vunpack.c.0.s8 %v751
    %v753 = vlaneseq
    %v754 = vshrl.u32 %v753, 7
    %v755 = vsub.s32 %v752, %v754
    %v756 = vrot.slane %v477, %v755
    %v758 = vunpack.c.l.s4 1983009808
    %v759 = vunpack.c.0.s8 %v758
    %v760 = vlaneseq
    %v761 = vshrl.u32 %v760, 7
    %v762 = vsub.s32 %v759, %v761
    %v763 = vrot.slane %v749, %v762
    %v764 = vcombine.high %v756, %v756
    %v765 = vcombine.high %v763, %v763
    %v766 = vcombine.high %v478, %v478
    %v768 = vunpack.c.l.s4 1983009808
    %v769 = vunpack.c.0.s8 %v768
    %v770 = vlaneseq
    %v771 = vshrl.u32 %v770, 7
    %v772 = vsub.s32 %v769, %v771
    %v773 = vrot.slane %v478, %v772
    %v775 = vunpack.c.l.s4 1983009808
    %v776 = vunpack.c.0.s8 %v775
    %v777 = vlaneseq
    %v778 = vshrl.u32 %v777, 7
    %v779 = vsub.s32 %v776, %v778
    %v780 = vrot.slane %v766, %v779
    %v781 = vcombine.high %v773, %v773
    %v782 = vcombine.high %v780, %v780
    %v783 = vcombine.high %v479, %v479
    %v785 = vunpack.c.l.s4 1983009808
    %v786 = vunpack.c.0.s8 %v785
    %v787 = vlaneseq
    %v788 = vshrl.u32 %v787, 7
    %v789 = vsub.s32 %v786, %v788
    %v790 = vrot.slane %v479, %v789
    %v792 = vunpack.c.l.s4 1983009808
    %v793 = vunpack.c.0.s8 %v792
    %v794 = vlaneseq
    %v795 = vshrl.u32 %v794, 7
    %v796 = vsub.s32 %v793, %v795
    %v797 = vrot.slane %v783, %v796
    %v798 = vcombine.high %v790, %v790
    %v799 = vcombine.high %v797, %v797
    %v800 = vcombine.high %v480, %v480
    %v802 = vunpack.c.l.s4 1983009808
    %v803 = vunpack.c.0.s8 %v802
    %v804 = vlaneseq
    %v805 = vshrl.u32 %v804, 7
    %v806 = vsub.s32 %v803, %v805
    %v807 = vrot.slane %v480, %v806
    %v809 = vunpack.c.l.s4 1983009808
    %v810 = vunpack.c.0.s8 %v809
    %v811 = vlaneseq
    %v812 = vshrl.u32 %v811, 7
    %v813 = vsub.s32 %v810, %v812
    %v814 = vrot.slane %v800, %v813
    %v815 = vcombine.high %v807, %v807
    %v816 = vcombine.high %v814, %v814
    %v817 = vcombine.high %v481, %v481
    %v819 = vunpack.c.l.s4 1983009808
    %v820 = vunpack.c.0.s8 %v819
    %v821 = vlaneseq
    %v822 = vshrl.u32 %v821, 7
    %v823 = vsub.s32 %v820, %v822
    %v824 = vrot.slane %v481, %v823
    %v826 = vunpack.c.l.s4 1983009808
    %v827 = vunpack.c.0.s8 %v826
    %v828 = vlaneseq
    %v829 = vshrl.u32 %v828, 7
    %v830 = vsub.s32 %v827, %v829
    %v831 = vrot.slane %v817, %v830
    %v832 = vcombine.high %v824, %v824
    %v833 = vcombine.high %v831, %v831
    %v834 = vcombine.high %v482, %v482
    %v836 = vunpack.c.l.s4 1983009808
    %v837 = vunpack.c.0.s8 %v836
    %v838 = vlaneseq
    %v839 = vshrl.u32 %v838, 7
    %v840 = vsub.s32 %v837, %v839
    %v841 = vrot.slane %v482, %v840
    %v843 = vunpack.c.l.s4 1983009808
    %v844 = vunpack.c.0.s8 %v843
    %v845 = vlaneseq
    %v846 = vshrl.u32 %v845, 7
    %v847 = vsub.s32 %v844, %v846
    %v848 = vrot.slane %v834, %v847
    %v849 = vcombine.high %v841, %v841
    %v850 = vcombine.high %v848, %v848
    %v851 = vcombine.high %v483, %v483
    %v853 = vunpack.c.l.s4 1983009808
    %v854 = vunpack.c.0.s8 %v853
    %v855 = vlaneseq
    %v856 = vshrl.u32 %v855, 7
    %v857 = vsub.s32 %v854, %v856
    %v858 = vrot.slane %v483, %v857
    %v860 = vunpack.c.l.s4 1983009808
    %v861 = vunpack.c.0.s8 %v860
    %v862 = vlaneseq
    %v863 = vshrl.u32 %v862, 7
    %v864 = vsub.s32 %v861, %v863
    %v865 = vrot.slane %v851, %v864
    %v866 = vcombine.high %v858, %v858
    %v867 = vcombine.high %v865, %v865
    %v868 = vcombine.high %v484, %v484
    %v870 = vunpack.c.l.s4 1983009808
    %v871 = vunpack.c.0.s8 %v870
    %v872 = vlaneseq
    %v873 = vshrl.u32 %v872, 7
    %v874 = vsub.s32 %v871, %v873
    %v875 = vrot.slane %v484, %v874
    %v877 = vunpack.c.l.s4 1983009808
    %v878 = vunpack.c.0.s8 %v877
    %v879 = vlaneseq
    %v880 = vshrl.u32 %v879, 7
    %v881 = vsub.s32 %v878, %v880
    %v882 = vrot.slane %v868, %v881
    %v883 = vcombine.high %v875, %v875
    %v884 = vcombine.high %v882, %v882
    %v885 = vcombine.high %v485, %v485
    %v887 = vunpack.c.l.s4 1983009808
    %v888 = vunpack.c.0.s8 %v887
    %v889 = vlaneseq
    %v890 = vshrl.u32 %v889, 7
    %v891 = vsub.s32 %v888, %v890
    %v892 = vrot.slane %v485, %v891
    %v894 = vunpack.c.l.s4 1983009808
    %v895 = vunpack.c.0.s8 %v894
    %v896 = vlaneseq
    %v897 = vshrl.u32 %v896, 7
    %v898 = vsub.s32 %v895, %v897
    %v899 = vrot.slane %v885, %v898
    %v900 = vcombine.high %v892, %v892
    %v901 = vcombine.high %v899, %v899
    %v902 = vcombine.high %v486, %v486
    %v904 = vunpack.c.l.s4 1983009808
    %v905 = vunpack.c.0.s8 %v904
    %v906 = vlaneseq
    %v907 = vshrl.u32 %v906, 7
    %v908 = vsub.s32 %v905, %v907
    %v909 = vrot.slane %v486, %v908
    %v911 = vunpack.c.l.s4 1983009808
    %v912 = vunpack.c.0.s8 %v911
    %v913 = vlaneseq
    %v914 = vshrl.u32 %v913, 7
    %v915 = vsub.s32 %v912, %v914
    %v916 = vrot.slane %v902, %v915
    %v917 = vcombine.high %v909, %v909
    %v918 = vcombine.high %v916, %v916
    %v919 = vcombine.high %v487, %v487
    %v921 = vunpack.c.l.s4 1983009808
    %v922 = vunpack.c.0.s8 %v921
    %v923 = vlaneseq
    %v924 = vshrl.u32 %v923, 7
    %v925 = vsub.s32 %v922, %v924
    %v926 = vrot.slane %v487, %v925
    %v928 = vunpack.c.l.s4 1983009808
    %v929 = vunpack.c.0.s8 %v928
    %v930 = vlaneseq
    %v931 = vshrl.u32 %v930, 7
    %v932 = vsub.s32 %v929, %v931
    %v933 = vrot.slane %v919, %v932
    %v934 = vcombine.high %v926, %v926
    %v935 = vcombine.high %v933, %v933
    %v936 = vcombine.high %v488, %v488
    %v938 = vunpack.c.l.s4 1983009808
    %v939 = vunpack.c.0.s8 %v938
    %v940 = vlaneseq
    %v941 = vshrl.u32 %v940, 7
    %v942 = vsub.s32 %v939, %v941
    %v943 = vrot.slane %v488, %v942
    %v945 = vunpack.c.l.s4 1983009808
    %v946 = vunpack.c.0.s8 %v945
    %v947 = vlaneseq
    %v948 = vshrl.u32 %v947, 7
    %v949 = vsub.s32 %v946, %v948
    %v950 = vrot.slane %v936, %v949
    %v951 = vcombine.high %v943, %v943
    %v952 = vcombine.high %v950, %v950
    %v953 = vcombine.high %v489, %v489
    %v955 = vunpack.c.l.s4 1983009808
    %v956 = vunpack.c.0.s8 %v955
    %v957 = vlaneseq
    %v958 = vshrl.u32 %v957, 7
    %v959 = vsub.s32 %v956, %v958
    %v960 = vrot.slane %v489, %v959
    %v962 = vunpack.c.l.s4 1983009808
    %v963 = vunpack.c.0.s8 %v962
    %v964 = vlaneseq
    %v965 = vshrl.u32 %v964, 7
    %v966 = vsub.s32 %v963, %v965
    %v967 = vrot.slane %v953, %v966
    %v968 = vcombine.high %v960, %v960
    %v969 = vcombine.high %v967, %v967
    %v970 = vcombine.high %v490, %v490
    %v972 = vunpack.c.l.s4 1983009808
    %v973 = vunpack.c.0.s8 %v972
    %v974 = vlaneseq
    %v975 = vshrl.u32 %v974, 7
    %v976 = vsub.s32 %v973, %v975
    %v977 = vrot.slane %v490, %v976
    %v979 = vunpack.c.l.s4 1983009808
    %v980 = vunpack.c.0.s8 %v979
    %v981 = vlaneseq
    %v982 = vshrl.u32 %v981, 7
    %v983 = vsub.s32 %v980, %v982
    %v984 = vrot.slane %v970, %v983
    %v985 = vcombine.high %v977, %v977
    %v986 = vcombine.high %v984, %v984
    %v987 = vcombine.high %v491, %v491
    %v989 = vunpack.c.l.s4 1983009808
    %v990 = vunpack.c.0.s8 %v989
    %v991 = vlaneseq
    %v992 = vshrl.u32 %v991, 7
    %v993 = vsub.s32 %v990, %v992
    %v994 = vrot.slane %v491, %v993
    %v996 = vunpack.c.l.s4 1983009808
    %v997 = vunpack.c.0.s8 %v996
    %v998 = vlaneseq
    %v999 = vshrl.u32 %v998, 7
    %v1000 = vsub.s32 %v997, %v999
    %v1001 = vrot.slane %v987, %v1000
    %v1002 = vcombine.high %v994, %v994
    %v1003 = vcombine.high %v1001, %v1001
    %v1004 = vcombine.high %v492, %v492
    %v1006 = vunpack.c.l.s4 1983009808
    %v1007 = vunpack.c.0.s8 %v1006
    %v1008 = vlaneseq
    %v1009 = vshrl.u32 %v1008, 7
    %v1010 = vsub.s32 %v1007, %v1009
    %v1011 = vrot.slane %v492, %v1010
    %v1013 = vunpack.c.l.s4 1983009808
    %v1014 = vunpack.c.0.s8 %v1013
    %v1015 = vlaneseq
    %v1016 = vshrl.u32 %v1015, 7
    %v1017 = vsub.s32 %v1014, %v1016
    %v1018 = vrot.slane %v1004, %v1017
    %v1019 = vcombine.high %v1011, %v1011
    %v1020 = vcombine.high %v1018, %v1018
    %v1021 = vcombine.high %v493, %v493
    %v1023 = vunpack.c.l.s4 1983009808
    %v1024 = vunpack.c.0.s8 %v1023
    %v1025 = vlaneseq
    %v1026 = vshrl.u32 %v1025, 7
    %v1027 = vsub.s32 %v1024, %v1026
    %v1028 = vrot.slane %v493, %v1027
    %v1030 = vunpack.c.l.s4 1983009808
    %v1031 = vunpack.c.0.s8 %v1030
    %v1032 = vlaneseq
    %v1033 = vshrl.u32 %v1032, 7
    %v1034 = vsub.s32 %v1031, %v1033
    %v1035 = vrot.slane %v1021, %v1034
    %v1036 = vcombine.high %v1028, %v1028
    %v1037 = vcombine.high %v1035, %v1035
    %v1038 = vcombine.high %v494, %v494
    %v1040 = vunpack.c.l.s4 1983009808
    %v1041 = vunpack.c.0.s8 %v1040
    %v1042 = vlaneseq
    %v1043 = vshrl.u32 %v1042, 7
    %v1044 = vsub.s32 %v1041, %v1043
    %v1045 = vrot.slane %v494, %v1044
    %v1047 = vunpack.c.l.s4 1983009808
    %v1048 = vunpack.c.0.s8 %v1047
    %v1049 = vlaneseq
    %v1050 = vshrl.u32 %v1049, 7
    %v1051 = vsub.s32 %v1048, %v1050
    %v1052 = vrot.slane %v1038, %v1051
    %v1053 = vcombine.high %v1045, %v1045
    %v1054 = vcombine.high %v1052, %v1052
    %v1055 = vcombine.high %v495, %v495
    %v1057 = vunpack.c.l.s4 1983009808
    %v1058 = vunpack.c.0.s8 %v1057
    %v1059 = vlaneseq
    %v1060 = vshrl.u32 %v1059, 7
    %v1061 = vsub.s32 %v1058, %v1060
    %v1062 = vrot.slane %v495, %v1061
    %v1064 = vunpack.c.l.s4 1983009808
    %v1065 = vunpack.c.0.s8 %v1064
    %v1066 = vlaneseq
    %v1067 = vshrl.u32 %v1066, 7
    %v1068 = vsub.s32 %v1065, %v1067
    %v1069 = vrot.slane %v1055, %v1068
    %v1070 = vcombine.high %v1062, %v1062
    %v1071 = vcombine.high %v1069, %v1069
    %v1200 = vrot.slane %v535, 7
    %v1201 = vrot.slane %v1200, 2
    %v1202 = vrot.slane %v543, 7
    %v1203 = vrot.slane %v1202, 2
    %v1204 = vrot.slane %v542, 7
    %v1205 = vrot.slane %v1204, 2
    %v1206 = vrot.slane %v544, 7
    %v1207 = vrot.slane %v1206, 2
    %v1208 = vrot.slane %v552, 7
    %v1209 = vrot.slane %v1208, 2
    %v1210 = vrot.slane %v560, 7
    %v1211 = vrot.slane %v1210, 2
    %v1212 = vrot.slane %v559, 7
    %v1213 = vrot.slane %v1212, 2
    %v1214 = vrot.slane %v561, 7
    %v1215 = vrot.slane %v1214, 2
    %v1216 = vrot.slane %v569, 7
    %v1217 = vrot.slane %v1216, 2
    %v1218 = vrot.slane %v577, 7
    %v1219 = vrot.slane %v1218, 2
    %v1220 = vrot.slane %v576, 7
    %v1221 = vrot.slane %v1220, 2
    %v1222 = vrot.slane %v578, 7
    %v1223 = vrot.slane %v1222, 2
    %v1224 = vrot.slane %v586, 7
    %v1225 = vrot.slane %v1224, 2
    %v1226 = vrot.slane %v594, 7
    %v1227 = vrot.slane %v1226, 2
    %v1228 = vrot.slane %v593, 7
    %v1229 = vrot.slane %v1228, 2
    %v1230 = vrot.slane %v595, 7
    %v1231 = vrot.slane %v1230, 2
    %v1232 = vrot.slane %v603, 7
    %v1233 = vrot.slane %v1232, 2
    %v1234 = vrot.slane %v611, 7
    %v1235 = vrot.slane %v1234, 2
    %v1236 = vrot.slane %v610, 7
    %v1237 = vrot.slane %v1236, 2
    %v1238 = vrot.slane %v612, 7
    %v1239 = vrot.slane %v1238, 2
    %v1240 = vrot.slane %v620, 7
    %v1241 = vrot.slane %v1240, 2
    %v1242 = vrot.slane %v628, 7
    %v1243 = vrot.slane %v1242, 2
    %v1244 = vrot.slane %v627, 7
    %v1245 = vrot.slane %v1244, 2
    %v1246 = vrot.slane %v629, 7
    %v1247 = vrot.slane %v1246, 2
    %v1248 = vrot.slane %v637, 7
    %v1249 = vrot.slane %v1248, 2
    %v1250 = vrot.slane %v645, 7
    %v1251 = vrot.slane %v1250, 2
    %v1252 = vrot.slane %v644, 7
    %v1253 = vrot.slane %v1252, 2
    %v1254 = vrot.slane %v646, 7
    %v1255 = vrot.slane %v1254, 2
    %v1256 = vrot.slane %v654, 7
    %v1257 = vrot.slane %v1256, 2
    %v1258 = vrot.slane %v662, 7
    %v1259 = vrot.slane %v1258, 2
    %v1260 = vrot.slane %v661, 7
    %v1261 = vrot.slane %v1260, 2
    %v1262 = vrot.slane %v663, 7
    %v1263 = vrot.slane %v1262, 2
    %v1264 = vrot.slane %v671, 7
    %v1265 = vrot.slane %v1264, 2
    %v1266 = vrot.slane %v679, 7
    %v1267 = vrot.slane %v1266, 2
    %v1268 = vrot.slane %v678, 7
    %v1269 = vrot.slane %v1268, 2
    %v1270 = vrot.slane %v680, 7
    %v1271 = vrot.slane %v1270, 2
    %v1272 = vrot.slane %v688, 7
    %v1273 = vrot.slane %v1272, 2
    %v1274 = vrot.slane %v696, 7
    %v1275 = vrot.slane %v1274, 2
    %v1276 = vrot.slane %v695, 7
    %v1277 = vrot.slane %v1276, 2
    %v1278 = vrot.slane %v697, 7
    %v1279 = vrot.slane %v1278, 2
    %v1280 = vrot.slane %v705, 7
    %v1281 = vrot.slane %v1280, 2
    %v1282 = vrot.slane %v713, 7
    %v1283 = vrot.slane %v1282, 2
    %v1284 = vrot.slane %v712, 7
    %v1285 = vrot.slane %v1284, 2
    %v1286 = vrot.slane %v714, 7
    %v1287 = vrot.slane %v1286, 2
    %v1288 = vrot.slane %v722, 7
    %v1289 = vrot.slane %v1288, 2
    %v1290 = vrot.slane %v730, 7
    %v1291 = vrot.slane %v1290, 2
    %v1292 = vrot.slane %v729, 7
    %v1293 = vrot.slane %v1292, 2
    %v1294 = vrot.slane %v731, 7
    %v1295 = vrot.slane %v1294, 2
    %v1296 = vrot.slane %v739, 7
    %v1297 = vrot.slane %v1296, 2
    %v1298 = vrot.slane %v747, 7
    %v1299 = vrot.slane %v1298, 2
    %v1300 = vrot.slane %v746, 7
    %v1301 = vrot.slane %v1300, 2
    %v1302 = vrot.slane %v748, 7
    %v1303 = vrot.slane %v1302, 2
    %v1304 = vrot.slane %v756, 7
    %v1305 = vrot.slane %v1304, 2
    %v1306 = vrot.slane %v764, 7
    %v1307 = vrot.slane %v1306, 2
    %v1308 = vrot.slane %v763, 7
    %v1309 = vrot.slane %v1308, 2
    %v1310 = vrot.slane %v765, 7
    %v1311 = vrot.slane %v1310, 2
    %v1312 = vrot.slane %v773, 7
    %v1313 = vrot.slane %v1312, 2
    %v1314 = vrot.slane %v781, 7
    %v1315 = vrot.slane %v1314, 2
    %v1316 = vrot.slane %v780, 7
    %v1317 = vrot.slane %v1316, 2
    %v1318 = vrot.slane %v782, 7
    %v1319 = vrot.slane %v1318, 2
    %v1320 = vrot.slane %v790, 7
    %v1321 = vrot.slane %v1320, 2
    %v1322 = vrot.slane %v798, 7
    %v1323 = vrot.slane %v1322, 2
    %v1324 = vrot.slane %v797, 7
    %v1325 = vrot.slane %v1324, 2
    %v1326 = vrot.slane %v799, 7
    %v1327 = vrot.slane %v1326, 2
    %v1328 = vrot.slane %v807, 7
    %v1329 = vrot.slane %v1328, 2
    %v1330 = vrot.slane %v815, 7
    %v1331 = vrot.slane %v1330, 2
    %v1332 = vrot.slane %v814, 7
    %v1333 = vrot.slane %v1332, 2
    %v1334 = vrot.slane %v816, 7
    %v1335 = vrot.slane %v1334, 2
    %v1336 = vrot.slane %v824, 7
    %v1337 = vrot.slane %v1336, 2
    %v1338 = vrot.slane %v832, 7
    %v1339 = vrot.slane %v1338, 2
    %v1340 = vrot.slane %v831, 7
    %v1341 = vrot.slane %v1340, 2
    %v1342 = vrot.slane %v833, 7
    %v1343 = vrot.slane %v1342, 2
    %v1344 = vrot.slane %v841, 7
    %v1345 = vrot.slane %v1344, 2
    %v1346 = vrot.slane %v849, 7
    %v1347 = vrot.slane %v1346, 2
    %v1348 = vrot.slane %v848, 7
    %v1349 = vrot.slane %v1348, 2
    %v1350 = vrot.slane %v850, 7
    %v1351 = vrot.slane %v1350, 2
    %v1352 = vrot.slane %v858, 7
    %v1353 = vrot.slane %v1352, 2
    %v1354 = vrot.slane %v866, 7
    %v1355 = vrot.slane %v1354, 2
    %v1356 = vrot.slane %v865, 7
    %v1357 = vrot.slane %v1356, 2
    %v1358 = vrot.slane %v867, 7
    %v1359 = vrot.slane %v1358, 2
    %v1360 = vrot.slane %v875, 7
    %v1361 = vrot.slane %v1360, 2
    %v1362 = vrot.slane %v883, 7
    %v1363 = vrot.slane %v1362, 2
    %v1364 = vrot.slane %v882, 7
    %v1365 = vrot.slane %v1364, 2
    %v1366 = vrot.slane %v884, 7
    %v1367 = vrot.slane %v1366, 2
    %v1368 = vrot.slane %v892, 7
    %v1369 = vrot.slane %v1368, 2
    %v1370 = vrot.slane %v900, 7
    %v1371 = vrot.slane %v1370, 2
    %v1372 = vrot.slane %v899, 7
    %v1373 = vrot.slane %v1372, 2
    %v1374 = vrot.slane %v901, 7
    %v1375 = vrot.slane %v1374, 2
    %v1376 = vrot.slane %v909, 7
    %v1377 = vrot.slane %v1376, 2
    %v1378 = vrot.slane %v917, 7
    %v1379 = vrot.slane %v1378, 2
    %v1380 = vrot.slane %v916, 7
    %v1381 = vrot.slane %v1380, 2
    %v1382 = vrot.slane %v918, 7
    %v1383 = vrot.slane %v1382, 2
    %v1384 = vrot.slane %v926, 7
    %v1385 = vrot.slane %v1384, 2
    %v1386 = vrot.slane %v934, 7
    %v1387 = vrot.slane %v1386, 2
    %v1388 = vrot.slane %v933, 7
    %v1389 = vrot.slane %v1388, 2
    %v1390 = vrot.slane %v935, 7
    %v1391 = vrot.slane %v1390, 2
    %v1392 = vrot.slane %v943, 7
    %v1393 = vrot.slane %v1392, 2
    %v1394 = vrot.slane %v951, 7
    %v1395 = vrot.slane %v1394, 2
    %v1396 = vrot.slane %v950, 7
    %v1397 = vrot.slane %v1396, 2
    %v1398 = vrot.slane %v952, 7
    %v1399 = vrot.slane %v1398, 2
    %v1400 = vrot.slane %v960, 7
    %v1401 = vrot.slane %v1400, 2
    %v1402 = vrot.slane %v968, 7
    %v1403 = vrot.slane %v1402, 2
    %v1404 = vrot.slane %v967, 7
    %v1405 = vrot.slane %v1404, 2
    %v1406 = vrot.slane %v969, 7
    %v1407 = vrot.slane %v1406, 2
    %v1408 = vrot.slane %v977, 7
    %v1409 = vrot.slane %v1408, 2
    %v1410 = vrot.slane %v985, 7
    %v1411 = vrot.slane %v1410, 2
    %v1412 = vrot.slane %v984, 7
    %v1413 = vrot.slane %v1412, 2
    %v1414 = vrot.slane %v986, 7
    %v1415 = vrot.slane %v1414, 2
    %v1416 = vrot.slane %v994, 7
    %v1417 = vrot.slane %v1416, 2
    %v1418 = vrot.slane %v1002, 7
    %v1419 = vrot.slane %v1418, 2
    %v1420 = vrot.slane %v1001, 7
    %v1421 = vrot.slane %v1420, 2
    %v1422 = vrot.slane %v1003, 7
    %v1423 = vrot.slane %v1422, 2
    %v1424 = vrot.slane %v1011, 7
    %v1425 = vrot.slane %v1424, 2
    %v1426 = vrot.slane %v1019, 7
    %v1427 = vrot.slane %v1426, 2
    %v1428 = vrot.slane %v1018, 7
    %v1429 = vrot.slane %v1428, 2
    %v1430 = vrot.slane %v1020, 7
    %v1431 = vrot.slane %v1430, 2
    %v1432 = vrot.slane %v1028, 7
    %v1433 = vrot.slane %v1432, 2
    %v1434 = vrot.slane %v1036, 7
    %v1435 = vrot.slane %v1434, 2
    %v1436 = vrot.slane %v1035, 7
    %v1437 = vrot.slane %v1436, 2
    %v1438 = vrot.slane %v1037, 7
    %v1439 = vrot.slane %v1438, 2
    %v1440 = vrot.slane %v1045, 7
    %v1441 = vrot.slane %v1440, 2
    %v1442 = vrot.slane %v1053, 7
    %v1443 = vrot.slane %v1442, 2
    %v1444 = vrot.slane %v1052, 7
    %v1445 = vrot.slane %v1444, 2
    %v1446 = vrot.slane %v1054, 7
    %v1447 = vrot.slane %v1446, 2
    %v1448 = vrot.slane %v1062, 7
    %v1449 = vrot.slane %v1448, 2
    %v1450 = vrot.slane %v1070, 7
    %v1451 = vrot.slane %v1450, 2
    %v1452 = vrot.slane %v1069, 7
    %v1453 = vrot.slane %v1452, 2
    %v1454 = vrot.slane %v1071, 7
    %v1455 = vrot.slane %v1454, 2
    %v1584 = vmax.f32 %v535, %v1201
    %v1585 = vmax.f32 %v543, %v1203
    %v1586 = vmax.f32 %v542, %v1205
    %v1587 = vmax.f32 %v544, %v1207
    %v1588 = vmax.f32 %v552, %v1209
    %v1589 = vmax.f32 %v560, %v1211
    %v1590 = vmax.f32 %v559, %v1213
    %v1591 = vmax.f32 %v561, %v1215
    %v1592 = vmax.f32 %v569, %v1217
    %v1593 = vmax.f32 %v577, %v1219
    %v1594 = vmax.f32 %v576, %v1221
    %v1595 = vmax.f32 %v578, %v1223
    %v1596 = vmax.f32 %v586, %v1225
    %v1597 = vmax.f32 %v594, %v1227
    %v1598 = vmax.f32 %v593, %v1229
    %v1599 = vmax.f32 %v595, %v1231
    %v1600 = vmax.f32 %v603, %v1233
    %v1601 = vmax.f32 %v611, %v1235
    %v1602 = vmax.f32 %v610, %v1237
    %v1603 = vmax.f32 %v612, %v1239
    %v1604 = vmax.f32 %v620, %v1241
    %v1605 = vmax.f32 %v628, %v1243
    %v1606 = vmax.f32 %v627, %v1245
    %v1607 = vmax.f32 %v629, %v1247
    %v1608 = vmax.f32 %v637, %v1249
    %v1609 = vmax.f32 %v645, %v1251
    %v1610 = vmax.f32 %v644, %v1253
    %v1611 = vmax.f32 %v646, %v1255
    %v1612 = vmax.f32 %v654, %v1257
    %v1613 = vmax.f32 %v662, %v1259
    %v1614 = vmax.f32 %v661, %v1261
    %v1615 = vmax.f32 %v663, %v1263
    %v1616 = vmax.f32 %v671, %v1265
    %v1617 = vmax.f32 %v679, %v1267
    %v1618 = vmax.f32 %v678, %v1269
    %v1619 = vmax.f32 %v680, %v1271
    %v1620 = vmax.f32 %v688, %v1273
    %v1621 = vmax.f32 %v696, %v1275
    %v1622 = vmax.f32 %v695, %v1277
    %v1623 = vmax.f32 %v697, %v1279
    %v1624 = vmax.f32 %v705, %v1281
    %v1625 = vmax.f32 %v713, %v1283
    %v1626 = vmax.f32 %v712, %v1285
    %v1627 = vmax.f32 %v714, %v1287
    %v1628 = vmax.f32 %v722, %v1289
    %v1629 = vmax.f32 %v730, %v1291
    %v1630 = vmax.f32 %v729, %v1293
    %v1631 = vmax.f32 %v731, %v1295
    %v1632 = vmax.f32 %v739, %v1297
    %v1633 = vmax.f32 %v747, %v1299
    %v1634 = vmax.f32 %v746, %v1301
    %v1635 = vmax.f32 %v748, %v1303
    %v1636 = vmax.f32 %v756, %v1305
    %v1637 = vmax.f32 %v764, %v1307
    %v1638 = vmax.f32 %v763, %v1309
    %v1639 = vmax.f32 %v765, %v1311
    %v1640 = vmax.f32 %v773, %v1313
    %v1641 = vmax.f32 %v781, %v1315
    %v1642 = vmax.f32 %v780, %v1317
    %v1643 = vmax.f32 %v782, %v1319
    %v1644 = vmax.f32 %v790, %v1321
    %v1645 = vmax.f32 %v798, %v1323
    %v1646 = vmax.f32 %v797, %v1325
    %v1647 = vmax.f32 %v799, %v1327
    %v1648 = vmax.f32 %v807, %v1329
    %v1649 = vmax.f32 %v815, %v1331
    %v1650 = vmax.f32 %v814, %v1333
    %v1651 = vmax.f32 %v816, %v1335
    %v1652 = vmax.f32 %v824, %v1337
    %v1653 = vmax.f32 %v832, %v1339
    %v1654 = vmax.f32 %v831, %v1341
    %v1655 = vmax.f32 %v833, %v1343
    %v1656 = vmax.f32 %v841, %v1345
    %v1657 = vmax.f32 %v849, %v1347
    %v1658 = vmax.f32 %v848, %v1349
    %v1659 = vmax.f32 %v850, %v1351
    %v1660 = vmax.f32 %v858, %v1353
    %v1661 = vmax.f32 %v866, %v1355
    %v1662 = vmax.f32 %v865, %v1357
    %v1663 = vmax.f32 %v867, %v1359
    %v1664 = vmax.f32 %v875, %v1361
    %v1665 = vmax.f32 %v883, %v1363
    %v1666 = vmax.f32 %v882, %v1365
    %v1667 = vmax.f32 %v884, %v1367
    %v1668 = vmax.f32 %v892, %v1369
    %v1669 = vmax.f32 %v900, %v1371
    %v1670 = vmax.f32 %v899, %v1373
    %v1671 = vmax.f32 %v901, %v1375
    %v1672 = vmax.f32 %v909, %v1377
    %v1673 = vmax.f32 %v917, %v1379
    %v1674 = vmax.f32 %v916, %v1381
    %v1675 = vmax.f32 %v918, %v1383
    %v1676 = vmax.f32 %v926, %v1385
    %v1677 = vmax.f32 %v934, %v1387
    %v1678 = vmax.f32 %v933, %v1389
    %v1679 = vmax.f32 %v935, %v1391
    %v1680 = vmax.f32 %v943, %v1393
    %v1681 = vmax.f32 %v951, %v1395
    %v1682 = vmax.f32 %v950, %v1397
    %v1683 = vmax.f32 %v952, %v1399
    %v1684 = vmax.f32 %v960, %v1401
    %v1685 = vmax.f32 %v968, %v1403
    %v1686 = vmax.f32 %v967, %v1405
    %v1687 = vmax.f32 %v969, %v1407
    %v1688 = vmax.f32 %v977, %v1409
    %v1689 = vmax.f32 %v985, %v1411
    %v1690 = vmax.f32 %v984, %v1413
    %v1691 = vmax.f32 %v986, %v1415
    %v1692 = vmax.f32 %v994, %v1417
    %v1693 = vmax.f32 %v1002, %v1419
    %v1694 = vmax.f32 %v1001, %v1421
    %v1695 = vmax.f32 %v1003, %v1423
    %v1696 = vmax.f32 %v1011, %v1425
    %v1697 = vmax.f32 %v1019, %v1427
    %v1698 = vmax.f32 %v1018, %v1429
    %v1699 = vmax.f32 %v1020, %v1431
    %v1700 = vmax.f32 %v1028, %v1433
    %v1701 = vmax.f32 %v1036, %v1435
    %v1702 = vmax.f32 %v1035, %v1437
    %v1703 = vmax.f32 %v1037, %v1439
    %v1704 = vmax.f32 %v1045, %v1441
    %v1705 = vmax.f32 %v1053, %v1443
    %v1706 = vmax.f32 %v1052, %v1445
    %v1707 = vmax.f32 %v1054, %v1447
    %v1708 = vmax.f32 %v1062, %v1449
    %v1709 = vmax.f32 %v1070, %v1451
    %v1710 = vmax.f32 %v1069, %v1453
    %v1711 = vmax.f32 %v1071, %v1455
    %vm1712 = vcmask 31744
    %1713 = vst.msk [vmem:[#allocation2] sm:$0xff] %vm1712, 0.0
    %vm1714 = vcmask 25600
    %1715 = vst.msk [vmem:[#allocation2 + $0x8] sm:$0x3] %vm1714, 0.0
    %1716 = vst.msk [vmem:[#allocation2 + $0xa0] sm:$0xff] %vm1712, 0.0
    %1717 = vst.msk [vmem:[#allocation2 + $0xa8] sm:$0x3] %vm1714, 0.0
    %s1718 = scalar_lea.vmem [#allocation2], 144
    %1719 = vst.msk [vmem:[%s1718] sm:$0xff] %vm1712, 0.0
    %1720 = vst.msk [vmem:[%s1718 + $0x8] sm:$0x3] %vm1714, 0.0
    %1721 = vst.msk [vmem:[%s1718 + $0xa0] sm:$0xff] %vm1712, 0.0
    %1722 = vst.msk [vmem:[%s1718 + $0xa8] sm:$0x3] %vm1714, 0.0
    %vm1723 = vcmask 24576
    %1724 = vst.msk [vmem:[#allocation2] sm:$0x1] %vm1723, 0.0
    %1725 = vst.msk [vmem:[#allocation2 + $0x10] sm:$0x1] %vm1723, 0.0
    %1726 = vst.msk [vmem:[#allocation2 + $0x20] sm:$0x1] %vm1723, 0.0
    %1727 = vst.msk [vmem:[#allocation2 + $0x30] sm:$0x1] %vm1723, 0.0
    %1728 = vst.msk [vmem:[#allocation2 + $0x40] sm:$0x1] %vm1723, 0.0
    %1729 = vst.msk [vmem:[#allocation2 + $0x50] sm:$0x1] %vm1723, 0.0
    %1730 = vst.msk [vmem:[#allocation2 + $0x60] sm:$0x1] %vm1723, 0.0
    %1731 = vst.msk [vmem:[#allocation2 + $0x70] sm:$0x1] %vm1723, 0.0
    %1732 = vst.msk [vmem:[#allocation2 + $0x80] sm:$0x1] %vm1723, 0.0
    %1733 = vst.msk [vmem:[#allocation2 + $0x90] sm:$0x1] %vm1723, 0.0
    %1734 = vst.msk [vmem:[#allocation2 + $0xa0] sm:$0x1] %vm1723, 0.0
    %1735 = vst.msk [vmem:[#allocation2 + $0xb0] sm:$0x1] %vm1723, 0.0
    %1736 = vst.msk [vmem:[#allocation2 + $0xc0] sm:$0x1] %vm1723, 0.0
    %1737 = vst.msk [vmem:[#allocation2 + $0xd0] sm:$0x1] %vm1723, 0.0
    %1738 = vst.msk [vmem:[#allocation2 + $0xe0] sm:$0x1] %vm1723, 0.0
    %1739 = vst.msk [vmem:[#allocation2 + $0xf0] sm:$0x1] %vm1723, 0.0
    %1740 = vst.msk [vmem:[#allocation2 + $0x100] sm:$0x1] %vm1723, 0.0
    %1741 = vst.msk [vmem:[#allocation2 + $0x110] sm:$0x1] %vm1723, 0.0
    %1742 = vst.msk [vmem:[#allocation2 + $0x120] sm:$0x1] %vm1723, 0.0
    %1743 = vst.msk [vmem:[#allocation2 + $0x130] sm:$0x1] %vm1723, 0.0
    %1744 = vst.msk [vmem:[#allocation2 + $0x9] sm:$0x1] %vm1723, 0.0
    %1745 = vst.msk [vmem:[#allocation2 + $0x19] sm:$0x1] %vm1723, 0.0
    %1746 = vst.msk [vmem:[#allocation2 + $0x29] sm:$0x1] %vm1723, 0.0
    %1747 = vst.msk [vmem:[#allocation2 + $0x39] sm:$0x1] %vm1723, 0.0
    %1748 = vst.msk [vmem:[#allocation2 + $0x49] sm:$0x1] %vm1723, 0.0
    %1749 = vst.msk [vmem:[#allocation2 + $0x59] sm:$0x1] %vm1723, 0.0
    %1750 = vst.msk [vmem:[#allocation2 + $0x69] sm:$0x1] %vm1723, 0.0
    %1751 = vst.msk [vmem:[#allocation2 + $0x79] sm:$0x1] %vm1723, 0.0
    %1752 = vst.msk [vmem:[#allocation2 + $0x89] sm:$0x1] %vm1723, 0.0
    %1753 = vst.msk [vmem:[#allocation2 + $0x99] sm:$0x1] %vm1723, 0.0
    %1754 = vst.msk [vmem:[#allocation2 + $0xa9] sm:$0x1] %vm1723, 0.0
    %1755 = vst.msk [vmem:[#allocation2 + $0xb9] sm:$0x1] %vm1723, 0.0
    %1756 = vst.msk [vmem:[#allocation2 + $0xc9] sm:$0x1] %vm1723, 0.0
    %1757 = vst.msk [vmem:[#allocation2 + $0xd9] sm:$0x1] %vm1723, 0.0
    %1758 = vst.msk [vmem:[#allocation2 + $0xe9] sm:$0x1] %vm1723, 0.0
    %1759 = vst.msk [vmem:[#allocation2 + $0xf9] sm:$0x1] %vm1723, 0.0
    %1760 = vst.msk [vmem:[#allocation2 + $0x109] sm:$0x1] %vm1723, 0.0
    %1761 = vst.msk [vmem:[#allocation2 + $0x119] sm:$0x1] %vm1723, 0.0
    %1762 = vst.msk [vmem:[#allocation2 + $0x129] sm:$0x1] %vm1723, 0.0
    %1763 = vst.msk [vmem:[#allocation2 + $0x139] sm:$0x1] %vm1723, 0.0
    %v1892 = vlaneseq
    %v1893 = vshrl.u32 %v1892, 7
    %v1894 = vsub.s32 0, %v1893
    %v1895 = vrot.slane %v1584, %v1894
    %v1896 = vlaneseq
    %v1897 = vshrl.u32 %v1896, 7
    %v1898 = vsub.s32 0, %v1897
    %v1899 = vrot.slane %v1585, %v1898
    %v1900 = vlaneseq
    %v1901 = vshrl.u32 %v1900, 7
    %v1902 = vsub.s32 0, %v1901
    %v1903 = vrot.slane %v1586, %v1902
    %v1904 = vlaneseq
    %v1905 = vshrl.u32 %v1904, 7
    %v1906 = vsub.s32 0, %v1905
    %v1907 = vrot.slane %v1587, %v1906
    %v1908 = vlaneseq
    %v1909 = vshrl.u32 %v1908, 7
    %v1910 = vsub.s32 0, %v1909
    %v1911 = vrot.slane %v1588, %v1910
    %v1912 = vlaneseq
    %v1913 = vshrl.u32 %v1912, 7
    %v1914 = vsub.s32 0, %v1913
    %v1915 = vrot.slane %v1589, %v1914
    %v1916 = vlaneseq
    %v1917 = vshrl.u32 %v1916, 7
    %v1918 = vsub.s32 0, %v1917
    %v1919 = vrot.slane %v1590, %v1918
    %v1920 = vlaneseq
    %v1921 = vshrl.u32 %v1920, 7
    %v1922 = vsub.s32 0, %v1921
    %v1923 = vrot.slane %v1591, %v1922
    %v1924 = vlaneseq
    %v1925 = vshrl.u32 %v1924, 7
    %v1926 = vsub.s32 0, %v1925
    %v1927 = vrot.slane %v1592, %v1926
    %v1928 = vlaneseq
    %v1929 = vshrl.u32 %v1928, 7
    %v1930 = vsub.s32 0, %v1929
    %v1931 = vrot.slane %v1593, %v1930
    %v1932 = vlaneseq
    %v1933 = vshrl.u32 %v1932, 7
    %v1934 = vsub.s32 0, %v1933
    %v1935 = vrot.slane %v1594, %v1934
    %v1936 = vlaneseq
    %v1937 = vshrl.u32 %v1936, 7
    %v1938 = vsub.s32 0, %v1937
    %v1939 = vrot.slane %v1595, %v1938
    %v1940 = vlaneseq
    %v1941 = vshrl.u32 %v1940, 7
    %v1942 = vsub.s32 0, %v1941
    %v1943 = vrot.slane %v1596, %v1942
    %v1944 = vlaneseq
    %v1945 = vshrl.u32 %v1944, 7
    %v1946 = vsub.s32 0, %v1945
    %v1947 = vrot.slane %v1597, %v1946
    %v1948 = vlaneseq
    %v1949 = vshrl.u32 %v1948, 7
    %v1950 = vsub.s32 0, %v1949
    %v1951 = vrot.slane %v1598, %v1950
    %v1952 = vlaneseq
    %v1953 = vshrl.u32 %v1952, 7
    %v1954 = vsub.s32 0, %v1953
    %v1955 = vrot.slane %v1599, %v1954
    %v1956 = vlaneseq
    %v1957 = vshrl.u32 %v1956, 7
    %v1958 = vsub.s32 0, %v1957
    %v1959 = vrot.slane %v1600, %v1958
    %v1960 = vlaneseq
    %v1961 = vshrl.u32 %v1960, 7
    %v1962 = vsub.s32 0, %v1961
    %v1963 = vrot.slane %v1601, %v1962
    %v1964 = vlaneseq
    %v1965 = vshrl.u32 %v1964, 7
    %v1966 = vsub.s32 0, %v1965
    %v1967 = vrot.slane %v1602, %v1966
    %v1968 = vlaneseq
    %v1969 = vshrl.u32 %v1968, 7
    %v1970 = vsub.s32 0, %v1969
    %v1971 = vrot.slane %v1603, %v1970
    %v1972 = vlaneseq
    %v1973 = vshrl.u32 %v1972, 7
    %v1974 = vsub.s32 0, %v1973
    %v1975 = vrot.slane %v1604, %v1974
    %v1976 = vlaneseq
    %v1977 = vshrl.u32 %v1976, 7
    %v1978 = vsub.s32 0, %v1977
    %v1979 = vrot.slane %v1605, %v1978
    %v1980 = vlaneseq
    %v1981 = vshrl.u32 %v1980, 7
    %v1982 = vsub.s32 0, %v1981
    %v1983 = vrot.slane %v1606, %v1982
    %v1984 = vlaneseq
    %v1985 = vshrl.u32 %v1984, 7
    %v1986 = vsub.s32 0, %v1985
    %v1987 = vrot.slane %v1607, %v1986
    %v1988 = vlaneseq
    %v1989 = vshrl.u32 %v1988, 7
    %v1990 = vsub.s32 0, %v1989
    %v1991 = vrot.slane %v1608, %v1990
    %v1992 = vlaneseq
    %v1993 = vshrl.u32 %v1992, 7
    %v1994 = vsub.s32 0, %v1993
    %v1995 = vrot.slane %v1609, %v1994
    %v1996 = vlaneseq
    %v1997 = vshrl.u32 %v1996, 7
    %v1998 = vsub.s32 0, %v1997
    %v1999 = vrot.slane %v1610, %v1998
    %v2000 = vlaneseq
    %v2001 = vshrl.u32 %v2000, 7
    %v2002 = vsub.s32 0, %v2001
    %v2003 = vrot.slane %v1611, %v2002
    %v2004 = vlaneseq
    %v2005 = vshrl.u32 %v2004, 7
    %v2006 = vsub.s32 0, %v2005
    %v2007 = vrot.slane %v1612, %v2006
    %v2008 = vlaneseq
    %v2009 = vshrl.u32 %v2008, 7
    %v2010 = vsub.s32 0, %v2009
    %v2011 = vrot.slane %v1613, %v2010
    %v2012 = vlaneseq
    %v2013 = vshrl.u32 %v2012, 7
    %v2014 = vsub.s32 0, %v2013
    %v2015 = vrot.slane %v1614, %v2014
    %v2016 = vlaneseq
    %v2017 = vshrl.u32 %v2016, 7
    %v2018 = vsub.s32 0, %v2017
    %v2019 = vrot.slane %v1615, %v2018
    %v2020 = vlaneseq
    %v2021 = vshrl.u32 %v2020, 7
    %v2022 = vsub.s32 0, %v2021
    %v2023 = vrot.slane %v1616, %v2022
    %v2024 = vlaneseq
    %v2025 = vshrl.u32 %v2024, 7
    %v2026 = vsub.s32 0, %v2025
    %v2027 = vrot.slane %v1617, %v2026
    %v2028 = vlaneseq
    %v2029 = vshrl.u32 %v2028, 7
    %v2030 = vsub.s32 0, %v2029
    %v2031 = vrot.slane %v1618, %v2030
    %v2032 = vlaneseq
    %v2033 = vshrl.u32 %v2032, 7
    %v2034 = vsub.s32 0, %v2033
    %v2035 = vrot.slane %v1619, %v2034
    %v2036 = vlaneseq
    %v2037 = vshrl.u32 %v2036, 7
    %v2038 = vsub.s32 0, %v2037
    %v2039 = vrot.slane %v1620, %v2038
    %v2040 = vlaneseq
    %v2041 = vshrl.u32 %v2040, 7
    %v2042 = vsub.s32 0, %v2041
    %v2043 = vrot.slane %v1621, %v2042
    %v2044 = vlaneseq
    %v2045 = vshrl.u32 %v2044, 7
    %v2046 = vsub.s32 0, %v2045
    %v2047 = vrot.slane %v1622, %v2046
    %v2048 = vlaneseq
    %v2049 = vshrl.u32 %v2048, 7
    %v2050 = vsub.s32 0, %v2049
    %v2051 = vrot.slane %v1623, %v2050
    %v2052 = vlaneseq
    %v2053 = vshrl.u32 %v2052, 7
    %v2054 = vsub.s32 0, %v2053
    %v2055 = vrot.slane %v1624, %v2054
    %v2056 = vlaneseq
    %v2057 = vshrl.u32 %v2056, 7
    %v2058 = vsub.s32 0, %v2057
    %v2059 = vrot.slane %v1625, %v2058
    %v2060 = vlaneseq
    %v2061 = vshrl.u32 %v2060, 7
    %v2062 = vsub.s32 0, %v2061
    %v2063 = vrot.slane %v1626, %v2062
    %v2064 = vlaneseq
    %v2065 = vshrl.u32 %v2064, 7
    %v2066 = vsub.s32 0, %v2065
    %v2067 = vrot.slane %v1627, %v2066
    %v2068 = vlaneseq
    %v2069 = vshrl.u32 %v2068, 7
    %v2070 = vsub.s32 0, %v2069
    %v2071 = vrot.slane %v1628, %v2070
    %v2072 = vlaneseq
    %v2073 = vshrl.u32 %v2072, 7
    %v2074 = vsub.s32 0, %v2073
    %v2075 = vrot.slane %v1629, %v2074
    %v2076 = vlaneseq
    %v2077 = vshrl.u32 %v2076, 7
    %v2078 = vsub.s32 0, %v2077
    %v2079 = vrot.slane %v1630, %v2078
    %v2080 = vlaneseq
    %v2081 = vshrl.u32 %v2080, 7
    %v2082 = vsub.s32 0, %v2081
    %v2083 = vrot.slane %v1631, %v2082
    %v2084 = vlaneseq
    %v2085 = vshrl.u32 %v2084, 7
    %v2086 = vsub.s32 0, %v2085
    %v2087 = vrot.slane %v1632, %v2086
    %v2088 = vlaneseq
    %v2089 = vshrl.u32 %v2088, 7
    %v2090 = vsub.s32 0, %v2089
    %v2091 = vrot.slane %v1633, %v2090
    %v2092 = vlaneseq
    %v2093 = vshrl.u32 %v2092, 7
    %v2094 = vsub.s32 0, %v2093
    %v2095 = vrot.slane %v1634, %v2094
    %v2096 = vlaneseq
    %v2097 = vshrl.u32 %v2096, 7
    %v2098 = vsub.s32 0, %v2097
    %v2099 = vrot.slane %v1635, %v2098
    %v2100 = vlaneseq
    %v2101 = vshrl.u32 %v2100, 7
    %v2102 = vsub.s32 0, %v2101
    %v2103 = vrot.slane %v1636, %v2102
    %v2104 = vlaneseq
    %v2105 = vshrl.u32 %v2104, 7
    %v2106 = vsub.s32 0, %v2105
    %v2107 = vrot.slane %v1637, %v2106
    %v2108 = vlaneseq
    %v2109 = vshrl.u32 %v2108, 7
    %v2110 = vsub.s32 0, %v2109
    %v2111 = vrot.slane %v1638, %v2110
    %v2112 = vlaneseq
    %v2113 = vshrl.u32 %v2112, 7
    %v2114 = vsub.s32 0, %v2113
    %v2115 = vrot.slane %v1639, %v2114
    %v2116 = vlaneseq
    %v2117 = vshrl.u32 %v2116, 7
    %v2118 = vsub.s32 0, %v2117
    %v2119 = vrot.slane %v1640, %v2118
    %v2120 = vlaneseq
    %v2121 = vshrl.u32 %v2120, 7
    %v2122 = vsub.s32 0, %v2121
    %v2123 = vrot.slane %v1641, %v2122
    %v2124 = vlaneseq
    %v2125 = vshrl.u32 %v2124, 7
    %v2126 = vsub.s32 0, %v2125
    %v2127 = vrot.slane %v1642, %v2126
    %v2128 = vlaneseq
    %v2129 = vshrl.u32 %v2128, 7
    %v2130 = vsub.s32 0, %v2129
    %v2131 = vrot.slane %v1643, %v2130
    %v2132 = vlaneseq
    %v2133 = vshrl.u32 %v2132, 7
    %v2134 = vsub.s32 0, %v2133
    %v2135 = vrot.slane %v1644, %v2134
    %v2136 = vlaneseq
    %v2137 = vshrl.u32 %v2136, 7
    %v2138 = vsub.s32 0, %v2137
    %v2139 = vrot.slane %v1645, %v2138
    %v2140 = vlaneseq
    %v2141 = vshrl.u32 %v2140, 7
    %v2142 = vsub.s32 0, %v2141
    %v2143 = vrot.slane %v1646, %v2142
    %v2144 = vlaneseq
    %v2145 = vshrl.u32 %v2144, 7
    %v2146 = vsub.s32 0, %v2145
    %v2147 = vrot.slane %v1647, %v2146
    %v2148 = vlaneseq
    %v2149 = vshrl.u32 %v2148, 7
    %v2150 = vsub.s32 0, %v2149
    %v2151 = vrot.slane %v1648, %v2150
    %v2152 = vlaneseq
    %v2153 = vshrl.u32 %v2152, 7
    %v2154 = vsub.s32 0, %v2153
    %v2155 = vrot.slane %v1649, %v2154
    %v2156 = vlaneseq
    %v2157 = vshrl.u32 %v2156, 7
    %v2158 = vsub.s32 0, %v2157
    %v2159 = vrot.slane %v1650, %v2158
    %v2160 = vlaneseq
    %v2161 = vshrl.u32 %v2160, 7
    %v2162 = vsub.s32 0, %v2161
    %v2163 = vrot.slane %v1651, %v2162
    %v2164 = vlaneseq
    %v2165 = vshrl.u32 %v2164, 7
    %v2166 = vsub.s32 0, %v2165
    %v2167 = vrot.slane %v1652, %v2166
    %v2168 = vlaneseq
    %v2169 = vshrl.u32 %v2168, 7
    %v2170 = vsub.s32 0, %v2169
    %v2171 = vrot.slane %v1653, %v2170
    %v2172 = vlaneseq
    %v2173 = vshrl.u32 %v2172, 7
    %v2174 = vsub.s32 0, %v2173
    %v2175 = vrot.slane %v1654, %v2174
    %v2176 = vlaneseq
    %v2177 = vshrl.u32 %v2176, 7
    %v2178 = vsub.s32 0, %v2177
    %v2179 = vrot.slane %v1655, %v2178
    %v2180 = vlaneseq
    %v2181 = vshrl.u32 %v2180, 7
    %v2182 = vsub.s32 0, %v2181
    %v2183 = vrot.slane %v1656, %v2182
    %v2184 = vlaneseq
    %v2185 = vshrl.u32 %v2184, 7
    %v2186 = vsub.s32 0, %v2185
    %v2187 = vrot.slane %v1657, %v2186
    %v2188 = vlaneseq
    %v2189 = vshrl.u32 %v2188, 7
    %v2190 = vsub.s32 0, %v2189
    %v2191 = vrot.slane %v1658, %v2190
    %v2192 = vlaneseq
    %v2193 = vshrl.u32 %v2192, 7
    %v2194 = vsub.s32 0, %v2193
    %v2195 = vrot.slane %v1659, %v2194
    %v2196 = vlaneseq
    %v2197 = vshrl.u32 %v2196, 7
    %v2198 = vsub.s32 0, %v2197
    %v2199 = vrot.slane %v1660, %v2198
    %v2200 = vlaneseq
    %v2201 = vshrl.u32 %v2200, 7
    %v2202 = vsub.s32 0, %v2201
    %v2203 = vrot.slane %v1661, %v2202
    %v2204 = vlaneseq
    %v2205 = vshrl.u32 %v2204, 7
    %v2206 = vsub.s32 0, %v2205
    %v2207 = vrot.slane %v1662, %v2206
    %v2208 = vlaneseq
    %v2209 = vshrl.u32 %v2208, 7
    %v2210 = vsub.s32 0, %v2209
    %v2211 = vrot.slane %v1663, %v2210
    %v2212 = vlaneseq
    %v2213 = vshrl.u32 %v2212, 7
    %v2214 = vsub.s32 0, %v2213
    %v2215 = vrot.slane %v1664, %v2214
    %v2216 = vlaneseq
    %v2217 = vshrl.u32 %v2216, 7
    %v2218 = vsub.s32 0, %v2217
    %v2219 = vrot.slane %v1665, %v2218
    %v2220 = vlaneseq
    %v2221 = vshrl.u32 %v2220, 7
    %v2222 = vsub.s32 0, %v2221
    %v2223 = vrot.slane %v1666, %v2222
    %v2224 = vlaneseq
    %v2225 = vshrl.u32 %v2224, 7
    %v2226 = vsub.s32 0, %v2225
    %v2227 = vrot.slane %v1667, %v2226
    %v2228 = vlaneseq
    %v2229 = vshrl.u32 %v2228, 7
    %v2230 = vsub.s32 0, %v2229
    %v2231 = vrot.slane %v1668, %v2230
    %v2232 = vlaneseq
    %v2233 = vshrl.u32 %v2232, 7
    %v2234 = vsub.s32 0, %v2233
    %v2235 = vrot.slane %v1669, %v2234
    %v2236 = vlaneseq
    %v2237 = vshrl.u32 %v2236, 7
    %v2238 = vsub.s32 0, %v2237
    %v2239 = vrot.slane %v1670, %v2238
    %v2240 = vlaneseq
    %v2241 = vshrl.u32 %v2240, 7
    %v2242 = vsub.s32 0, %v2241
    %v2243 = vrot.slane %v1671, %v2242
    %v2244 = vlaneseq
    %v2245 = vshrl.u32 %v2244, 7
    %v2246 = vsub.s32 0, %v2245
    %v2247 = vrot.slane %v1672, %v2246
    %v2248 = vlaneseq
    %v2249 = vshrl.u32 %v2248, 7
    %v2250 = vsub.s32 0, %v2249
    %v2251 = vrot.slane %v1673, %v2250
    %v2252 = vlaneseq
    %v2253 = vshrl.u32 %v2252, 7
    %v2254 = vsub.s32 0, %v2253
    %v2255 = vrot.slane %v1674, %v2254
    %v2256 = vlaneseq
    %v2257 = vshrl.u32 %v2256, 7
    %v2258 = vsub.s32 0, %v2257
    %v2259 = vrot.slane %v1675, %v2258
    %v2260 = vlaneseq
    %v2261 = vshrl.u32 %v2260, 7
    %v2262 = vsub.s32 0, %v2261
    %v2263 = vrot.slane %v1676, %v2262
    %v2264 = vlaneseq
    %v2265 = vshrl.u32 %v2264, 7
    %v2266 = vsub.s32 0, %v2265
    %v2267 = vrot.slane %v1677, %v2266
    %v2268 = vlaneseq
    %v2269 = vshrl.u32 %v2268, 7
    %v2270 = vsub.s32 0, %v2269
    %v2271 = vrot.slane %v1678, %v2270
    %v2272 = vlaneseq
    %v2273 = vshrl.u32 %v2272, 7
    %v2274 = vsub.s32 0, %v2273
    %v2275 = vrot.slane %v1679, %v2274
    %v2276 = vlaneseq
    %v2277 = vshrl.u32 %v2276, 7
    %v2278 = vsub.s32 0, %v2277
    %v2279 = vrot.slane %v1680, %v2278
    %v2280 = vlaneseq
    %v2281 = vshrl.u32 %v2280, 7
    %v2282 = vsub.s32 0, %v2281
    %v2283 = vrot.slane %v1681, %v2282
    %v2284 = vlaneseq
    %v2285 = vshrl.u32 %v2284, 7
    %v2286 = vsub.s32 0, %v2285
    %v2287 = vrot.slane %v1682, %v2286
    %v2288 = vlaneseq
    %v2289 = vshrl.u32 %v2288, 7
    %v2290 = vsub.s32 0, %v2289
    %v2291 = vrot.slane %v1683, %v2290
    %v2292 = vlaneseq
    %v2293 = vshrl.u32 %v2292, 7
    %v2294 = vsub.s32 0, %v2293
    %v2295 = vrot.slane %v1684, %v2294
    %v2296 = vlaneseq
    %v2297 = vshrl.u32 %v2296, 7
    %v2298 = vsub.s32 0, %v2297
    %v2299 = vrot.slane %v1685, %v2298
    %v2300 = vlaneseq
    %v2301 = vshrl.u32 %v2300, 7
    %v2302 = vsub.s32 0, %v2301
    %v2303 = vrot.slane %v1686, %v2302
    %v2304 = vlaneseq
    %v2305 = vshrl.u32 %v2304, 7
    %v2306 = vsub.s32 0, %v2305
    %v2307 = vrot.slane %v1687, %v2306
    %v2308 = vlaneseq
    %v2309 = vshrl.u32 %v2308, 7
    %v2310 = vsub.s32 0, %v2309
    %v2311 = vrot.slane %v1688, %v2310
    %v2312 = vlaneseq
    %v2313 = vshrl.u32 %v2312, 7
    %v2314 = vsub.s32 0, %v2313
    %v2315 = vrot.slane %v1689, %v2314
    %v2316 = vlaneseq
    %v2317 = vshrl.u32 %v2316, 7
    %v2318 = vsub.s32 0, %v2317
    %v2319 = vrot.slane %v1690, %v2318
    %v2320 = vlaneseq
    %v2321 = vshrl.u32 %v2320, 7
    %v2322 = vsub.s32 0, %v2321
    %v2323 = vrot.slane %v1691, %v2322
    %v2324 = vlaneseq
    %v2325 = vshrl.u32 %v2324, 7
    %v2326 = vsub.s32 0, %v2325
    %v2327 = vrot.slane %v1692, %v2326
    %v2328 = vlaneseq
    %v2329 = vshrl.u32 %v2328, 7
    %v2330 = vsub.s32 0, %v2329
    %v2331 = vrot.slane %v1693, %v2330
    %v2332 = vlaneseq
    %v2333 = vshrl.u32 %v2332, 7
    %v2334 = vsub.s32 0, %v2333
    %v2335 = vrot.slane %v1694, %v2334
    %v2336 = vlaneseq
    %v2337 = vshrl.u32 %v2336, 7
    %v2338 = vsub.s32 0, %v2337
    %v2339 = vrot.slane %v1695, %v2338
    %v2340 = vlaneseq
    %v2341 = vshrl.u32 %v2340, 7
    %v2342 = vsub.s32 0, %v2341
    %v2343 = vrot.slane %v1696, %v2342
    %v2344 = vlaneseq
    %v2345 = vshrl.u32 %v2344, 7
    %v2346 = vsub.s32 0, %v2345
    %v2347 = vrot.slane %v1697, %v2346
    %v2348 = vlaneseq
    %v2349 = vshrl.u32 %v2348, 7
    %v2350 = vsub.s32 0, %v2349
    %v2351 = vrot.slane %v1698, %v2350
    %v2352 = vlaneseq
    %v2353 = vshrl.u32 %v2352, 7
    %v2354 = vsub.s32 0, %v2353
    %v2355 = vrot.slane %v1699, %v2354
    %v2356 = vlaneseq
    %v2357 = vshrl.u32 %v2356, 7
    %v2358 = vsub.s32 0, %v2357
    %v2359 = vrot.slane %v1700, %v2358
    %v2360 = vlaneseq
    %v2361 = vshrl.u32 %v2360, 7
    %v2362 = vsub.s32 0, %v2361
    %v2363 = vrot.slane %v1701, %v2362
    %v2364 = vlaneseq
    %v2365 = vshrl.u32 %v2364, 7
    %v2366 = vsub.s32 0, %v2365
    %v2367 = vrot.slane %v1702, %v2366
    %v2368 = vlaneseq
    %v2369 = vshrl.u32 %v2368, 7
    %v2370 = vsub.s32 0, %v2369
    %v2371 = vrot.slane %v1703, %v2370
    %v2372 = vlaneseq
    %v2373 = vshrl.u32 %v2372, 7
    %v2374 = vsub.s32 0, %v2373
    %v2375 = vrot.slane %v1704, %v2374
    %v2376 = vlaneseq
    %v2377 = vshrl.u32 %v2376, 7
    %v2378 = vsub.s32 0, %v2377
    %v2379 = vrot.slane %v1705, %v2378
    %v2380 = vlaneseq
    %v2381 = vshrl.u32 %v2380, 7
    %v2382 = vsub.s32 0, %v2381
    %v2383 = vrot.slane %v1706, %v2382
    %v2384 = vlaneseq
    %v2385 = vshrl.u32 %v2384, 7
    %v2386 = vsub.s32 0, %v2385
    %v2387 = vrot.slane %v1707, %v2386
    %v2388 = vlaneseq
    %v2389 = vshrl.u32 %v2388, 7
    %v2390 = vsub.s32 0, %v2389
    %v2391 = vrot.slane %v1708, %v2390
    %v2392 = vlaneseq
    %v2393 = vshrl.u32 %v2392, 7
    %v2394 = vsub.s32 0, %v2393
    %v2395 = vrot.slane %v1709, %v2394
    %v2396 = vlaneseq
    %v2397 = vshrl.u32 %v2396, 7
    %v2398 = vsub.s32 0, %v2397
    %v2399 = vrot.slane %v1710, %v2398
    %v2400 = vlaneseq
    %v2401 = vshrl.u32 %v2400, 7
    %v2402 = vsub.s32 0, %v2401
    %v2403 = vrot.slane %v1711, %v2402
    %vm2404 = vcmask 1041409
    %v2405 = vsel %vm2404, %v1899, %v1895
    %vm2406 = vcmask 1042434
    %v2407 = vsel %vm2406, %v1903, %v2405
    %vm2408 = vcmask 1043459
    %v2409 = vsel %vm2408, %v1907, %v2407
    %vm2410 = vcmask 1044484
    %v2411 = vsel %vm2410, %v1911, %v2409
    %vm2412 = vcmask 1045509
    %v2413 = vsel %vm2412, %v1915, %v2411
    %vm2414 = vcmask 1046534
    %v2415 = vsel %vm2414, %v1919, %v2413
    %vm2416 = vcmask 1047559
    %v2417 = vsel %vm2416, %v1923, %v2415
    %v2418 = vsel %vm2404, %v1931, %v1927
    %v2419 = vsel %vm2406, %v1935, %v2418
    %v2420 = vsel %vm2408, %v1939, %v2419
    %v2421 = vsel %vm2410, %v1943, %v2420
    %v2422 = vsel %vm2412, %v1947, %v2421
    %v2423 = vsel %vm2414, %v1951, %v2422
    %v2424 = vsel %vm2416, %v1955, %v2423
    %v2425 = vsel %vm2404, %v1963, %v1959
    %v2426 = vsel %vm2406, %v1967, %v2425
    %v2427 = vsel %vm2408, %v1971, %v2426
    %v2428 = vsel %vm2410, %v1975, %v2427
    %v2429 = vsel %vm2412, %v1979, %v2428
    %v2430 = vsel %vm2414, %v1983, %v2429
    %v2431 = vsel %vm2416, %v1987, %v2430
    %v2432 = vsel %vm2404, %v1995, %v1991
    %v2433 = vsel %vm2406, %v1999, %v2432
    %v2434 = vsel %vm2408, %v2003, %v2433
    %v2435 = vsel %vm2410, %v2007, %v2434
    %v2436 = vsel %vm2412, %v2011, %v2435
    %v2437 = vsel %vm2414, %v2015, %v2436
    %v2438 = vsel %vm2416, %v2019, %v2437
    %v2439 = vsel %vm2404, %v2027, %v2023
    %v2440 = vsel %vm2406, %v2031, %v2439
    %v2441 = vsel %vm2408, %v2035, %v2440
    %v2442 = vsel %vm2410, %v2039, %v2441
    %v2443 = vsel %vm2412, %v2043, %v2442
    %v2444 = vsel %vm2414, %v2047, %v2443
    %v2445 = vsel %vm2416, %v2051, %v2444
    %v2446 = vsel %vm2404, %v2059, %v2055
    %v2447 = vsel %vm2406, %v2063, %v2446
    %v2448 = vsel %vm2408, %v2067, %v2447
    %v2449 = vsel %vm2410, %v2071, %v2448
    %v2450 = vsel %vm2412, %v2075, %v2449
    %v2451 = vsel %vm2414, %v2079, %v2450
    %v2452 = vsel %vm2416, %v2083, %v2451
    %v2453 = vsel %vm2404, %v2091, %v2087
    %v2454 = vsel %vm2406, %v2095, %v2453
    %v2455 = vsel %vm2408, %v2099, %v2454
    %v2456 = vsel %vm2410, %v2103, %v2455
    %v2457 = vsel %vm2412, %v2107, %v2456
    %v2458 = vsel %vm2414, %v2111, %v2457
    %v2459 = vsel %vm2416, %v2115, %v2458
    %v2460 = vsel %vm2404, %v2123, %v2119
    %v2461 = vsel %vm2406, %v2127, %v2460
    %v2462 = vsel %vm2408, %v2131, %v2461
    %v2463 = vsel %vm2410, %v2135, %v2462
    %v2464 = vsel %vm2412, %v2139, %v2463
    %v2465 = vsel %vm2414, %v2143, %v2464
    %v2466 = vsel %vm2416, %v2147, %v2465
    %v2467 = vsel %vm2404, %v2155, %v2151
    %v2468 = vsel %vm2406, %v2159, %v2467
    %v2469 = vsel %vm2408, %v2163, %v2468
    %v2470 = vsel %vm2410, %v2167, %v2469
    %v2471 = vsel %vm2412, %v2171, %v2470
    %v2472 = vsel %vm2414, %v2175, %v2471
    %v2473 = vsel %vm2416, %v2179, %v2472
    %v2474 = vsel %vm2404, %v2187, %v2183
    %v2475 = vsel %vm2406, %v2191, %v2474
    %v2476 = vsel %vm2408, %v2195, %v2475
    %v2477 = vsel %vm2410, %v2199, %v2476
    %v2478 = vsel %vm2412, %v2203, %v2477
    %v2479 = vsel %vm2414, %v2207, %v2478
    %v2480 = vsel %vm2416, %v2211, %v2479
    %v2481 = vsel %vm2404, %v2219, %v2215
    %v2482 = vsel %vm2406, %v2223, %v2481
    %v2483 = vsel %vm2408, %v2227, %v2482
    %v2484 = vsel %vm2410, %v2231, %v2483
    %v2485 = vsel %vm2412, %v2235, %v2484
    %v2486 = vsel %vm2414, %v2239, %v2485
    %v2487 = vsel %vm2416, %v2243, %v2486
    %v2488 = vsel %vm2404, %v2251, %v2247
    %v2489 = vsel %vm2406, %v2255, %v2488
    %v2490 = vsel %vm2408, %v2259, %v2489
    %v2491 = vsel %vm2410, %v2263, %v2490
    %v2492 = vsel %vm2412, %v2267, %v2491
    %v2493 = vsel %vm2414, %v2271, %v2492
    %v2494 = vsel %vm2416, %v2275, %v2493
    %v2495 = vsel %vm2404, %v2283, %v2279
    %v2496 = vsel %vm2406, %v2287, %v2495
    %v2497 = vsel %vm2408, %v2291, %v2496
    %v2498 = vsel %vm2410, %v2295, %v2497
    %v2499 = vsel %vm2412, %v2299, %v2498
    %v2500 = vsel %vm2414, %v2303, %v2499
    %v2501 = vsel %vm2416, %v2307, %v2500
    %v2502 = vsel %vm2404, %v2315, %v2311
    %v2503 = vsel %vm2406, %v2319, %v2502
    %v2504 = vsel %vm2408, %v2323, %v2503
    %v2505 = vsel %vm2410, %v2327, %v2504
    %v2506 = vsel %vm2412, %v2331, %v2505
    %v2507 = vsel %vm2414, %v2335, %v2506
    %v2508 = vsel %vm2416, %v2339, %v2507
    %v2509 = vsel %vm2404, %v2347, %v2343
    %v2510 = vsel %vm2406, %v2351, %v2509
    %v2511 = vsel %vm2408, %v2355, %v2510
    %v2512 = vsel %vm2410, %v2359, %v2511
    %v2513 = vsel %vm2412, %v2363, %v2512
    %v2514 = vsel %vm2414, %v2367, %v2513
    %v2515 = vsel %vm2416, %v2371, %v2514
    %v2516 = vsel %vm2404, %v2379, %v2375
    %v2517 = vsel %vm2406, %v2383, %v2516
    %v2518 = vsel %vm2408, %v2387, %v2517
    %v2519 = vsel %vm2410, %v2391, %v2518
    %v2520 = vsel %vm2412, %v2395, %v2519
    %v2521 = vsel %vm2414, %v2399, %v2520
    %v2522 = vsel %vm2416, %v2403, %v2521
    %s2539 = scalar_lea.vmem [#allocation2], 16
    %2540 = vst.msk [vmem:[%s2539 + $0x1] sm:$0xff] %vm1712, %v2417
    %2541 = vst.msk [vmem:[%s2539 + $0x11] sm:$0xff] %vm1712, %v2424
    %2542 = vst.msk [vmem:[%s2539 + $0x21] sm:$0xff] %vm1712, %v2431
    %2543 = vst.msk [vmem:[%s2539 + $0x31] sm:$0xff] %vm1712, %v2438
    %2544 = vst.msk [vmem:[%s2539 + $0x41] sm:$0xff] %vm1712, %v2445
    %2545 = vst.msk [vmem:[%s2539 + $0x51] sm:$0xff] %vm1712, %v2452
    %2546 = vst.msk [vmem:[%s2539 + $0x61] sm:$0xff] %vm1712, %v2459
    %2547 = vst.msk [vmem:[%s2539 + $0x71] sm:$0xff] %vm1712, %v2466
    %2548 = vst.msk [vmem:[%s2539 + $0xa1] sm:$0xff] %vm1712, %v2473
    %2549 = vst.msk [vmem:[%s2539 + $0xb1] sm:$0xff] %vm1712, %v2480
    %2550 = vst.msk [vmem:[%s2539 + $0xc1] sm:$0xff] %vm1712, %v2487
    %2551 = vst.msk [vmem:[%s2539 + $0xd1] sm:$0xff] %vm1712, %v2494
    %2552 = vst.msk [vmem:[%s2539 + $0xe1] sm:$0xff] %vm1712, %v2501
    %2553 = vst.msk [vmem:[%s2539 + $0xf1] sm:$0xff] %vm1712, %v2508
    %2554 = vst.msk [vmem:[%s2539 + $0x101] sm:$0xff] %vm1712, %v2515
    %2555 = vst.msk [vmem:[%s2539 + $0x111] sm:$0xff] %vm1712, %v2522
    %v2556 = vld [vmem:[#allocation2] sm:$0xff]
    %v2557 = vld [vmem:[#allocation2 + $0x10] sm:$0xff]
    %v2558 = vld [vmem:[#allocation2 + $0x20] sm:$0xff]
    %v2559 = vld [vmem:[#allocation2 + $0x30] sm:$0xff]
    %v2560 = vld [vmem:[#allocation2 + $0x40] sm:$0xff]
    %v2561 = vld [vmem:[#allocation2 + $0x50] sm:$0xff]
    %v2562 = vld [vmem:[#allocation2 + $0x60] sm:$0xff]
    %v2563 = vld [vmem:[#allocation2 + $0x70] sm:$0xff]
    %v2564 = vld [vmem:[#allocation2 + $0xa0] sm:$0xff]
    %v2565 = vld [vmem:[#allocation2 + $0xb0] sm:$0xff]
    %v2566 = vld [vmem:[#allocation2 + $0xc0] sm:$0xff]
    %v2567 = vld [vmem:[#allocation2 + $0xd0] sm:$0xff]
    %v2568 = vld [vmem:[#allocation2 + $0xe0] sm:$0xff]
    %v2569 = vld [vmem:[#allocation2 + $0xf0] sm:$0xff]
    %v2570 = vld [vmem:[#allocation2 + $0x100] sm:$0xff]
    %v2571 = vld [vmem:[#allocation2 + $0x110] sm:$0xff]
    %v2572 = vld [vmem:[#allocation2 + $0x1] sm:$0xff]
    %v2573 = vld [vmem:[#allocation2 + $0x11] sm:$0xff]
    %v2574 = vld [vmem:[#allocation2 + $0x21] sm:$0xff]
    %v2575 = vld [vmem:[#allocation2 + $0x31] sm:$0xff]
    %v2576 = vld [vmem:[#allocation2 + $0x41] sm:$0xff]
    %v2577 = vld [vmem:[#allocation2 + $0x51] sm:$0xff]
    %v2578 = vld [vmem:[#allocation2 + $0x61] sm:$0xff]
    %v2579 = vld [vmem:[#allocation2 + $0x71] sm:$0xff]
    %v2580 = vld [vmem:[#allocation2 + $0xa1] sm:$0xff]
    %v2581 = vld [vmem:[#allocation2 + $0xb1] sm:$0xff]
    %v2582 = vld [vmem:[#allocation2 + $0xc1] sm:$0xff]
    %v2583 = vld [vmem:[#allocation2 + $0xd1] sm:$0xff]
    %v2584 = vld [vmem:[#allocation2 + $0xe1] sm:$0xff]
    %v2585 = vld [vmem:[#allocation2 + $0xf1] sm:$0xff]
    %v2586 = vld [vmem:[#allocation2 + $0x101] sm:$0xff]
    %v2587 = vld [vmem:[#allocation2 + $0x111] sm:$0xff]
    %v2588 = vld [vmem:[#allocation2 + $0x2] sm:$0xff]
    %v2589 = vld [vmem:[#allocation2 + $0x12] sm:$0xff]
    %v2590 = vld [vmem:[#allocation2 + $0x22] sm:$0xff]
    %v2591 = vld [vmem:[#allocation2 + $0x32] sm:$0xff]
    %v2592 = vld [vmem:[#allocation2 + $0x42] sm:$0xff]
    %v2593 = vld [vmem:[#allocation2 + $0x52] sm:$0xff]
    %v2594 = vld [vmem:[#allocation2 + $0x62] sm:$0xff]
    %v2595 = vld [vmem:[#allocation2 + $0x72] sm:$0xff]
    %v2596 = vld [vmem:[#allocation2 + $0xa2] sm:$0xff]
    %v2597 = vld [vmem:[#allocation2 + $0xb2] sm:$0xff]
    %v2598 = vld [vmem:[#allocation2 + $0xc2] sm:$0xff]
    %v2599 = vld [vmem:[#allocation2 + $0xd2] sm:$0xff]
    %v2600 = vld [vmem:[#allocation2 + $0xe2] sm:$0xff]
    %v2601 = vld [vmem:[#allocation2 + $0xf2] sm:$0xff]
    %v2602 = vld [vmem:[#allocation2 + $0x102] sm:$0xff]
    %v2603 = vld [vmem:[#allocation2 + $0x112] sm:$0xff]
    %v2604 = vld [vmem:[%s2539] sm:$0xff]
    %v2605 = vld [vmem:[%s2539 + $0x10] sm:$0xff]
    %v2606 = vld [vmem:[%s2539 + $0x20] sm:$0xff]
    %v2607 = vld [vmem:[%s2539 + $0x30] sm:$0xff]
    %v2608 = vld [vmem:[%s2539 + $0x40] sm:$0xff]
    %v2609 = vld [vmem:[%s2539 + $0x50] sm:$0xff]
    %v2610 = vld [vmem:[%s2539 + $0x60] sm:$0xff]
    %v2611 = vld [vmem:[%s2539 + $0x70] sm:$0xff]
    %v2612 = vld [vmem:[%s2539 + $0xa0] sm:$0xff]
    %v2613 = vld [vmem:[%s2539 + $0xb0] sm:$0xff]
    %v2614 = vld [vmem:[%s2539 + $0xc0] sm:$0xff]
    %v2615 = vld [vmem:[%s2539 + $0xd0] sm:$0xff]
    %v2616 = vld [vmem:[%s2539 + $0xe0] sm:$0xff]
    %v2617 = vld [vmem:[%s2539 + $0xf0] sm:$0xff]
    %v2618 = vld [vmem:[%s2539 + $0x100] sm:$0xff]
    %v2619 = vld [vmem:[%s2539 + $0x110] sm:$0xff]
    %v2620 = vld [vmem:[%s2539 + $0x1] sm:$0xff]
    %v2621 = vld [vmem:[%s2539 + $0x11] sm:$0xff]
    %v2622 = vld [vmem:[%s2539 + $0x21] sm:$0xff]
    %v2623 = vld [vmem:[%s2539 + $0x31] sm:$0xff]
    %v2624 = vld [vmem:[%s2539 + $0x41] sm:$0xff]
    %v2625 = vld [vmem:[%s2539 + $0x51] sm:$0xff]
    %v2626 = vld [vmem:[%s2539 + $0x61] sm:$0xff]
    %v2627 = vld [vmem:[%s2539 + $0x71] sm:$0xff]
    %v2628 = vld [vmem:[%s2539 + $0xa1] sm:$0xff]
    %v2629 = vld [vmem:[%s2539 + $0xb1] sm:$0xff]
    %v2630 = vld [vmem:[%s2539 + $0xc1] sm:$0xff]
    %v2631 = vld [vmem:[%s2539 + $0xd1] sm:$0xff]
    %v2632 = vld [vmem:[%s2539 + $0xe1] sm:$0xff]
    %v2633 = vld [vmem:[%s2539 + $0xf1] sm:$0xff]
    %v2634 = vld [vmem:[%s2539 + $0x101] sm:$0xff]
    %v2635 = vld [vmem:[%s2539 + $0x111] sm:$0xff]
    %v2636 = vld [vmem:[%s2539 + $0x2] sm:$0xff]
    %v2637 = vld [vmem:[%s2539 + $0x12] sm:$0xff]
    %v2638 = vld [vmem:[%s2539 + $0x22] sm:$0xff]
    %v2639 = vld [vmem:[%s2539 + $0x32] sm:$0xff]
    %v2640 = vld [vmem:[%s2539 + $0x42] sm:$0xff]
    %v2641 = vld [vmem:[%s2539 + $0x52] sm:$0xff]
    %v2642 = vld [vmem:[%s2539 + $0x62] sm:$0xff]
    %v2643 = vld [vmem:[%s2539 + $0x72] sm:$0xff]
    %v2644 = vld [vmem:[%s2539 + $0xa2] sm:$0xff]
    %v2645 = vld [vmem:[%s2539 + $0xb2] sm:$0xff]
    %v2646 = vld [vmem:[%s2539 + $0xc2] sm:$0xff]
    %v2647 = vld [vmem:[%s2539 + $0xd2] sm:$0xff]
    %v2648 = vld [vmem:[%s2539 + $0xe2] sm:$0xff]
    %v2649 = vld [vmem:[%s2539 + $0xf2] sm:$0xff]
    %v2650 = vld [vmem:[%s2539 + $0x102] sm:$0xff]
    %v2651 = vld [vmem:[%s2539 + $0x112] sm:$0xff]
    %s2652 = scalar_lea.vmem [#allocation2], 32
    %v2653 = vld [vmem:[%s2652] sm:$0xff]
    %v2654 = vld [vmem:[%s2652 + $0x10] sm:$0xff]
    %v2655 = vld [vmem:[%s2652 + $0x20] sm:$0xff]
    %v2656 = vld [vmem:[%s2652 + $0x30] sm:$0xff]
    %v2657 = vld [vmem:[%s2652 + $0x40] sm:$0xff]
    %v2658 = vld [vmem:[%s2652 + $0x50] sm:$0xff]
    %v2659 = vld [vmem:[%s2652 + $0x60] sm:$0xff]
    %v2660 = vld [vmem:[%s2652 + $0x70] sm:$0xff]
    %v2661 = vld [vmem:[%s2652 + $0xa0] sm:$0xff]
    %v2662 = vld [vmem:[%s2652 + $0xb0] sm:$0xff]
    %v2663 = vld [vmem:[%s2652 + $0xc0] sm:$0xff]
    %v2664 = vld [vmem:[%s2652 + $0xd0] sm:$0xff]
    %v2665 = vld [vmem:[%s2652 + $0xe0] sm:$0xff]
    %v2666 = vld [vmem:[%s2652 + $0xf0] sm:$0xff]
    %v2667 = vld [vmem:[%s2652 + $0x100] sm:$0xff]
    %v2668 = vld [vmem:[%s2652 + $0x110] sm:$0xff]
    %v2669 = vld [vmem:[%s2652 + $0x1] sm:$0xff]
    %v2670 = vld [vmem:[%s2652 + $0x11] sm:$0xff]
    %v2671 = vld [vmem:[%s2652 + $0x21] sm:$0xff]
    %v2672 = vld [vmem:[%s2652 + $0x31] sm:$0xff]
    %v2673 = vld [vmem:[%s2652 + $0x41] sm:$0xff]
    %v2674 = vld [vmem:[%s2652 + $0x51] sm:$0xff]
    %v2675 = vld [vmem:[%s2652 + $0x61] sm:$0xff]
    %v2676 = vld [vmem:[%s2652 + $0x71] sm:$0xff]
    %v2677 = vld [vmem:[%s2652 + $0xa1] sm:$0xff]
    %v2678 = vld [vmem:[%s2652 + $0xb1] sm:$0xff]
    %v2679 = vld [vmem:[%s2652 + $0xc1] sm:$0xff]
    %v2680 = vld [vmem:[%s2652 + $0xd1] sm:$0xff]
    %v2681 = vld [vmem:[%s2652 + $0xe1] sm:$0xff]
    %v2682 = vld [vmem:[%s2652 + $0xf1] sm:$0xff]
    %v2683 = vld [vmem:[%s2652 + $0x101] sm:$0xff]
    %v2684 = vld [vmem:[%s2652 + $0x111] sm:$0xff]
    %v2685 = vld [vmem:[%s2652 + $0x2] sm:$0xff]
    %v2686 = vld [vmem:[%s2652 + $0x12] sm:$0xff]
    %v2687 = vld [vmem:[%s2652 + $0x22] sm:$0xff]
    %v2688 = vld [vmem:[%s2652 + $0x32] sm:$0xff]
    %v2689 = vld [vmem:[%s2652 + $0x42] sm:$0xff]
    %v2690 = vld [vmem:[%s2652 + $0x52] sm:$0xff]
    %v2691 = vld [vmem:[%s2652 + $0x62] sm:$0xff]
    %v2692 = vld [vmem:[%s2652 + $0x72] sm:$0xff]
    %v2693 = vld [vmem:[%s2652 + $0xa2] sm:$0xff]
    %v2694 = vld [vmem:[%s2652 + $0xb2] sm:$0xff]
    %v2695 = vld [vmem:[%s2652 + $0xc2] sm:$0xff]
    %v2696 = vld [vmem:[%s2652 + $0xd2] sm:$0xff]
    %v2697 = vld [vmem:[%s2652 + $0xe2] sm:$0xff]
    %v2698 = vld [vmem:[%s2652 + $0xf2] sm:$0xff]
    %v2699 = vld [vmem:[%s2652 + $0x102] sm:$0xff]
    %v2700 = vld [vmem:[%s2652 + $0x112] sm:$0xff]
    %2717 = vrot.lane.b32.xlu0 %v2572, 4
    %v2718 = vpop.permute.xlu0 %2717
    %2719 = vrot.lane.b32.xlu0 %v2573, 4
    %v2720 = vpop.permute.xlu0 %2719
    %2721 = vrot.lane.b32.xlu0 %v2574, 4
    %v2722 = vpop.permute.xlu0 %2721
    %2723 = vrot.lane.b32.xlu0 %v2575, 4
    %v2724 = vpop.permute.xlu0 %2723
    %2725 = vrot.lane.b32.xlu0 %v2576, 4
    %v2726 = vpop.permute.xlu0 %2725
    %2727 = vrot.lane.b32.xlu0 %v2577, 4
    %v2728 = vpop.permute.xlu0 %2727
    %2729 = vrot.lane.b32.xlu0 %v2578, 4
    %v2730 = vpop.permute.xlu0 %2729
    %2731 = vrot.lane.b32.xlu0 %v2579, 4
    %v2732 = vpop.permute.xlu0 %2731
    %2733 = vrot.lane.b32.xlu0 %v2580, 4
    %v2734 = vpop.permute.xlu0 %2733
    %2735 = vrot.lane.b32.xlu0 %v2581, 4
    %v2736 = vpop.permute.xlu0 %2735
    %2737 = vrot.lane.b32.xlu0 %v2582, 4
    %v2738 = vpop.permute.xlu0 %2737
    %2739 = vrot.lane.b32.xlu0 %v2583, 4
    %v2740 = vpop.permute.xlu0 %2739
    %2741 = vrot.lane.b32.xlu0 %v2584, 4
    %v2742 = vpop.permute.xlu0 %2741
    %2743 = vrot.lane.b32.xlu0 %v2585, 4
    %v2744 = vpop.permute.xlu0 %2743
    %2745 = vrot.lane.b32.xlu0 %v2586, 4
    %v2746 = vpop.permute.xlu0 %2745
    %2747 = vrot.lane.b32.xlu0 %v2587, 4
    %v2748 = vpop.permute.xlu0 %2747
    %2781 = vrot.lane.b32.xlu0 %v2588, 8
    %v2782 = vpop.permute.xlu0 %2781
    %2783 = vrot.lane.b32.xlu0 %v2589, 8
    %v2784 = vpop.permute.xlu0 %2783
    %2785 = vrot.lane.b32.xlu0 %v2590, 8
    %v2786 = vpop.permute.xlu0 %2785
    %2787 = vrot.lane.b32.xlu0 %v2591, 8
    %v2788 = vpop.permute.xlu0 %2787
    %2789 = vrot.lane.b32.xlu0 %v2592, 8
    %v2790 = vpop.permute.xlu0 %2789
    %2791 = vrot.lane.b32.xlu0 %v2593, 8
    %v2792 = vpop.permute.xlu0 %2791
    %2793 = vrot.lane.b32.xlu0 %v2594, 8
    %v2794 = vpop.permute.xlu0 %2793
    %2795 = vrot.lane.b32.xlu0 %v2595, 8
    %v2796 = vpop.permute.xlu0 %2795
    %2797 = vrot.lane.b32.xlu0 %v2596, 8
    %v2798 = vpop.permute.xlu0 %2797
    %2799 = vrot.lane.b32.xlu0 %v2597, 8
    %v2800 = vpop.permute.xlu0 %2799
    %2801 = vrot.lane.b32.xlu0 %v2598, 8
    %v2802 = vpop.permute.xlu0 %2801
    %2803 = vrot.lane.b32.xlu0 %v2599, 8
    %v2804 = vpop.permute.xlu0 %2803
    %2805 = vrot.lane.b32.xlu0 %v2600, 8
    %v2806 = vpop.permute.xlu0 %2805
    %2807 = vrot.lane.b32.xlu0 %v2601, 8
    %v2808 = vpop.permute.xlu0 %2807
    %2809 = vrot.lane.b32.xlu0 %v2602, 8
    %v2810 = vpop.permute.xlu0 %2809
    %2811 = vrot.lane.b32.xlu0 %v2603, 8
    %v2812 = vpop.permute.xlu0 %2811
    %2845 = vrot.lane.b32.xlu0 %v2604, 12
    %v2846 = vpop.permute.xlu0 %2845
    %2847 = vrot.lane.b32.xlu0 %v2605, 12
    %v2848 = vpop.permute.xlu0 %2847
    %2849 = vrot.lane.b32.xlu0 %v2606, 12
    %v2850 = vpop.permute.xlu0 %2849
    %2851 = vrot.lane.b32.xlu0 %v2607, 12
    %v2852 = vpop.permute.xlu0 %2851
    %2853 = vrot.lane.b32.xlu0 %v2608, 12
    %v2854 = vpop.permute.xlu0 %2853
    %2855 = vrot.lane.b32.xlu0 %v2609, 12
    %v2856 = vpop.permute.xlu0 %2855
    %2857 = vrot.lane.b32.xlu0 %v2610, 12
    %v2858 = vpop.permute.xlu0 %2857
    %2859 = vrot.lane.b32.xlu0 %v2611, 12
    %v2860 = vpop.permute.xlu0 %2859
    %2861 = vrot.lane.b32.xlu0 %v2612, 12
    %v2862 = vpop.permute.xlu0 %2861
    %2863 = vrot.lane.b32.xlu0 %v2613, 12
    %v2864 = vpop.permute.xlu0 %2863
    %2865 = vrot.lane.b32.xlu0 %v2614, 12
    %v2866 = vpop.permute.xlu0 %2865
    %2867 = vrot.lane.b32.xlu0 %v2615, 12
    %v2868 = vpop.permute.xlu0 %2867
    %2869 = vrot.lane.b32.xlu0 %v2616, 12
    %v2870 = vpop.permute.xlu0 %2869
    %2871 = vrot.lane.b32.xlu0 %v2617, 12
    %v2872 = vpop.permute.xlu0 %2871
    %2873 = vrot.lane.b32.xlu0 %v2618, 12
    %v2874 = vpop.permute.xlu0 %2873
    %2875 = vrot.lane.b32.xlu0 %v2619, 12
    %v2876 = vpop.permute.xlu0 %2875
    %2909 = vrot.lane.b32.xlu0 %v2620, 16
    %v2910 = vpop.permute.xlu0 %2909
    %2911 = vrot.lane.b32.xlu0 %v2621, 16
    %v2912 = vpop.permute.xlu0 %2911
    %2913 = vrot.lane.b32.xlu0 %v2622, 16
    %v2914 = vpop.permute.xlu0 %2913
    %2915 = vrot.lane.b32.xlu0 %v2623, 16
    %v2916 = vpop.permute.xlu0 %2915
    %2917 = vrot.lane.b32.xlu0 %v2624, 16
    %v2918 = vpop.permute.xlu0 %2917
    %2919 = vrot.lane.b32.xlu0 %v2625, 16
    %v2920 = vpop.permute.xlu0 %2919
    %2921 = vrot.lane.b32.xlu0 %v2626, 16
    %v2922 = vpop.permute.xlu0 %2921
    %2923 = vrot.lane.b32.xlu0 %v2627, 16
    %v2924 = vpop.permute.xlu0 %2923
    %2925 = vrot.lane.b32.xlu0 %v2628, 16
    %v2926 = vpop.permute.xlu0 %2925
    %2927 = vrot.lane.b32.xlu0 %v2629, 16
    %v2928 = vpop.permute.xlu0 %2927
    %2929 = vrot.lane.b32.xlu0 %v2630, 16
    %v2930 = vpop.permute.xlu0 %2929
    %2931 = vrot.lane.b32.xlu0 %v2631, 16
    %v2932 = vpop.permute.xlu0 %2931
    %2933 = vrot.lane.b32.xlu0 %v2632, 16
    %v2934 = vpop.permute.xlu0 %2933
    %2935 = vrot.lane.b32.xlu0 %v2633, 16
    %v2936 = vpop.permute.xlu0 %2935
    %2937 = vrot.lane.b32.xlu0 %v2634, 16
    %v2938 = vpop.permute.xlu0 %2937
    %2939 = vrot.lane.b32.xlu0 %v2635, 16
    %v2940 = vpop.permute.xlu0 %2939
    %2973 = vrot.lane.b32.xlu0 %v2636, 20
    %v2974 = vpop.permute.xlu0 %2973
    %2975 = vrot.lane.b32.xlu0 %v2637, 20
    %v2976 = vpop.permute.xlu0 %2975
    %2977 = vrot.lane.b32.xlu0 %v2638, 20
    %v2978 = vpop.permute.xlu0 %2977
    %2979 = vrot.lane.b32.xlu0 %v2639, 20
    %v2980 = vpop.permute.xlu0 %2979
    %2981 = vrot.lane.b32.xlu0 %v2640, 20
    %v2982 = vpop.permute.xlu0 %2981
    %2983 = vrot.lane.b32.xlu0 %v2641, 20
    %v2984 = vpop.permute.xlu0 %2983
    %2985 = vrot.lane.b32.xlu0 %v2642, 20
    %v2986 = vpop.permute.xlu0 %2985
    %2987 = vrot.lane.b32.xlu0 %v2643, 20
    %v2988 = vpop.permute.xlu0 %2987
    %2989 = vrot.lane.b32.xlu0 %v2644, 20
    %v2990 = vpop.permute.xlu0 %2989
    %2991 = vrot.lane.b32.xlu0 %v2645, 20
    %v2992 = vpop.permute.xlu0 %2991
    %2993 = vrot.lane.b32.xlu0 %v2646, 20
    %v2994 = vpop.permute.xlu0 %2993
    %2995 = vrot.lane.b32.xlu0 %v2647, 20
    %v2996 = vpop.permute.xlu0 %2995
    %2997 = vrot.lane.b32.xlu0 %v2648, 20
    %v2998 = vpop.permute.xlu0 %2997
    %2999 = vrot.lane.b32.xlu0 %v2649, 20
    %v3000 = vpop.permute.xlu0 %2999
    %3001 = vrot.lane.b32.xlu0 %v2650, 20
    %v3002 = vpop.permute.xlu0 %3001
    %3003 = vrot.lane.b32.xlu0 %v2651, 20
    %v3004 = vpop.permute.xlu0 %3003
    %3037 = vrot.lane.b32.xlu0 %v2653, 24
    %v3038 = vpop.permute.xlu0 %3037
    %3039 = vrot.lane.b32.xlu0 %v2654, 24
    %v3040 = vpop.permute.xlu0 %3039
    %3041 = vrot.lane.b32.xlu0 %v2655, 24
    %v3042 = vpop.permute.xlu0 %3041
    %3043 = vrot.lane.b32.xlu0 %v2656, 24
    %v3044 = vpop.permute.xlu0 %3043
    %3045 = vrot.lane.b32.xlu0 %v2657, 24
    %v3046 = vpop.permute.xlu0 %3045
    %3047 = vrot.lane.b32.xlu0 %v2658, 24
    %v3048 = vpop.permute.xlu0 %3047
    %3049 = vrot.lane.b32.xlu0 %v2659, 24
    %v3050 = vpop.permute.xlu0 %3049
    %3051 = vrot.lane.b32.xlu0 %v2660, 24
    %v3052 = vpop.permute.xlu0 %3051
    %3053 = vrot.lane.b32.xlu0 %v2661, 24
    %v3054 = vpop.permute.xlu0 %3053
    %3055 = vrot.lane.b32.xlu0 %v2662, 24
    %v3056 = vpop.permute.xlu0 %3055
    %3057 = vrot.lane.b32.xlu0 %v2663, 24
    %v3058 = vpop.permute.xlu0 %3057
    %3059 = vrot.lane.b32.xlu0 %v2664, 24
    %v3060 = vpop.permute.xlu0 %3059
    %3061 = vrot.lane.b32.xlu0 %v2665, 24
    %v3062 = vpop.permute.xlu0 %3061
    %3063 = vrot.lane.b32.xlu0 %v2666, 24
    %v3064 = vpop.permute.xlu0 %3063
    %3065 = vrot.lane.b32.xlu0 %v2667, 24
    %v3066 = vpop.permute.xlu0 %3065
    %3067 = vrot.lane.b32.xlu0 %v2668, 24
    %v3068 = vpop.permute.xlu0 %3067
    %3101 = vrot.lane.b32.xlu0 %v2669, 28
    %v3102 = vpop.permute.xlu0 %3101
    %3103 = vrot.lane.b32.xlu0 %v2670, 28
    %v3104 = vpop.permute.xlu0 %3103
    %3105 = vrot.lane.b32.xlu0 %v2671, 28
    %v3106 = vpop.permute.xlu0 %3105
    %3107 = vrot.lane.b32.xlu0 %v2672, 28
    %v3108 = vpop.permute.xlu0 %3107
    %3109 = vrot.lane.b32.xlu0 %v2673, 28
    %v3110 = vpop.permute.xlu0 %3109
    %3111 = vrot.lane.b32.xlu0 %v2674, 28
    %v3112 = vpop.permute.xlu0 %3111
    %3113 = vrot.lane.b32.xlu0 %v2675, 28
    %v3114 = vpop.permute.xlu0 %3113
    %3115 = vrot.lane.b32.xlu0 %v2676, 28
    %v3116 = vpop.permute.xlu0 %3115
    %3117 = vrot.lane.b32.xlu0 %v2677, 28
    %v3118 = vpop.permute.xlu0 %3117
    %3119 = vrot.lane.b32.xlu0 %v2678, 28
    %v3120 = vpop.permute.xlu0 %3119
    %3121 = vrot.lane.b32.xlu0 %v2679, 28
    %v3122 = vpop.permute.xlu0 %3121
    %3123 = vrot.lane.b32.xlu0 %v2680, 28
    %v3124 = vpop.permute.xlu0 %3123
    %3125 = vrot.lane.b32.xlu0 %v2681, 28
    %v3126 = vpop.permute.xlu0 %3125
    %3127 = vrot.lane.b32.xlu0 %v2682, 28
    %v3128 = vpop.permute.xlu0 %3127
    %3129 = vrot.lane.b32.xlu0 %v2683, 28
    %v3130 = vpop.permute.xlu0 %3129
    %3131 = vrot.lane.b32.xlu0 %v2684, 28
    %v3132 = vpop.permute.xlu0 %3131
    %3165 = vrot.lane.b32.xlu0 %v2685, 32
    %v3166 = vpop.permute.xlu0 %3165
    %3167 = vrot.lane.b32.xlu0 %v2686, 32
    %v3168 = vpop.permute.xlu0 %3167
    %3169 = vrot.lane.b32.xlu0 %v2687, 32
    %v3170 = vpop.permute.xlu0 %3169
    %3171 = vrot.lane.b32.xlu0 %v2688, 32
    %v3172 = vpop.permute.xlu0 %3171
    %3173 = vrot.lane.b32.xlu0 %v2689, 32
    %v3174 = vpop.permute.xlu0 %3173
    %3175 = vrot.lane.b32.xlu0 %v2690, 32
    %v3176 = vpop.permute.xlu0 %3175
    %3177 = vrot.lane.b32.xlu0 %v2691, 32
    %v3178 = vpop.permute.xlu0 %3177
    %3179 = vrot.lane.b32.xlu0 %v2692, 32
    %v3180 = vpop.permute.xlu0 %3179
    %3181 = vrot.lane.b32.xlu0 %v2693, 32
    %v3182 = vpop.permute.xlu0 %3181
    %3183 = vrot.lane.b32.xlu0 %v2694, 32
    %v3184 = vpop.permute.xlu0 %3183
    %3185 = vrot.lane.b32.xlu0 %v2695, 32
    %v3186 = vpop.permute.xlu0 %3185
    %3187 = vrot.lane.b32.xlu0 %v2696, 32
    %v3188 = vpop.permute.xlu0 %3187
    %3189 = vrot.lane.b32.xlu0 %v2697, 32
    %v3190 = vpop.permute.xlu0 %3189
    %3191 = vrot.lane.b32.xlu0 %v2698, 32
    %v3192 = vpop.permute.xlu0 %3191
    %3193 = vrot.lane.b32.xlu0 %v2699, 32
    %v3194 = vpop.permute.xlu0 %3193
    %3195 = vrot.lane.b32.xlu0 %v2700, 32
    %v3196 = vpop.permute.xlu0 %3195
    %v3213 = vsel %vm1712, %v2556, %v2718
    %v3214 = vsel %vm1712, %v2557, %v2720
    %v3215 = vsel %vm1712, %v2558, %v2722
    %v3216 = vsel %vm1712, %v2559, %v2724
    %v3217 = vsel %vm1712, %v2560, %v2726
    %v3218 = vsel %vm1712, %v2561, %v2728
    %v3219 = vsel %vm1712, %v2562, %v2730
    %v3220 = vsel %vm1712, %v2563, %v2732
    %v3221 = vsel %vm1712, %v2564, %v2734
    %v3222 = vsel %vm1712, %v2565, %v2736
    %v3223 = vsel %vm1712, %v2566, %v2738
    %v3224 = vsel %vm1712, %v2567, %v2740
    %v3225 = vsel %vm1712, %v2568, %v2742
    %v3226 = vsel %vm1712, %v2569, %v2744
    %v3227 = vsel %vm1712, %v2570, %v2746
    %v3228 = vsel %vm1712, %v2571, %v2748
    %vm3229 = vcmask 64512
    %v3230 = vsel %vm3229, %v3213, %v2782
    %v3231 = vsel %vm3229, %v3214, %v2784
    %v3232 = vsel %vm3229, %v3215, %v2786
    %v3233 = vsel %vm3229, %v3216, %v2788
    %v3234 = vsel %vm3229, %v3217, %v2790
    %v3235 = vsel %vm3229, %v3218, %v2792
    %v3236 = vsel %vm3229, %v3219, %v2794
    %v3237 = vsel %vm3229, %v3220, %v2796
    %v3238 = vsel %vm3229, %v3221, %v2798
    %v3239 = vsel %vm3229, %v3222, %v2800
    %v3240 = vsel %vm3229, %v3223, %v2802
    %v3241 = vsel %vm3229, %v3224, %v2804
    %v3242 = vsel %vm3229, %v3225, %v2806
    %v3243 = vsel %vm3229, %v3226, %v2808
    %v3244 = vsel %vm3229, %v3227, %v2810
    %v3245 = vsel %vm3229, %v3228, %v2812
    %vm3246 = vcmask 97280
    %v3247 = vsel %vm3246, %v3230, %v2846
    %v3248 = vsel %vm3246, %v3231, %v2848
    %v3249 = vsel %vm3246, %v3232, %v2850
    %v3250 = vsel %vm3246, %v3233, %v2852
    %v3251 = vsel %vm3246, %v3234, %v2854
    %v3252 = vsel %vm3246, %v3235, %v2856
    %v3253 = vsel %vm3246, %v3236, %v2858
    %v3254 = vsel %vm3246, %v3237, %v2860
    %v3255 = vsel %vm3246, %v3238, %v2862
    %v3256 = vsel %vm3246, %v3239, %v2864
    %v3257 = vsel %vm3246, %v3240, %v2866
    %v3258 = vsel %vm3246, %v3241, %v2868
    %v3259 = vsel %vm3246, %v3242, %v2870
    %v3260 = vsel %vm3246, %v3243, %v2872
    %v3261 = vsel %vm3246, %v3244, %v2874
    %v3262 = vsel %vm3246, %v3245, %v2876
    %vm3263 = vcmask 130048
    %v3264 = vsel %vm3263, %v3247, %v2910
    %v3265 = vsel %vm3263, %v3248, %v2912
    %v3266 = vsel %vm3263, %v3249, %v2914
    %v3267 = vsel %vm3263, %v3250, %v2916
    %v3268 = vsel %vm3263, %v3251, %v2918
    %v3269 = vsel %vm3263, %v3252, %v2920
    %v3270 = vsel %vm3263, %v3253, %v2922
    %v3271 = vsel %vm3263, %v3254, %v2924
    %v3272 = vsel %vm3263, %v3255, %v2926
    %v3273 = vsel %vm3263, %v3256, %v2928
    %v3274 = vsel %vm3263, %v3257, %v2930
    %v3275 = vsel %vm3263, %v3258, %v2932
    %v3276 = vsel %vm3263, %v3259, %v2934
    %v3277 = vsel %vm3263, %v3260, %v2936
    %v3278 = vsel %vm3263, %v3261, %v2938
    %v3279 = vsel %vm3263, %v3262, %v2940
    %vm3280 = vcmask 162816
    %v3281 = vsel %vm3280, %v3264, %v2974
    %v3282 = vsel %vm3280, %v3265, %v2976
    %v3283 = vsel %vm3280, %v3266, %v2978
    %v3284 = vsel %vm3280, %v3267, %v2980
    %v3285 = vsel %vm3280, %v3268, %v2982
    %v3286 = vsel %vm3280, %v3269, %v2984
    %v3287 = vsel %vm3280, %v3270, %v2986
    %v3288 = vsel %vm3280, %v3271, %v2988
    %v3289 = vsel %vm3280, %v3272, %v2990
    %v3290 = vsel %vm3280, %v3273, %v2992
    %v3291 = vsel %vm3280, %v3274, %v2994
    %v3292 = vsel %vm3280, %v3275, %v2996
    %v3293 = vsel %vm3280, %v3276, %v2998
    %v3294 = vsel %vm3280, %v3277, %v3000
    %v3295 = vsel %vm3280, %v3278, %v3002
    %v3296 = vsel %vm3280, %v3279, %v3004
    %vm3297 = vcmask 195584
    %v3298 = vsel %vm3297, %v3281, %v3038
    %v3299 = vsel %vm3297, %v3282, %v3040
    %v3300 = vsel %vm3297, %v3283, %v3042
    %v3301 = vsel %vm3297, %v3284, %v3044
    %v3302 = vsel %vm3297, %v3285, %v3046
    %v3303 = vsel %vm3297, %v3286, %v3048
    %v3304 = vsel %vm3297, %v3287, %v3050
    %v3305 = vsel %vm3297, %v3288, %v3052
    %v3306 = vsel %vm3297, %v3289, %v3054
    %v3307 = vsel %vm3297, %v3290, %v3056
    %v3308 = vsel %vm3297, %v3291, %v3058
    %v3309 = vsel %vm3297, %v3292, %v3060
    %v3310 = vsel %vm3297, %v3293, %v3062
    %v3311 = vsel %vm3297, %v3294, %v3064
    %v3312 = vsel %vm3297, %v3295, %v3066
    %v3313 = vsel %vm3297, %v3296, %v3068
    %vm3314 = vcmask 228352
    %v3315 = vsel %vm3314, %v3298, %v3102
    %v3316 = vsel %vm3314, %v3299, %v3104
    %v3317 = vsel %vm3314, %v3300, %v3106
    %v3318 = vsel %vm3314, %v3301, %v3108
    %v3319 = vsel %vm3314, %v3302, %v3110
    %v3320 = vsel %vm3314, %v3303, %v3112
    %v3321 = vsel %vm3314, %v3304, %v3114
    %v3322 = vsel %vm3314, %v3305, %v3116
    %v3323 = vsel %vm3314, %v3306, %v3118
    %v3324 = vsel %vm3314, %v3307, %v3120
    %v3325 = vsel %vm3314, %v3308, %v3122
    %v3326 = vsel %vm3314, %v3309, %v3124
    %v3327 = vsel %vm3314, %v3310, %v3126
    %v3328 = vsel %vm3314, %v3311, %v3128
    %v3329 = vsel %vm3314, %v3312, %v3130
    %v3330 = vsel %vm3314, %v3313, %v3132
    %vm3331 = vcmask 261120
    %v3332 = vsel %vm3331, %v3315, %v3166
    %v3333 = vsel %vm3331, %v3316, %v3168
    %v3334 = vsel %vm3331, %v3317, %v3170
    %v3335 = vsel %vm3331, %v3318, %v3172
    %v3336 = vsel %vm3331, %v3319, %v3174
    %v3337 = vsel %vm3331, %v3320, %v3176
    %v3338 = vsel %vm3331, %v3321, %v3178
    %v3339 = vsel %vm3331, %v3322, %v3180
    %v3340 = vsel %vm3331, %v3323, %v3182
    %v3341 = vsel %vm3331, %v3324, %v3184
    %v3342 = vsel %vm3331, %v3325, %v3186
    %v3343 = vsel %vm3331, %v3326, %v3188
    %v3344 = vsel %vm3331, %v3327, %v3190
    %v3345 = vsel %vm3331, %v3328, %v3192
    %v3346 = vsel %vm3331, %v3329, %v3194
    %v3347 = vsel %vm3331, %v3330, %v3196
    %v3348 = vld [vmem:[%s0] sm:$0xff]
    %v3349 = vld [vmem:[%s0 + $0x8] sm:$0xff]
    %v3350 = vld [vmem:[%s0 + $0x10] sm:$0xff]
    %v3351 = vld [vmem:[%s0 + $0x18] sm:$0xff]
    %v3352 = vld [vmem:[%s0 + $0x20] sm:$0xf]
    %vm3353 = vcmask 293888
    %v3355 = vsel %vm3353, %v3332, 0
    %v3358 = vsel %vm3353, %v3333, 0
    %v3361 = vsel %vm3353, %v3334, 0
    %v3364 = vsel %vm3353, %v3335, 0
    %v3367 = vsel %vm3353, %v3336, 0
    %v3370 = vsel %vm3353, %v3337, 0
    %v3373 = vsel %vm3353, %v3338, 0
    %v3376 = vsel %vm3353, %v3339, 0
    %v3379 = vsel %vm3353, %v3340, 0
    %v3382 = vsel %vm3353, %v3341, 0
    %v3385 = vsel %vm3353, %v3342, 0
    %v3388 = vsel %vm3353, %v3343, 0
    %v3391 = vsel %vm3353, %v3344, 0
    %v3394 = vsel %vm3353, %v3345, 0
    %v3397 = vsel %vm3353, %v3346, 0
    %v3400 = vsel %vm3353, %v3347, 0
    %vm3402 = vcmask 1043456
    %v3404 = vsel %vm3402, %v3352, 0
    %3406 = vmatprep.subr.mxu0 0.0
    %3407 = vmatpush1.msra.mxu0 0.0
    %3408 = vmatprep.subr.mxu0 0.0
    %3409 = vmatpush1.msra.mxu0 0.0
    %3410 = vmatprep.subr.mxu0 0.0
    %3411 = vmatpush1.msra.mxu0 0.0
    %3412 = vmatprep.subr.mxu0 0.0
    %3413 = vmatpush1.msra.mxu0 0.0
    %3414 = vmatprep.subr.mxu0 0.0
    %3415 = vmatpush1.msra.mxu0 0.0
    %3416 = vmatprep.subr.mxu0 0.0
    %3417 = vmatpush1.msra.mxu0 0.0
    %3418 = vmatprep.subr.mxu0 0.0
    %3419 = vmatpush1.msra.mxu0 0.0
    %3420 = vmatprep.subr.mxu0 0.0
    %3421 = vmatpush1.msra.mxu0 0.0
    %3422 = vmatprep.subr.mxu0 0.0
    %3423 = vmatpush1.msra.mxu0 0.0
    %3424 = vmatprep.subr.mxu0 0.0
    %3425 = vmatpush1.msra.mxu0 0.0
    %3426 = vmatprep.subr.mxu0 0.0
    %3427 = vmatpush1.msra.mxu0 0.0
    %3428 = vmatprep.subr.mxu0 0.0
    %3429 = vmatpush1.msra.mxu0 %v3404
    %3430 = vmatprep.subr.mxu0 0.0
    %3431 = vmatpush1.msra.mxu0 %v3351
    %3432 = vmatprep.subr.mxu0 0.0
    %3433 = vmatpush1.msra.mxu0 %v3350
    %3434 = vmatprep.subr.mxu0 0.0
    %3435 = vmatpush1.msra.mxu0 %v3349
    %3436 = vmatprep.subr.mxu0 0.0
    %3437 = vmatpush1.msra.mxu0 %v3348
    %3438 = vmatprep.subr.mxu0 0.0
    %3439 = vmatpush2.msra.mxu0 0.0
    %3440 = vmatprep.subr.mxu0 0.0
    %3441 = vmatpush2.msra.mxu0 0.0
    %3442 = vmatprep.subr.mxu0 0.0
    %3443 = vmatpush2.msra.mxu0 0.0
    %3444 = vmatprep.subr.mxu0 0.0
    %3445 = vmatpush2.msra.mxu0 0.0
    %3446 = vmatprep.subr.mxu0 0.0
    %3447 = vmatpush2.msra.mxu0 0.0
    %3448 = vmatprep.subr.mxu0 0.0
    %3449 = vmatpush2.msra.mxu0 0.0
    %3450 = vmatprep.subr.mxu0 0.0
    %3451 = vmatpush2.msra.mxu0 0.0
    %3452 = vmatprep.subr.mxu0 0.0
    %3453 = vmatpush2.msra.mxu0 0.0
    %3454 = vmatprep.subr.mxu0 0.0
    %3455 = vmatpush2.msra.mxu0 0.0
    %3456 = vmatprep.subr.mxu0 0.0
    %3457 = vmatpush2.msra.mxu0 0.0
    %3458 = vmatprep.subr.mxu0 0.0
    %3459 = vmatpush2.msra.mxu0 0.0
    %3460 = vmatprep.subr.mxu0 0.0
    %3461 = vmatpush2.msra.mxu0 0.0
    %3462 = vmatprep.subr.mxu0 0.0
    %3463 = vmatpush2.msra.mxu0 0.0
    %3464 = vmatprep.subr.mxu0 0.0
    %3465 = vmatpush2.msra.mxu0 0.0
    %3466 = vmatprep.subr.mxu0 0.0
    %3467 = vmatpush2.msra.mxu0 0.0
    %3468 = vmatprep.subr.mxu0 0.0
    %3469 = vmatpush2.msra.mxu0 0.0
    %3470 = vmatprep.mubr.f32.mxu0 0.0
    %3471 = vmatmul.mubr.f32.gmra.mxu0 %v3355
    %v3472 = vpop.f32.mrf.mxu0
    %v3473 = vadd.f32 0.0, %v3472
    %v3474 = vpop.f32.mrf.mxu0
    %3475 = vmatprep.mubr.f32.mxu0 0.0
    %3476 = vmatmul.mubr.f32.gmra.mxu0 %v3358
    %v3477 = vpop.f32.mrf.mxu0
    %v3478 = vadd.f32 0.0, %v3477
    %v3479 = vpop.f32.mrf.mxu0
    %3480 = vmatprep.mubr.f32.mxu0 0.0
    %3481 = vmatmul.mubr.f32.gmra.mxu0 %v3361
    %v3482 = vpop.f32.mrf.mxu0
    %v3483 = vadd.f32 0.0, %v3482
    %v3484 = vpop.f32.mrf.mxu0
    %3485 = vmatprep.mubr.f32.mxu0 0.0
    %3486 = vmatmul.mubr.f32.gmra.mxu0 %v3364
    %v3487 = vpop.f32.mrf.mxu0
    %v3488 = vadd.f32 0.0, %v3487
    %v3489 = vpop.f32.mrf.mxu0
    %3490 = vmatprep.mubr.f32.mxu0 0.0
    %3491 = vmatmul.mubr.f32.gmra.mxu0 %v3367
    %v3492 = vpop.f32.mrf.mxu0
    %v3493 = vadd.f32 0.0, %v3492
    %v3494 = vpop.f32.mrf.mxu0
    %3495 = vmatprep.mubr.f32.mxu0 0.0
    %3496 = vmatmul.mubr.f32.gmra.mxu0 %v3370
    %v3497 = vpop.f32.mrf.mxu0
    %v3498 = vadd.f32 0.0, %v3497
    %v3499 = vpop.f32.mrf.mxu0
    %3500 = vmatprep.mubr.f32.mxu0 0.0
    %3501 = vmatmul.mubr.f32.gmra.mxu0 %v3373
    %v3502 = vpop.f32.mrf.mxu0
    %v3503 = vadd.f32 0.0, %v3502
    %v3504 = vpop.f32.mrf.mxu0
    %3505 = vmatprep.mubr.f32.mxu0 0.0
    %3506 = vmatmul.mubr.f32.gmra.mxu0 %v3376
    %v3507 = vpop.f32.mrf.mxu0
    %v3508 = vadd.f32 0.0, %v3507
    %v3509 = vpop.f32.mrf.mxu0
    %3510 = vmatprep.mubr.f32.mxu0 0.0
    %3511 = vmatmul.mubr.f32.gmra.mxu0 %v3379
    %v3512 = vpop.f32.mrf.mxu0
    %v3513 = vadd.f32 0.0, %v3512
    %v3514 = vpop.f32.mrf.mxu0
    %3515 = vmatprep.mubr.f32.mxu0 0.0
    %3516 = vmatmul.mubr.f32.gmra.mxu0 %v3382
    %v3517 = vpop.f32.mrf.mxu0
    %v3518 = vadd.f32 0.0, %v3517
    %v3519 = vpop.f32.mrf.mxu0
    %3520 = vmatprep.mubr.f32.mxu0 0.0
    %3521 = vmatmul.mubr.f32.gmra.mxu0 %v3385
    %v3522 = vpop.f32.mrf.mxu0
    %v3523 = vadd.f32 0.0, %v3522
    %v3524 = vpop.f32.mrf.mxu0
    %3525 = vmatprep.mubr.f32.mxu0 0.0
    %3526 = vmatmul.mubr.f32.gmra.mxu0 %v3388
    %v3527 = vpop.f32.mrf.mxu0
    %v3528 = vadd.f32 0.0, %v3527
    %v3529 = vpop.f32.mrf.mxu0
    %3530 = vmatprep.mubr.f32.mxu0 0.0
    %3531 = vmatmul.mubr.f32.gmra.mxu0 %v3391
    %v3532 = vpop.f32.mrf.mxu0
    %v3533 = vadd.f32 0.0, %v3532
    %v3534 = vpop.f32.mrf.mxu0
    %3535 = vmatprep.mubr.f32.mxu0 0.0
    %3536 = vmatmul.mubr.f32.gmra.mxu0 %v3394
    %v3537 = vpop.f32.mrf.mxu0
    %v3538 = vadd.f32 0.0, %v3537
    %v3539 = vpop.f32.mrf.mxu0
    %3540 = vmatprep.mubr.f32.mxu0 0.0
    %3541 = vmatmul.mubr.f32.gmra.mxu0 %v3397
    %v3542 = vpop.f32.mrf.mxu0
    %v3543 = vadd.f32 0.0, %v3542
    %v3544 = vpop.f32.mrf.mxu0
    %3545 = vmatprep.mubr.f32.mxu0 0.0
    %3546 = vmatmul.mubr.f32.gmra.mxu0 %v3400
    %v3547 = vpop.f32.mrf.mxu0
    %v3548 = vadd.f32 0.0, %v3547
    %v3549 = vpop.f32.mrf.mxu0
    %3550 = vdwg.mxu0
    %v3551 = vlaneseq
    %v3552 = vshrl.u32 %v3551, 7
    %v3553 = vsub.s32 0, %v3552
    %v3554 = vrot.slane %v399, %v3553
    %v3555 = vadd.f32 %v3473, %v3554
    %v3556 = vadd.f32 %v3478, %v3554
    %v3557 = vadd.f32 %v3483, %v3554
    %v3558 = vadd.f32 %v3488, %v3554
    %v3559 = vadd.f32 %v3493, %v3554
    %v3560 = vadd.f32 %v3498, %v3554
    %v3561 = vadd.f32 %v3503, %v3554
    %v3562 = vadd.f32 %v3508, %v3554
    %v3563 = vadd.f32 %v3513, %v3554
    %v3564 = vadd.f32 %v3518, %v3554
    %v3565 = vadd.f32 %v3523, %v3554
    %v3566 = vadd.f32 %v3528, %v3554
    %v3567 = vadd.f32 %v3533, %v3554
    %v3568 = vadd.f32 %v3538, %v3554
    %v3569 = vadd.f32 %v3543, %v3554
    %v3570 = vadd.f32 %v3548, %v3554
    %v3571 = vlaneseq
    %v3572 = vshrl.u32 %v3571, 7
    %v3573 = vsub.s32 1, %v3572
    %v3574 = vrot.slane %v399, %v3573
    %3576 = vrot.lane.b32.xlu0 %v3574, 8
    %v3577 = vpop.permute.xlu0 %3576
    %v3579 = vadd.f32 %v3473, %v3577
    %v3580 = vadd.f32 %v3478, %v3577
    %v3581 = vadd.f32 %v3483, %v3577
    %v3582 = vadd.f32 %v3488, %v3577
    %v3583 = vadd.f32 %v3493, %v3577
    %v3584 = vadd.f32 %v3498, %v3577
    %v3585 = vadd.f32 %v3503, %v3577
    %v3586 = vadd.f32 %v3508, %v3577
    %v3587 = vadd.f32 %v3513, %v3577
    %v3588 = vadd.f32 %v3518, %v3577
    %v3589 = vadd.f32 %v3523, %v3577
    %v3590 = vadd.f32 %v3528, %v3577
    %v3591 = vadd.f32 %v3533, %v3577
    %v3592 = vadd.f32 %v3538, %v3577
    %v3593 = vadd.f32 %v3543, %v3577
    %v3594 = vadd.f32 %v3548, %v3577
    %v3595 = vxor.u32 %v3579, 2147483648
    %v3596 = vxor.u32 %v3580, 2147483648
    %v3597 = vxor.u32 %v3581, 2147483648
    %v3598 = vxor.u32 %v3582, 2147483648
    %v3599 = vxor.u32 %v3583, 2147483648
    %v3600 = vxor.u32 %v3584, 2147483648
    %v3601 = vxor.u32 %v3585, 2147483648
    %v3602 = vxor.u32 %v3586, 2147483648
    %v3603 = vxor.u32 %v3587, 2147483648
    %v3604 = vxor.u32 %v3588, 2147483648
    %v3605 = vxor.u32 %v3589, 2147483648
    %v3606 = vxor.u32 %v3590, 2147483648
    %v3607 = vxor.u32 %v3591, 2147483648
    %v3608 = vxor.u32 %v3592, 2147483648
    %v3609 = vxor.u32 %v3593, 2147483648
    %v3610 = vxor.u32 %v3594, 2147483648
    %v3611 = vmul.f32 %v3595, 1.442695
    %v3612 = vpow.pop %v3611
    %v3613 = vmul.f32 %v3596, 1.442695
    %v3614 = vpow.pop %v3613
    %v3615 = vmul.f32 %v3597, 1.442695
    %v3616 = vpow.pop %v3615
    %v3617 = vmul.f32 %v3598, 1.442695
    %v3618 = vpow.pop %v3617
    %v3619 = vmul.f32 %v3599, 1.442695
    %v3620 = vpow.pop %v3619
    %v3621 = vmul.f32 %v3600, 1.442695
    %v3622 = vpow.pop %v3621
    %v3623 = vmul.f32 %v3601, 1.442695
    %v3624 = vpow.pop %v3623
    %v3625 = vmul.f32 %v3602, 1.442695
    %v3626 = vpow.pop %v3625
    %v3627 = vmul.f32 %v3603, 1.442695
    %v3628 = vpow.pop %v3627
    %v3629 = vmul.f32 %v3604, 1.442695
    %v3630 = vpow.pop %v3629
    %v3631 = vmul.f32 %v3605, 1.442695
    %v3632 = vpow.pop %v3631
    %v3633 = vmul.f32 %v3606, 1.442695
    %v3634 = vpow.pop %v3633
    %v3635 = vmul.f32 %v3607, 1.442695
    %v3636 = vpow.pop %v3635
    %v3637 = vmul.f32 %v3608, 1.442695
    %v3638 = vpow.pop %v3637
    %v3639 = vmul.f32 %v3609, 1.442695
    %v3640 = vpow.pop %v3639
    %v3641 = vmul.f32 %v3610, 1.442695
    %v3642 = vpow.pop %v3641
    %v3643 = vadd.f32 %v3612, 1.0
    %v3644 = vadd.f32 %v3614, 1.0
    %v3645 = vadd.f32 %v3616, 1.0
    %v3646 = vadd.f32 %v3618, 1.0
    %v3647 = vadd.f32 %v3620, 1.0
    %v3648 = vadd.f32 %v3622, 1.0
    %v3649 = vadd.f32 %v3624, 1.0
    %v3650 = vadd.f32 %v3626, 1.0
    %v3651 = vadd.f32 %v3628, 1.0
    %v3652 = vadd.f32 %v3630, 1.0
    %v3653 = vadd.f32 %v3632, 1.0
    %v3654 = vadd.f32 %v3634, 1.0
    %v3655 = vadd.f32 %v3636, 1.0
    %v3656 = vadd.f32 %v3638, 1.0
    %v3657 = vadd.f32 %v3640, 1.0
    %v3658 = vadd.f32 %v3642, 1.0
    %v3659 = vrcp.pop %v3643
    %v3660 = vmul.f32 1.0, %v3659
    %v3661 = vrcp.pop %v3644
    %v3662 = vmul.f32 1.0, %v3661
    %v3663 = vrcp.pop %v3645
    %v3664 = vmul.f32 1.0, %v3663
    %v3665 = vrcp.pop %v3646
    %v3666 = vmul.f32 1.0, %v3665
    %v3667 = vrcp.pop %v3647
    %v3668 = vmul.f32 1.0, %v3667
    %v3669 = vrcp.pop %v3648
    %v3670 = vmul.f32 1.0, %v3669
    %v3671 = vrcp.pop %v3649
    %v3672 = vmul.f32 1.0, %v3671
    %v3673 = vrcp.pop %v3650
    %v3674 = vmul.f32 1.0, %v3673
    %v3675 = vrcp.pop %v3651
    %v3676 = vmul.f32 1.0, %v3675
    %v3677 = vrcp.pop %v3652
    %v3678 = vmul.f32 1.0, %v3677
    %v3679 = vrcp.pop %v3653
    %v3680 = vmul.f32 1.0, %v3679
    %v3681 = vrcp.pop %v3654
    %v3682 = vmul.f32 1.0, %v3681
    %v3683 = vrcp.pop %v3655
    %v3684 = vmul.f32 1.0, %v3683
    %v3685 = vrcp.pop %v3656
    %v3686 = vmul.f32 1.0, %v3685
    %v3687 = vrcp.pop %v3657
    %v3688 = vmul.f32 1.0, %v3687
    %v3689 = vrcp.pop %v3658
    %v3690 = vmul.f32 1.0, %v3689
    %3707 = vrot.lane.b32.xlu0 %v3660, 120
    %v3708 = vpop.permute.xlu0 %3707
    %3709 = vrot.lane.b32.xlu0 %v3662, 120
    %v3710 = vpop.permute.xlu0 %3709
    %3711 = vrot.lane.b32.xlu0 %v3664, 120
    %v3712 = vpop.permute.xlu0 %3711
    %3713 = vrot.lane.b32.xlu0 %v3666, 120
    %v3714 = vpop.permute.xlu0 %3713
    %3715 = vrot.lane.b32.xlu0 %v3668, 120
    %v3716 = vpop.permute.xlu0 %3715
    %3717 = vrot.lane.b32.xlu0 %v3670, 120
    %v3718 = vpop.permute.xlu0 %3717
    %3719 = vrot.lane.b32.xlu0 %v3672, 120
    %v3720 = vpop.permute.xlu0 %3719
    %3721 = vrot.lane.b32.xlu0 %v3674, 120
    %v3722 = vpop.permute.xlu0 %3721
    %3723 = vrot.lane.b32.xlu0 %v3676, 120
    %v3724 = vpop.permute.xlu0 %3723
    %3725 = vrot.lane.b32.xlu0 %v3678, 120
    %v3726 = vpop.permute.xlu0 %3725
    %3727 = vrot.lane.b32.xlu0 %v3680, 120
    %v3728 = vpop.permute.xlu0 %3727
    %3729 = vrot.lane.b32.xlu0 %v3682, 120
    %v3730 = vpop.permute.xlu0 %3729
    %3731 = vrot.lane.b32.xlu0 %v3684, 120
    %v3732 = vpop.permute.xlu0 %3731
    %3733 = vrot.lane.b32.xlu0 %v3686, 120
    %v3734 = vpop.permute.xlu0 %3733
    %3735 = vrot.lane.b32.xlu0 %v3688, 120
    %v3736 = vpop.permute.xlu0 %3735
    %3737 = vrot.lane.b32.xlu0 %v3690, 120
    %v3738 = vpop.permute.xlu0 %3737
    %v3755 = vmul.f32 %v3555, %v3708
    %v3756 = vmul.f32 %v3556, %v3710
    %v3757 = vmul.f32 %v3557, %v3712
    %v3758 = vmul.f32 %v3558, %v3714
    %v3759 = vmul.f32 %v3559, %v3716
    %v3760 = vmul.f32 %v3560, %v3718
    %v3761 = vmul.f32 %v3561, %v3720
    %v3762 = vmul.f32 %v3562, %v3722
    %v3763 = vmul.f32 %v3563, %v3724
    %v3764 = vmul.f32 %v3564, %v3726
    %v3765 = vmul.f32 %v3565, %v3728
    %v3766 = vmul.f32 %v3566, %v3730
    %v3767 = vmul.f32 %v3567, %v3732
    %v3768 = vmul.f32 %v3568, %v3734
    %v3769 = vmul.f32 %v3569, %v3736
    %v3770 = vmul.f32 %v3570, %v3738
    %v3771 = vsel %vm3229, %v3755, 0.0
    %v3772 = vsel %vm3229, %v3756, 0.0
    %v3773 = vadd.f32 %v3771, %v3772
    %v3774 = vsel %vm3229, %v3757, 0.0
    %v3775 = vadd.f32 %v3773, %v3774
    %v3776 = vsel %vm3229, %v3758, 0.0
    %v3777 = vadd.f32 %v3775, %v3776
    %v3778 = vsel %vm3229, %v3759, 0.0
    %v3779 = vadd.f32 %v3777, %v3778
    %v3780 = vsel %vm3229, %v3760, 0.0
    %v3781 = vadd.f32 %v3779, %v3780
    %v3782 = vsel %vm3229, %v3761, 0.0
    %v3783 = vadd.f32 %v3781, %v3782
    %v3784 = vsel %vm3229, %v3762, 0.0
    %v3785 = vadd.f32 %v3783, %v3784
    %v3786 = vsel %vm3229, %v3763, 0.0
    %v3787 = vadd.f32 %v3785, %v3786
    %v3788 = vsel %vm3229, %v3764, 0.0
    %v3789 = vadd.f32 %v3787, %v3788
    %v3790 = vsel %vm3229, %v3765, 0.0
    %v3791 = vadd.f32 %v3789, %v3790
    %v3792 = vsel %vm3229, %v3766, 0.0
    %v3793 = vadd.f32 %v3791, %v3792
    %v3794 = vsel %vm3229, %v3767, 0.0
    %v3795 = vadd.f32 %v3793, %v3794
    %v3796 = vsel %vm3229, %v3768, 0.0
    %v3797 = vadd.f32 %v3795, %v3796
    %v3798 = vsel %vm3229, %v3769, 0.0
    %v3799 = vadd.f32 %v3797, %v3798
    %v3800 = vsel %vm3229, %v3770, 0.0
    %v3801 = vadd.f32 %v3799, %v3800
    %v3802 = vrot.slane %v3801, 4
    %v3803 = vadd.f32 %v3801, %v3802
    %v3804 = vrot.slane %v3803, 2
    %v3805 = vadd.f32 %v3803, %v3804
    %v3806 = vrot.slane %v3805, 1
    %v3807 = vadd.f32 %v3805, %v3806
    %v3808 = vrcp.pop 128.0
    %v3809 = vmul.f32 %v3807, %v3808
    %v3810 = vsub.f32 %v3755, %v3809
    %v3811 = vsub.f32 %v3756, %v3809
    %v3812 = vsub.f32 %v3757, %v3809
    %v3813 = vsub.f32 %v3758, %v3809
    %v3814 = vsub.f32 %v3759, %v3809
    %v3815 = vsub.f32 %v3760, %v3809
    %v3816 = vsub.f32 %v3761, %v3809
    %v3817 = vsub.f32 %v3762, %v3809
    %v3818 = vsub.f32 %v3763, %v3809
    %v3819 = vsub.f32 %v3764, %v3809
    %v3820 = vsub.f32 %v3765, %v3809
    %v3821 = vsub.f32 %v3766, %v3809
    %v3822 = vsub.f32 %v3767, %v3809
    %v3823 = vsub.f32 %v3768, %v3809
    %v3824 = vsub.f32 %v3769, %v3809
    %v3825 = vsub.f32 %v3770, %v3809
    %v3826 = vmul.f32 %v3810, %v3810
    %v3827 = vmul.f32 %v3811, %v3811
    %v3828 = vmul.f32 %v3812, %v3812
    %v3829 = vmul.f32 %v3813, %v3813
    %v3830 = vmul.f32 %v3814, %v3814
    %v3831 = vmul.f32 %v3815, %v3815
    %v3832 = vmul.f32 %v3816, %v3816
    %v3833 = vmul.f32 %v3817, %v3817
    %v3834 = vmul.f32 %v3818, %v3818
    %v3835 = vmul.f32 %v3819, %v3819
    %v3836 = vmul.f32 %v3820, %v3820
    %v3837 = vmul.f32 %v3821, %v3821
    %v3838 = vmul.f32 %v3822, %v3822
    %v3839 = vmul.f32 %v3823, %v3823
    %v3840 = vmul.f32 %v3824, %v3824
    %v3841 = vmul.f32 %v3825, %v3825
    %v3842 = vsel %vm3229, %v3826, 0.0
    %v3843 = vsel %vm3229, %v3827, 0.0
    %v3844 = vadd.f32 %v3842, %v3843
    %v3845 = vsel %vm3229, %v3828, 0.0
    %v3846 = vadd.f32 %v3844, %v3845
    %v3847 = vsel %vm3229, %v3829, 0.0
    %v3848 = vadd.f32 %v3846, %v3847
    %v3849 = vsel %vm3229, %v3830, 0.0
    %v3850 = vadd.f32 %v3848, %v3849
    %v3851 = vsel %vm3229, %v3831, 0.0
    %v3852 = vadd.f32 %v3850, %v3851
    %v3853 = vsel %vm3229, %v3832, 0.0
    %v3854 = vadd.f32 %v3852, %v3853
    %v3855 = vsel %vm3229, %v3833, 0.0
    %v3856 = vadd.f32 %v3854, %v3855
    %v3857 = vsel %vm3229, %v3834, 0.0
    %v3858 = vadd.f32 %v3856, %v3857
    %v3859 = vsel %vm3229, %v3835, 0.0
    %v3860 = vadd.f32 %v3858, %v3859
    %v3861 = vsel %vm3229, %v3836, 0.0
    %v3862 = vadd.f32 %v3860, %v3861
    %v3863 = vsel %vm3229, %v3837, 0.0
    %v3864 = vadd.f32 %v3862, %v3863
    %v3865 = vsel %vm3229, %v3838, 0.0
    %v3866 = vadd.f32 %v3864, %v3865
    %v3867 = vsel %vm3229, %v3839, 0.0
    %v3868 = vadd.f32 %v3866, %v3867
    %v3869 = vsel %vm3229, %v3840, 0.0
    %v3870 = vadd.f32 %v3868, %v3869
    %v3871 = vsel %vm3229, %v3841, 0.0
    %v3872 = vadd.f32 %v3870, %v3871
    %v3873 = vrot.slane %v3872, 4
    %v3874 = vadd.f32 %v3872, %v3873
    %v3875 = vrot.slane %v3874, 2
    %v3876 = vadd.f32 %v3874, %v3875
    %v3877 = vrot.slane %v3876, 1
    %v3878 = vadd.f32 %v3876, %v3877
    %v3879 = vmul.f32 %v3878, %v3808
    %v3880 = vadd.f32 %v3879, 1e-05
    %v3881 = vrsqrt.pop %v3880
    %v3882 = vmul.f32 %v3810, %v3881
    %v3883 = vmul.f32 %v3811, %v3881
    %v3884 = vmul.f32 %v3812, %v3881
    %v3885 = vmul.f32 %v3813, %v3881
    %v3886 = vmul.f32 %v3814, %v3881
    %v3887 = vmul.f32 %v3815, %v3881
    %v3888 = vmul.f32 %v3816, %v3881
    %v3889 = vmul.f32 %v3817, %v3881
    %v3890 = vmul.f32 %v3818, %v3881
    %v3891 = vmul.f32 %v3819, %v3881
    %v3892 = vmul.f32 %v3820, %v3881
    %v3893 = vmul.f32 %v3821, %v3881
    %v3894 = vmul.f32 %v3822, %v3881
    %v3895 = vmul.f32 %v3823, %v3881
    %v3896 = vmul.f32 %v3824, %v3881
    %v3897 = vmul.f32 %v3825, %v3881
    %v3898 = vlaneseq
    %v3899 = vshrl.u32 %v3898, 7
    %v3900 = vsub.s32 2, %v3899
    %v3901 = vrot.slane %v399, %v3900
    %v3902 = vmul.f32 %v3882, %v3901
    %v3903 = vmul.f32 %v3883, %v3901
    %v3904 = vmul.f32 %v3884, %v3901
    %v3905 = vmul.f32 %v3885, %v3901
    %v3906 = vmul.f32 %v3886, %v3901
    %v3907 = vmul.f32 %v3887, %v3901
    %v3908 = vmul.f32 %v3888, %v3901
    %v3909 = vmul.f32 %v3889, %v3901
    %v3910 = vmul.f32 %v3890, %v3901
    %v3911 = vmul.f32 %v3891, %v3901
    %v3912 = vmul.f32 %v3892, %v3901
    %v3913 = vmul.f32 %v3893, %v3901
    %v3914 = vmul.f32 %v3894, %v3901
    %v3915 = vmul.f32 %v3895, %v3901
    %v3916 = vmul.f32 %v3896, %v3901
    %v3917 = vmul.f32 %v3897, %v3901
    %v3918 = vlaneseq
    %v3919 = vshrl.u32 %v3918, 7
    %v3920 = vsub.s32 3, %v3919
    %v3921 = vrot.slane %v399, %v3920
    %v3922 = vadd.f32 %v3902, %v3921
    %v3923 = vadd.f32 %v3903, %v3921
    %v3924 = vadd.f32 %v3904, %v3921
    %v3925 = vadd.f32 %v3905, %v3921
    %v3926 = vadd.f32 %v3906, %v3921
    %v3927 = vadd.f32 %v3907, %v3921
    %v3928 = vadd.f32 %v3908, %v3921
    %v3929 = vadd.f32 %v3909, %v3921
    %v3930 = vadd.f32 %v3910, %v3921
    %v3931 = vadd.f32 %v3911, %v3921
    %v3932 = vadd.f32 %v3912, %v3921
    %v3933 = vadd.f32 %v3913, %v3921
    %v3934 = vadd.f32 %v3914, %v3921
    %v3935 = vadd.f32 %v3915, %v3921
    %v3936 = vadd.f32 %v3916, %v3921
    %v3937 = vadd.f32 %v3917, %v3921
    %v3938 = vmax.f32 %v3922, 0.0
    %v3939 = vmax.f32 %v3923, 0.0
    %v3940 = vmax.f32 %v3924, 0.0
    %v3941 = vmax.f32 %v3925, 0.0
    %v3942 = vmax.f32 %v3926, 0.0
    %v3943 = vmax.f32 %v3927, 0.0
    %v3944 = vmax.f32 %v3928, 0.0
    %v3945 = vmax.f32 %v3929, 0.0
    %v3946 = vmax.f32 %v3930, 0.0
    %v3947 = vmax.f32 %v3931, 0.0
    %v3948 = vmax.f32 %v3932, 0.0
    %v3949 = vmax.f32 %v3933, 0.0
    %v3950 = vmax.f32 %v3934, 0.0
    %v3951 = vmax.f32 %v3935, 0.0
    %v3952 = vmax.f32 %v3936, 0.0
    %v3953 = vmax.f32 %v3937, 0.0
    %3954 = vst.msk [vmem:[#allocation3] sm:$0xff] %vm3229, 0.0
    %vm3955 = vcmask 58368
    %3956 = vst.msk [vmem:[#allocation3 + $0x8] sm:$0x3] %vm3955, 0.0
    %3957 = vst.msk [vmem:[#allocation3 + $0xa0] sm:$0xff] %vm3229, 0.0
    %3958 = vst.msk [vmem:[#allocation3 + $0xa8] sm:$0x3] %vm3955, 0.0
    %s3959 = scalar_lea.vmem [#allocation3], 144
    %3960 = vst.msk [vmem:[%s3959] sm:$0xff] %vm3229, 0.0
    %3961 = vst.msk [vmem:[%s3959 + $0x8] sm:$0x3] %vm3955, 0.0
    %3962 = vst.msk [vmem:[%s3959 + $0xa0] sm:$0xff] %vm3229, 0.0
    %3963 = vst.msk [vmem:[%s3959 + $0xa8] sm:$0x3] %vm3955, 0.0
    %vm3964 = vcmask 57344
    %3965 = vst.msk [vmem:[#allocation3] sm:$0x1] %vm3964, 0.0
    %3966 = vst.msk [vmem:[#allocation3 + $0x10] sm:$0x1] %vm3964, 0.0
    %3967 = vst.msk [vmem:[#allocation3 + $0x20] sm:$0x1] %vm3964, 0.0
    %3968 = vst.msk [vmem:[#allocation3 + $0x30] sm:$0x1] %vm3964, 0.0
    %3969 = vst.msk [vmem:[#allocation3 + $0x40] sm:$0x1] %vm3964, 0.0
    %3970 = vst.msk [vmem:[#allocation3 + $0x50] sm:$0x1] %vm3964, 0.0
    %3971 = vst.msk [vmem:[#allocation3 + $0x60] sm:$0x1] %vm3964, 0.0
    %3972 = vst.msk [vmem:[#allocation3 + $0x70] sm:$0x1] %vm3964, 0.0
    %3973 = vst.msk [vmem:[#allocation3 + $0x80] sm:$0x1] %vm3964, 0.0
    %3974 = vst.msk [vmem:[#allocation3 + $0x90] sm:$0x1] %vm3964, 0.0
    %3975 = vst.msk [vmem:[#allocation3 + $0xa0] sm:$0x1] %vm3964, 0.0
    %3976 = vst.msk [vmem:[#allocation3 + $0xb0] sm:$0x1] %vm3964, 0.0
    %3977 = vst.msk [vmem:[#allocation3 + $0xc0] sm:$0x1] %vm3964, 0.0
    %3978 = vst.msk [vmem:[#allocation3 + $0xd0] sm:$0x1] %vm3964, 0.0
    %3979 = vst.msk [vmem:[#allocation3 + $0xe0] sm:$0x1] %vm3964, 0.0
    %3980 = vst.msk [vmem:[#allocation3 + $0xf0] sm:$0x1] %vm3964, 0.0
    %3981 = vst.msk [vmem:[#allocation3 + $0x100] sm:$0x1] %vm3964, 0.0
    %3982 = vst.msk [vmem:[#allocation3 + $0x110] sm:$0x1] %vm3964, 0.0
    %3983 = vst.msk [vmem:[#allocation3 + $0x120] sm:$0x1] %vm3964, 0.0
    %3984 = vst.msk [vmem:[#allocation3 + $0x130] sm:$0x1] %vm3964, 0.0
    %3985 = vst.msk [vmem:[#allocation3 + $0x9] sm:$0x1] %vm3964, 0.0
    %3986 = vst.msk [vmem:[#allocation3 + $0x19] sm:$0x1] %vm3964, 0.0
    %3987 = vst.msk [vmem:[#allocation3 + $0x29] sm:$0x1] %vm3964, 0.0
    %3988 = vst.msk [vmem:[#allocation3 + $0x39] sm:$0x1] %vm3964, 0.0
    %3989 = vst.msk [vmem:[#allocation3 + $0x49] sm:$0x1] %vm3964, 0.0
    %3990 = vst.msk [vmem:[#allocation3 + $0x59] sm:$0x1] %vm3964, 0.0
    %3991 = vst.msk [vmem:[#allocation3 + $0x69] sm:$0x1] %vm3964, 0.0
    %3992 = vst.msk [vmem:[#allocation3 + $0x79] sm:$0x1] %vm3964, 0.0
    %3993 = vst.msk [vmem:[#allocation3 + $0x89] sm:$0x1] %vm3964, 0.0
    %3994 = vst.msk [vmem:[#allocation3 + $0x99] sm:$0x1] %vm3964, 0.0
    %3995 = vst.msk [vmem:[#allocation3 + $0xa9] sm:$0x1] %vm3964, 0.0
    %3996 = vst.msk [vmem:[#allocation3 + $0xb9] sm:$0x1] %vm3964, 0.0
    %3997 = vst.msk [vmem:[#allocation3 + $0xc9] sm:$0x1] %vm3964, 0.0
    %3998 = vst.msk [vmem:[#allocation3 + $0xd9] sm:$0x1] %vm3964, 0.0
    %3999 = vst.msk [vmem:[#allocation3 + $0xe9] sm:$0x1] %vm3964, 0.0
    %4000 = vst.msk [vmem:[#allocation3 + $0xf9] sm:$0x1] %vm3964, 0.0
    %4001 = vst.msk [vmem:[#allocation3 + $0x109] sm:$0x1] %vm3964, 0.0
    %4002 = vst.msk [vmem:[#allocation3 + $0x119] sm:$0x1] %vm3964, 0.0
    %4003 = vst.msk [vmem:[#allocation3 + $0x129] sm:$0x1] %vm3964, 0.0
    %4004 = vst.msk [vmem:[#allocation3 + $0x139] sm:$0x1] %vm3964, 0.0
    %s4005 = scalar_lea.vmem [#allocation3], 16
    %4006 = vst.msk [vmem:[%s4005 + $0x1] sm:$0xff] %vm3229, %v3938
    %4007 = vst.msk [vmem:[%s4005 + $0x11] sm:$0xff] %vm3229, %v3939
    %4008 = vst.msk [vmem:[%s4005 + $0x21] sm:$0xff] %vm3229, %v3940
    %4009 = vst.msk [vmem:[%s4005 + $0x31] sm:$0xff] %vm3229, %v3941
    %4010 = vst.msk [vmem:[%s4005 + $0x41] sm:$0xff] %vm3229, %v3942
    %4011 = vst.msk [vmem:[%s4005 + $0x51] sm:$0xff] %vm3229, %v3943
    %4012 = vst.msk [vmem:[%s4005 + $0x61] sm:$0xff] %vm3229, %v3944
    %4013 = vst.msk [vmem:[%s4005 + $0x71] sm:$0xff] %vm3229, %v3945
    %4014 = vst.msk [vmem:[%s4005 + $0xa1] sm:$0xff] %vm3229, %v3946
    %4015 = vst.msk [vmem:[%s4005 + $0xb1] sm:$0xff] %vm3229, %v3947
    %4016 = vst.msk [vmem:[%s4005 + $0xc1] sm:$0xff] %vm3229, %v3948
    %4017 = vst.msk [vmem:[%s4005 + $0xd1] sm:$0xff] %vm3229, %v3949
    %4018 = vst.msk [vmem:[%s4005 + $0xe1] sm:$0xff] %vm3229, %v3950
    %4019 = vst.msk [vmem:[%s4005 + $0xf1] sm:$0xff] %vm3229, %v3951
    %4020 = vst.msk [vmem:[%s4005 + $0x101] sm:$0xff] %vm3229, %v3952
    %4021 = vst.msk [vmem:[%s4005 + $0x111] sm:$0xff] %vm3229, %v3953
    %v4022 = vld [vmem:[#allocation3] sm:$0xff]
    %v4023 = vld [vmem:[#allocation3 + $0x10] sm:$0xff]
    %v4024 = vld [vmem:[#allocation3 + $0x20] sm:$0xff]
    %v4025 = vld [vmem:[#allocation3 + $0x30] sm:$0xff]
    %v4026 = vld [vmem:[#allocation3 + $0x40] sm:$0xff]
    %v4027 = vld [vmem:[#allocation3 + $0x50] sm:$0xff]
    %v4028 = vld [vmem:[#allocation3 + $0x60] sm:$0xff]
    %v4029 = vld [vmem:[#allocation3 + $0x70] sm:$0xff]
    %v4030 = vld [vmem:[#allocation3 + $0xa0] sm:$0xff]
    %v4031 = vld [vmem:[#allocation3 + $0xb0] sm:$0xff]
    %v4032 = vld [vmem:[#allocation3 + $0xc0] sm:$0xff]
    %v4033 = vld [vmem:[#allocation3 + $0xd0] sm:$0xff]
    %v4034 = vld [vmem:[#allocation3 + $0xe0] sm:$0xff]
    %v4035 = vld [vmem:[#allocation3 + $0xf0] sm:$0xff]
    %v4036 = vld [vmem:[#allocation3 + $0x100] sm:$0xff]
    %v4037 = vld [vmem:[#allocation3 + $0x110] sm:$0xff]
    %v4038 = vld [vmem:[#allocation3 + $0x1] sm:$0xff]
    %v4039 = vld [vmem:[#allocation3 + $0x11] sm:$0xff]
    %v4040 = vld [vmem:[#allocation3 + $0x21] sm:$0xff]
    %v4041 = vld [vmem:[#allocation3 + $0x31] sm:$0xff]
    %v4042 = vld [vmem:[#allocation3 + $0x41] sm:$0xff]
    %v4043 = vld [vmem:[#allocation3 + $0x51] sm:$0xff]
    %v4044 = vld [vmem:[#allocation3 + $0x61] sm:$0xff]
    %v4045 = vld [vmem:[#allocation3 + $0x71] sm:$0xff]
    %v4046 = vld [vmem:[#allocation3 + $0xa1] sm:$0xff]
    %v4047 = vld [vmem:[#allocation3 + $0xb1] sm:$0xff]
    %v4048 = vld [vmem:[#allocation3 + $0xc1] sm:$0xff]
    %v4049 = vld [vmem:[#allocation3 + $0xd1] sm:$0xff]
    %v4050 = vld [vmem:[#allocation3 + $0xe1] sm:$0xff]
    %v4051 = vld [vmem:[#allocation3 + $0xf1] sm:$0xff]
    %v4052 = vld [vmem:[#allocation3 + $0x101] sm:$0xff]
    %v4053 = vld [vmem:[#allocation3 + $0x111] sm:$0xff]
    %v4054 = vld [vmem:[#allocation3 + $0x2] sm:$0xff]
    %v4055 = vld [vmem:[#allocation3 + $0x12] sm:$0xff]
    %v4056 = vld [vmem:[#allocation3 + $0x22] sm:$0xff]
    %v4057 = vld [vmem:[#allocation3 + $0x32] sm:$0xff]
    %v4058 = vld [vmem:[#allocation3 + $0x42] sm:$0xff]
    %v4059 = vld [vmem:[#allocation3 + $0x52] sm:$0xff]
    %v4060 = vld [vmem:[#allocation3 + $0x62] sm:$0xff]
    %v4061 = vld [vmem:[#allocation3 + $0x72] sm:$0xff]
    %v4062 = vld [vmem:[#allocation3 + $0xa2] sm:$0xff]
    %v4063 = vld [vmem:[#allocation3 + $0xb2] sm:$0xff]
    %v4064 = vld [vmem:[#allocation3 + $0xc2] sm:$0xff]
    %v4065 = vld [vmem:[#allocation3 + $0xd2] sm:$0xff]
    %v4066 = vld [vmem:[#allocation3 + $0xe2] sm:$0xff]
    %v4067 = vld [vmem:[#allocation3 + $0xf2] sm:$0xff]
    %v4068 = vld [vmem:[#allocation3 + $0x102] sm:$0xff]
    %v4069 = vld [vmem:[#allocation3 + $0x112] sm:$0xff]
    %v4070 = vld [vmem:[%s4005] sm:$0xff]
    %v4071 = vld [vmem:[%s4005 + $0x10] sm:$0xff]
    %v4072 = vld [vmem:[%s4005 + $0x20] sm:$0xff]
    %v4073 = vld [vmem:[%s4005 + $0x30] sm:$0xff]
    %v4074 = vld [vmem:[%s4005 + $0x40] sm:$0xff]
    %v4075 = vld [vmem:[%s4005 + $0x50] sm:$0xff]
    %v4076 = vld [vmem:[%s4005 + $0x60] sm:$0xff]
    %v4077 = vld [vmem:[%s4005 + $0x70] sm:$0xff]
    %v4078 = vld [vmem:[%s4005 + $0xa0] sm:$0xff]
    %v4079 = vld [vmem:[%s4005 + $0xb0] sm:$0xff]
    %v4080 = vld [vmem:[%s4005 + $0xc0] sm:$0xff]
    %v4081 = vld [vmem:[%s4005 + $0xd0] sm:$0xff]
    %v4082 = vld [vmem:[%s4005 + $0xe0] sm:$0xff]
    %v4083 = vld [vmem:[%s4005 + $0xf0] sm:$0xff]
    %v4084 = vld [vmem:[%s4005 + $0x100] sm:$0xff]
    %v4085 = vld [vmem:[%s4005 + $0x110] sm:$0xff]
    %v4086 = vld [vmem:[%s4005 + $0x1] sm:$0xff]
    %v4087 = vld [vmem:[%s4005 + $0x11] sm:$0xff]
    %v4088 = vld [vmem:[%s4005 + $0x21] sm:$0xff]
    %v4089 = vld [vmem:[%s4005 + $0x31] sm:$0xff]
    %v4090 = vld [vmem:[%s4005 + $0x41] sm:$0xff]
    %v4091 = vld [vmem:[%s4005 + $0x51] sm:$0xff]
    %v4092 = vld [vmem:[%s4005 + $0x61] sm:$0xff]
    %v4093 = vld [vmem:[%s4005 + $0x71] sm:$0xff]
    %v4094 = vld [vmem:[%s4005 + $0xa1] sm:$0xff]
    %v4095 = vld [vmem:[%s4005 + $0xb1] sm:$0xff]
    %v4096 = vld [vmem:[%s4005 + $0xc1] sm:$0xff]
    %v4097 = vld [vmem:[%s4005 + $0xd1] sm:$0xff]
    %v4098 = vld [vmem:[%s4005 + $0xe1] sm:$0xff]
    %v4099 = vld [vmem:[%s4005 + $0xf1] sm:$0xff]
    %v4100 = vld [vmem:[%s4005 + $0x101] sm:$0xff]
    %v4101 = vld [vmem:[%s4005 + $0x111] sm:$0xff]
    %v4102 = vld [vmem:[%s4005 + $0x2] sm:$0xff]
    %v4103 = vld [vmem:[%s4005 + $0x12] sm:$0xff]
    %v4104 = vld [vmem:[%s4005 + $0x22] sm:$0xff]
    %v4105 = vld [vmem:[%s4005 + $0x32] sm:$0xff]
    %v4106 = vld [vmem:[%s4005 + $0x42] sm:$0xff]
    %v4107 = vld [vmem:[%s4005 + $0x52] sm:$0xff]
    %v4108 = vld [vmem:[%s4005 + $0x62] sm:$0xff]
    %v4109 = vld [vmem:[%s4005 + $0x72] sm:$0xff]
    %v4110 = vld [vmem:[%s4005 + $0xa2] sm:$0xff]
    %v4111 = vld [vmem:[%s4005 + $0xb2] sm:$0xff]
    %v4112 = vld [vmem:[%s4005 + $0xc2] sm:$0xff]
    %v4113 = vld [vmem:[%s4005 + $0xd2] sm:$0xff]
    %v4114 = vld [vmem:[%s4005 + $0xe2] sm:$0xff]
    %v4115 = vld [vmem:[%s4005 + $0xf2] sm:$0xff]
    %v4116 = vld [vmem:[%s4005 + $0x102] sm:$0xff]
    %v4117 = vld [vmem:[%s4005 + $0x112] sm:$0xff]
    %s4118 = scalar_lea.vmem [#allocation3], 32
    %v4119 = vld [vmem:[%s4118] sm:$0xff]
    %v4120 = vld [vmem:[%s4118 + $0x10] sm:$0xff]
    %v4121 = vld [vmem:[%s4118 + $0x20] sm:$0xff]
    %v4122 = vld [vmem:[%s4118 + $0x30] sm:$0xff]
    %v4123 = vld [vmem:[%s4118 + $0x40] sm:$0xff]
    %v4124 = vld [vmem:[%s4118 + $0x50] sm:$0xff]
    %v4125 = vld [vmem:[%s4118 + $0x60] sm:$0xff]
    %v4126 = vld [vmem:[%s4118 + $0x70] sm:$0xff]
    %v4127 = vld [vmem:[%s4118 + $0xa0] sm:$0xff]
    %v4128 = vld [vmem:[%s4118 + $0xb0] sm:$0xff]
    %v4129 = vld [vmem:[%s4118 + $0xc0] sm:$0xff]
    %v4130 = vld [vmem:[%s4118 + $0xd0] sm:$0xff]
    %v4131 = vld [vmem:[%s4118 + $0xe0] sm:$0xff]
    %v4132 = vld [vmem:[%s4118 + $0xf0] sm:$0xff]
    %v4133 = vld [vmem:[%s4118 + $0x100] sm:$0xff]
    %v4134 = vld [vmem:[%s4118 + $0x110] sm:$0xff]
    %v4135 = vld [vmem:[%s4118 + $0x1] sm:$0xff]
    %v4136 = vld [vmem:[%s4118 + $0x11] sm:$0xff]
    %v4137 = vld [vmem:[%s4118 + $0x21] sm:$0xff]
    %v4138 = vld [vmem:[%s4118 + $0x31] sm:$0xff]
    %v4139 = vld [vmem:[%s4118 + $0x41] sm:$0xff]
    %v4140 = vld [vmem:[%s4118 + $0x51] sm:$0xff]
    %v4141 = vld [vmem:[%s4118 + $0x61] sm:$0xff]
    %v4142 = vld [vmem:[%s4118 + $0x71] sm:$0xff]
    %v4143 = vld [vmem:[%s4118 + $0xa1] sm:$0xff]
    %v4144 = vld [vmem:[%s4118 + $0xb1] sm:$0xff]
    %v4145 = vld [vmem:[%s4118 + $0xc1] sm:$0xff]
    %v4146 = vld [vmem:[%s4118 + $0xd1] sm:$0xff]
    %v4147 = vld [vmem:[%s4118 + $0xe1] sm:$0xff]
    %v4148 = vld [vmem:[%s4118 + $0xf1] sm:$0xff]
    %v4149 = vld [vmem:[%s4118 + $0x101] sm:$0xff]
    %v4150 = vld [vmem:[%s4118 + $0x111] sm:$0xff]
    %v4151 = vld [vmem:[%s4118 + $0x2] sm:$0xff]
    %v4152 = vld [vmem:[%s4118 + $0x12] sm:$0xff]
    %v4153 = vld [vmem:[%s4118 + $0x22] sm:$0xff]
    %v4154 = vld [vmem:[%s4118 + $0x32] sm:$0xff]
    %v4155 = vld [vmem:[%s4118 + $0x42] sm:$0xff]
    %v4156 = vld [vmem:[%s4118 + $0x52] sm:$0xff]
    %v4157 = vld [vmem:[%s4118 + $0x62] sm:$0xff]
    %v4158 = vld [vmem:[%s4118 + $0x72] sm:$0xff]
    %v4159 = vld [vmem:[%s4118 + $0xa2] sm:$0xff]
    %v4160 = vld [vmem:[%s4118 + $0xb2] sm:$0xff]
    %v4161 = vld [vmem:[%s4118 + $0xc2] sm:$0xff]
    %v4162 = vld [vmem:[%s4118 + $0xd2] sm:$0xff]
    %v4163 = vld [vmem:[%s4118 + $0xe2] sm:$0xff]
    %v4164 = vld [vmem:[%s4118 + $0xf2] sm:$0xff]
    %v4165 = vld [vmem:[%s4118 + $0x102] sm:$0xff]
    %v4166 = vld [vmem:[%s4118 + $0x112] sm:$0xff]
    %4183 = vrot.lane.b32.xlu0 %v4038, 8
    %v4184 = vpop.permute.xlu0 %4183
    %4185 = vrot.lane.b32.xlu0 %v4039, 8
    %v4186 = vpop.permute.xlu0 %4185
    %4187 = vrot.lane.b32.xlu0 %v4040, 8
    %v4188 = vpop.permute.xlu0 %4187
    %4189 = vrot.lane.b32.xlu0 %v4041, 8
    %v4190 = vpop.permute.xlu0 %4189
    %4191 = vrot.lane.b32.xlu0 %v4042, 8
    %v4192 = vpop.permute.xlu0 %4191
    %4193 = vrot.lane.b32.xlu0 %v4043, 8
    %v4194 = vpop.permute.xlu0 %4193
    %4195 = vrot.lane.b32.xlu0 %v4044, 8
    %v4196 = vpop.permute.xlu0 %4195
    %4197 = vrot.lane.b32.xlu0 %v4045, 8
    %v4198 = vpop.permute.xlu0 %4197
    %4199 = vrot.lane.b32.xlu0 %v4046, 8
    %v4200 = vpop.permute.xlu0 %4199
    %4201 = vrot.lane.b32.xlu0 %v4047, 8
    %v4202 = vpop.permute.xlu0 %4201
    %4203 = vrot.lane.b32.xlu0 %v4048, 8
    %v4204 = vpop.permute.xlu0 %4203
    %4205 = vrot.lane.b32.xlu0 %v4049, 8
    %v4206 = vpop.permute.xlu0 %4205
    %4207 = vrot.lane.b32.xlu0 %v4050, 8
    %v4208 = vpop.permute.xlu0 %4207
    %4209 = vrot.lane.b32.xlu0 %v4051, 8
    %v4210 = vpop.permute.xlu0 %4209
    %4211 = vrot.lane.b32.xlu0 %v4052, 8
    %v4212 = vpop.permute.xlu0 %4211
    %4213 = vrot.lane.b32.xlu0 %v4053, 8
    %v4214 = vpop.permute.xlu0 %4213
    %4247 = vrot.lane.b32.xlu0 %v4054, 16
    %v4248 = vpop.permute.xlu0 %4247
    %4249 = vrot.lane.b32.xlu0 %v4055, 16
    %v4250 = vpop.permute.xlu0 %4249
    %4251 = vrot.lane.b32.xlu0 %v4056, 16
    %v4252 = vpop.permute.xlu0 %4251
    %4253 = vrot.lane.b32.xlu0 %v4057, 16
    %v4254 = vpop.permute.xlu0 %4253
    %4255 = vrot.lane.b32.xlu0 %v4058, 16
    %v4256 = vpop.permute.xlu0 %4255
    %4257 = vrot.lane.b32.xlu0 %v4059, 16
    %v4258 = vpop.permute.xlu0 %4257
    %4259 = vrot.lane.b32.xlu0 %v4060, 16
    %v4260 = vpop.permute.xlu0 %4259
    %4261 = vrot.lane.b32.xlu0 %v4061, 16
    %v4262 = vpop.permute.xlu0 %4261
    %4263 = vrot.lane.b32.xlu0 %v4062, 16
    %v4264 = vpop.permute.xlu0 %4263
    %4265 = vrot.lane.b32.xlu0 %v4063, 16
    %v4266 = vpop.permute.xlu0 %4265
    %4267 = vrot.lane.b32.xlu0 %v4064, 16
    %v4268 = vpop.permute.xlu0 %4267
    %4269 = vrot.lane.b32.xlu0 %v4065, 16
    %v4270 = vpop.permute.xlu0 %4269
    %4271 = vrot.lane.b32.xlu0 %v4066, 16
    %v4272 = vpop.permute.xlu0 %4271
    %4273 = vrot.lane.b32.xlu0 %v4067, 16
    %v4274 = vpop.permute.xlu0 %4273
    %4275 = vrot.lane.b32.xlu0 %v4068, 16
    %v4276 = vpop.permute.xlu0 %4275
    %4277 = vrot.lane.b32.xlu0 %v4069, 16
    %v4278 = vpop.permute.xlu0 %4277
    %4311 = vrot.lane.b32.xlu0 %v4070, 24
    %v4312 = vpop.permute.xlu0 %4311
    %4313 = vrot.lane.b32.xlu0 %v4071, 24
    %v4314 = vpop.permute.xlu0 %4313
    %4315 = vrot.lane.b32.xlu0 %v4072, 24
    %v4316 = vpop.permute.xlu0 %4315
    %4317 = vrot.lane.b32.xlu0 %v4073, 24
    %v4318 = vpop.permute.xlu0 %4317
    %4319 = vrot.lane.b32.xlu0 %v4074, 24
    %v4320 = vpop.permute.xlu0 %4319
    %4321 = vrot.lane.b32.xlu0 %v4075, 24
    %v4322 = vpop.permute.xlu0 %4321
    %4323 = vrot.lane.b32.xlu0 %v4076, 24
    %v4324 = vpop.permute.xlu0 %4323
    %4325 = vrot.lane.b32.xlu0 %v4077, 24
    %v4326 = vpop.permute.xlu0 %4325
    %4327 = vrot.lane.b32.xlu0 %v4078, 24
    %v4328 = vpop.permute.xlu0 %4327
    %4329 = vrot.lane.b32.xlu0 %v4079, 24
    %v4330 = vpop.permute.xlu0 %4329
    %4331 = vrot.lane.b32.xlu0 %v4080, 24
    %v4332 = vpop.permute.xlu0 %4331
    %4333 = vrot.lane.b32.xlu0 %v4081, 24
    %v4334 = vpop.permute.xlu0 %4333
    %4335 = vrot.lane.b32.xlu0 %v4082, 24
    %v4336 = vpop.permute.xlu0 %4335
    %4337 = vrot.lane.b32.xlu0 %v4083, 24
    %v4338 = vpop.permute.xlu0 %4337
    %4339 = vrot.lane.b32.xlu0 %v4084, 24
    %v4340 = vpop.permute.xlu0 %4339
    %4341 = vrot.lane.b32.xlu0 %v4085, 24
    %v4342 = vpop.permute.xlu0 %4341
    %4375 = vrot.lane.b32.xlu0 %v4086, 32
    %v4376 = vpop.permute.xlu0 %4375
    %4377 = vrot.lane.b32.xlu0 %v4087, 32
    %v4378 = vpop.permute.xlu0 %4377
    %4379 = vrot.lane.b32.xlu0 %v4088, 32
    %v4380 = vpop.permute.xlu0 %4379
    %4381 = vrot.lane.b32.xlu0 %v4089, 32
    %v4382 = vpop.permute.xlu0 %4381
    %4383 = vrot.lane.b32.xlu0 %v4090, 32
    %v4384 = vpop.permute.xlu0 %4383
    %4385 = vrot.lane.b32.xlu0 %v4091, 32
    %v4386 = vpop.permute.xlu0 %4385
    %4387 = vrot.lane.b32.xlu0 %v4092, 32
    %v4388 = vpop.permute.xlu0 %4387
    %4389 = vrot.lane.b32.xlu0 %v4093, 32
    %v4390 = vpop.permute.xlu0 %4389
    %4391 = vrot.lane.b32.xlu0 %v4094, 32
    %v4392 = vpop.permute.xlu0 %4391
    %4393 = vrot.lane.b32.xlu0 %v4095, 32
    %v4394 = vpop.permute.xlu0 %4393
    %4395 = vrot.lane.b32.xlu0 %v4096, 32
    %v4396 = vpop.permute.xlu0 %4395
    %4397 = vrot.lane.b32.xlu0 %v4097, 32
    %v4398 = vpop.permute.xlu0 %4397
    %4399 = vrot.lane.b32.xlu0 %v4098, 32
    %v4400 = vpop.permute.xlu0 %4399
    %4401 = vrot.lane.b32.xlu0 %v4099, 32
    %v4402 = vpop.permute.xlu0 %4401
    %4403 = vrot.lane.b32.xlu0 %v4100, 32
    %v4404 = vpop.permute.xlu0 %4403
    %4405 = vrot.lane.b32.xlu0 %v4101, 32
    %v4406 = vpop.permute.xlu0 %4405
    %4439 = vrot.lane.b32.xlu0 %v4102, 40
    %v4440 = vpop.permute.xlu0 %4439
    %4441 = vrot.lane.b32.xlu0 %v4103, 40
    %v4442 = vpop.permute.xlu0 %4441
    %4443 = vrot.lane.b32.xlu0 %v4104, 40
    %v4444 = vpop.permute.xlu0 %4443
    %4445 = vrot.lane.b32.xlu0 %v4105, 40
    %v4446 = vpop.permute.xlu0 %4445
    %4447 = vrot.lane.b32.xlu0 %v4106, 40
    %v4448 = vpop.permute.xlu0 %4447
    %4449 = vrot.lane.b32.xlu0 %v4107, 40
    %v4450 = vpop.permute.xlu0 %4449
    %4451 = vrot.lane.b32.xlu0 %v4108, 40
    %v4452 = vpop.permute.xlu0 %4451
    %4453 = vrot.lane.b32.xlu0 %v4109, 40
    %v4454 = vpop.permute.xlu0 %4453
    %4455 = vrot.lane.b32.xlu0 %v4110, 40
    %v4456 = vpop.permute.xlu0 %4455
    %4457 = vrot.lane.b32.xlu0 %v4111, 40
    %v4458 = vpop.permute.xlu0 %4457
    %4459 = vrot.lane.b32.xlu0 %v4112, 40
    %v4460 = vpop.permute.xlu0 %4459
    %4461 = vrot.lane.b32.xlu0 %v4113, 40
    %v4462 = vpop.permute.xlu0 %4461
    %4463 = vrot.lane.b32.xlu0 %v4114, 40
    %v4464 = vpop.permute.xlu0 %4463
    %4465 = vrot.lane.b32.xlu0 %v4115, 40
    %v4466 = vpop.permute.xlu0 %4465
    %4467 = vrot.lane.b32.xlu0 %v4116, 40
    %v4468 = vpop.permute.xlu0 %4467
    %4469 = vrot.lane.b32.xlu0 %v4117, 40
    %v4470 = vpop.permute.xlu0 %4469
    %4503 = vrot.lane.b32.xlu0 %v4119, 48
    %v4504 = vpop.permute.xlu0 %4503
    %4505 = vrot.lane.b32.xlu0 %v4120, 48
    %v4506 = vpop.permute.xlu0 %4505
    %4507 = vrot.lane.b32.xlu0 %v4121, 48
    %v4508 = vpop.permute.xlu0 %4507
    %4509 = vrot.lane.b32.xlu0 %v4122, 48
    %v4510 = vpop.permute.xlu0 %4509
    %4511 = vrot.lane.b32.xlu0 %v4123, 48
    %v4512 = vpop.permute.xlu0 %4511
    %4513 = vrot.lane.b32.xlu0 %v4124, 48
    %v4514 = vpop.permute.xlu0 %4513
    %4515 = vrot.lane.b32.xlu0 %v4125, 48
    %v4516 = vpop.permute.xlu0 %4515
    %4517 = vrot.lane.b32.xlu0 %v4126, 48
    %v4518 = vpop.permute.xlu0 %4517
    %4519 = vrot.lane.b32.xlu0 %v4127, 48
    %v4520 = vpop.permute.xlu0 %4519
    %4521 = vrot.lane.b32.xlu0 %v4128, 48
    %v4522 = vpop.permute.xlu0 %4521
    %4523 = vrot.lane.b32.xlu0 %v4129, 48
    %v4524 = vpop.permute.xlu0 %4523
    %4525 = vrot.lane.b32.xlu0 %v4130, 48
    %v4526 = vpop.permute.xlu0 %4525
    %4527 = vrot.lane.b32.xlu0 %v4131, 48
    %v4528 = vpop.permute.xlu0 %4527
    %4529 = vrot.lane.b32.xlu0 %v4132, 48
    %v4530 = vpop.permute.xlu0 %4529
    %4531 = vrot.lane.b32.xlu0 %v4133, 48
    %v4532 = vpop.permute.xlu0 %4531
    %4533 = vrot.lane.b32.xlu0 %v4134, 48
    %v4534 = vpop.permute.xlu0 %4533
    %4567 = vrot.lane.b32.xlu0 %v4135, 56
    %v4568 = vpop.permute.xlu0 %4567
    %4569 = vrot.lane.b32.xlu0 %v4136, 56
    %v4570 = vpop.permute.xlu0 %4569
    %4571 = vrot.lane.b32.xlu0 %v4137, 56
    %v4572 = vpop.permute.xlu0 %4571
    %4573 = vrot.lane.b32.xlu0 %v4138, 56
    %v4574 = vpop.permute.xlu0 %4573
    %4575 = vrot.lane.b32.xlu0 %v4139, 56
    %v4576 = vpop.permute.xlu0 %4575
    %4577 = vrot.lane.b32.xlu0 %v4140, 56
    %v4578 = vpop.permute.xlu0 %4577
    %4579 = vrot.lane.b32.xlu0 %v4141, 56
    %v4580 = vpop.permute.xlu0 %4579
    %4581 = vrot.lane.b32.xlu0 %v4142, 56
    %v4582 = vpop.permute.xlu0 %4581
    %4583 = vrot.lane.b32.xlu0 %v4143, 56
    %v4584 = vpop.permute.xlu0 %4583
    %4585 = vrot.lane.b32.xlu0 %v4144, 56
    %v4586 = vpop.permute.xlu0 %4585
    %4587 = vrot.lane.b32.xlu0 %v4145, 56
    %v4588 = vpop.permute.xlu0 %4587
    %4589 = vrot.lane.b32.xlu0 %v4146, 56
    %v4590 = vpop.permute.xlu0 %4589
    %4591 = vrot.lane.b32.xlu0 %v4147, 56
    %v4592 = vpop.permute.xlu0 %4591
    %4593 = vrot.lane.b32.xlu0 %v4148, 56
    %v4594 = vpop.permute.xlu0 %4593
    %4595 = vrot.lane.b32.xlu0 %v4149, 56
    %v4596 = vpop.permute.xlu0 %4595
    %4597 = vrot.lane.b32.xlu0 %v4150, 56
    %v4598 = vpop.permute.xlu0 %4597
    %4631 = vrot.lane.b32.xlu0 %v4151, 64
    %v4632 = vpop.permute.xlu0 %4631
    %4633 = vrot.lane.b32.xlu0 %v4152, 64
    %v4634 = vpop.permute.xlu0 %4633
    %4635 = vrot.lane.b32.xlu0 %v4153, 64
    %v4636 = vpop.permute.xlu0 %4635
    %4637 = vrot.lane.b32.xlu0 %v4154, 64
    %v4638 = vpop.permute.xlu0 %4637
    %4639 = vrot.lane.b32.xlu0 %v4155, 64
    %v4640 = vpop.permute.xlu0 %4639
    %4641 = vrot.lane.b32.xlu0 %v4156, 64
    %v4642 = vpop.permute.xlu0 %4641
    %4643 = vrot.lane.b32.xlu0 %v4157, 64
    %v4644 = vpop.permute.xlu0 %4643
    %4645 = vrot.lane.b32.xlu0 %v4158, 64
    %v4646 = vpop.permute.xlu0 %4645
    %4647 = vrot.lane.b32.xlu0 %v4159, 64
    %v4648 = vpop.permute.xlu0 %4647
    %4649 = vrot.lane.b32.xlu0 %v4160, 64
    %v4650 = vpop.permute.xlu0 %4649
    %4651 = vrot.lane.b32.xlu0 %v4161, 64
    %v4652 = vpop.permute.xlu0 %4651
    %4653 = vrot.lane.b32.xlu0 %v4162, 64
    %v4654 = vpop.permute.xlu0 %4653
    %4655 = vrot.lane.b32.xlu0 %v4163, 64
    %v4656 = vpop.permute.xlu0 %4655
    %4657 = vrot.lane.b32.xlu0 %v4164, 64
    %v4658 = vpop.permute.xlu0 %4657
    %4659 = vrot.lane.b32.xlu0 %v4165, 64
    %v4660 = vpop.permute.xlu0 %4659
    %4661 = vrot.lane.b32.xlu0 %v4166, 64
    %v4662 = vpop.permute.xlu0 %4661
    %v4679 = vsel %vm3229, %v4022, %v4184
    %v4680 = vsel %vm3229, %v4023, %v4186
    %v4681 = vsel %vm3229, %v4024, %v4188
    %v4682 = vsel %vm3229, %v4025, %v4190
    %v4683 = vsel %vm3229, %v4026, %v4192
    %v4684 = vsel %vm3229, %v4027, %v4194
    %v4685 = vsel %vm3229, %v4028, %v4196
    %v4686 = vsel %vm3229, %v4029, %v4198
    %v4687 = vsel %vm3229, %v4030, %v4200
    %v4688 = vsel %vm3229, %v4031, %v4202
    %v4689 = vsel %vm3229, %v4032, %v4204
    %v4690 = vsel %vm3229, %v4033, %v4206
    %v4691 = vsel %vm3229, %v4034, %v4208
    %v4692 = vsel %vm3229, %v4035, %v4210
    %v4693 = vsel %vm3229, %v4036, %v4212
    %v4694 = vsel %vm3229, %v4037, %v4214
    %v4695 = vsel %vm3263, %v4679, %v4248
    %v4696 = vsel %vm3263, %v4680, %v4250
    %v4697 = vsel %vm3263, %v4681, %v4252
    %v4698 = vsel %vm3263, %v4682, %v4254
    %v4699 = vsel %vm3263, %v4683, %v4256
    %v4700 = vsel %vm3263, %v4684, %v4258
    %v4701 = vsel %vm3263, %v4685, %v4260
    %v4702 = vsel %vm3263, %v4686, %v4262
    %v4703 = vsel %vm3263, %v4687, %v4264
    %v4704 = vsel %vm3263, %v4688, %v4266
    %v4705 = vsel %vm3263, %v4689, %v4268
    %v4706 = vsel %vm3263, %v4690, %v4270
    %v4707 = vsel %vm3263, %v4691, %v4272
    %v4708 = vsel %vm3263, %v4692, %v4274
    %v4709 = vsel %vm3263, %v4693, %v4276
    %v4710 = vsel %vm3263, %v4694, %v4278
    %v4711 = vsel %vm3297, %v4695, %v4312
    %v4712 = vsel %vm3297, %v4696, %v4314
    %v4713 = vsel %vm3297, %v4697, %v4316
    %v4714 = vsel %vm3297, %v4698, %v4318
    %v4715 = vsel %vm3297, %v4699, %v4320
    %v4716 = vsel %vm3297, %v4700, %v4322
    %v4717 = vsel %vm3297, %v4701, %v4324
    %v4718 = vsel %vm3297, %v4702, %v4326
    %v4719 = vsel %vm3297, %v4703, %v4328
    %v4720 = vsel %vm3297, %v4704, %v4330
    %v4721 = vsel %vm3297, %v4705, %v4332
    %v4722 = vsel %vm3297, %v4706, %v4334
    %v4723 = vsel %vm3297, %v4707, %v4336
    %v4724 = vsel %vm3297, %v4708, %v4338
    %v4725 = vsel %vm3297, %v4709, %v4340
    %v4726 = vsel %vm3297, %v4710, %v4342
    %v4727 = vsel %vm3331, %v4711, %v4376
    %v4728 = vsel %vm3331, %v4712, %v4378
    %v4729 = vsel %vm3331, %v4713, %v4380
    %v4730 = vsel %vm3331, %v4714, %v4382
    %v4731 = vsel %vm3331, %v4715, %v4384
    %v4732 = vsel %vm3331, %v4716, %v4386
    %v4733 = vsel %vm3331, %v4717, %v4388
    %v4734 = vsel %vm3331, %v4718, %v4390
    %v4735 = vsel %vm3331, %v4719, %v4392
    %v4736 = vsel %vm3331, %v4720, %v4394
    %v4737 = vsel %vm3331, %v4721, %v4396
    %v4738 = vsel %vm3331, %v4722, %v4398
    %v4739 = vsel %vm3331, %v4723, %v4400
    %v4740 = vsel %vm3331, %v4724, %v4402
    %v4741 = vsel %vm3331, %v4725, %v4404
    %v4742 = vsel %vm3331, %v4726, %v4406
    %vm4743 = vcmask 326656
    %v4744 = vsel %vm4743, %v4727, %v4440
    %v4745 = vsel %vm4743, %v4728, %v4442
    %v4746 = vsel %vm4743, %v4729, %v4444
    %v4747 = vsel %vm4743, %v4730, %v4446
    %v4748 = vsel %vm4743, %v4731, %v4448
    %v4749 = vsel %vm4743, %v4732, %v4450
    %v4750 = vsel %vm4743, %v4733, %v4452
    %v4751 = vsel %vm4743, %v4734, %v4454
    %v4752 = vsel %vm4743, %v4735, %v4456
    %v4753 = vsel %vm4743, %v4736, %v4458
    %v4754 = vsel %vm4743, %v4737, %v4460
    %v4755 = vsel %vm4743, %v4738, %v4462
    %v4756 = vsel %vm4743, %v4739, %v4464
    %v4757 = vsel %vm4743, %v4740, %v4466
    %v4758 = vsel %vm4743, %v4741, %v4468
    %v4759 = vsel %vm4743, %v4742, %v4470
    %vm4760 = vcmask 392192
    %v4761 = vsel %vm4760, %v4744, %v4504
    %v4762 = vsel %vm4760, %v4745, %v4506
    %v4763 = vsel %vm4760, %v4746, %v4508
    %v4764 = vsel %vm4760, %v4747, %v4510
    %v4765 = vsel %vm4760, %v4748, %v4512
    %v4766 = vsel %vm4760, %v4749, %v4514
    %v4767 = vsel %vm4760, %v4750, %v4516
    %v4768 = vsel %vm4760, %v4751, %v4518
    %v4769 = vsel %vm4760, %v4752, %v4520
    %v4770 = vsel %vm4760, %v4753, %v4522
    %v4771 = vsel %vm4760, %v4754, %v4524
    %v4772 = vsel %vm4760, %v4755, %v4526
    %v4773 = vsel %vm4760, %v4756, %v4528
    %v4774 = vsel %vm4760, %v4757, %v4530
    %v4775 = vsel %vm4760, %v4758, %v4532
    %v4776 = vsel %vm4760, %v4759, %v4534
    %vm4777 = vcmask 457728
    %v4778 = vsel %vm4777, %v4761, %v4568
    %v4779 = vsel %vm4777, %v4762, %v4570
    %v4780 = vsel %vm4777, %v4763, %v4572
    %v4781 = vsel %vm4777, %v4764, %v4574
    %v4782 = vsel %vm4777, %v4765, %v4576
    %v4783 = vsel %vm4777, %v4766, %v4578
    %v4784 = vsel %vm4777, %v4767, %v4580
    %v4785 = vsel %vm4777, %v4768, %v4582
    %v4786 = vsel %vm4777, %v4769, %v4584
    %v4787 = vsel %vm4777, %v4770, %v4586
    %v4788 = vsel %vm4777, %v4771, %v4588
    %v4789 = vsel %vm4777, %v4772, %v4590
    %v4790 = vsel %vm4777, %v4773, %v4592
    %v4791 = vsel %vm4777, %v4774, %v4594
    %v4792 = vsel %vm4777, %v4775, %v4596
    %v4793 = vsel %vm4777, %v4776, %v4598
    %vm4794 = vcmask 523264
    %v4795 = vsel %vm4794, %v4778, %v4632
    %v4796 = vsel %vm4794, %v4779, %v4634
    %v4797 = vsel %vm4794, %v4780, %v4636
    %v4798 = vsel %vm4794, %v4781, %v4638
    %v4799 = vsel %vm4794, %v4782, %v4640
    %v4800 = vsel %vm4794, %v4783, %v4642
    %v4801 = vsel %vm4794, %v4784, %v4644
    %v4802 = vsel %vm4794, %v4785, %v4646
    %v4803 = vsel %vm4794, %v4786, %v4648
    %v4804 = vsel %vm4794, %v4787, %v4650
    %v4805 = vsel %vm4794, %v4788, %v4652
    %v4806 = vsel %vm4794, %v4789, %v4654
    %v4807 = vsel %vm4794, %v4790, %v4656
    %v4808 = vsel %vm4794, %v4791, %v4658
    %v4809 = vsel %vm4794, %v4792, %v4660
    %v4810 = vsel %vm4794, %v4793, %v4662
    %v4811 = vld [vmem:[%s1] sm:$0xff]
    %v4812 = vld [vmem:[%s1 + $0x8] sm:$0xff]
    %v4813 = vld [vmem:[%s1 + $0x10] sm:$0xff]
    %v4814 = vld [vmem:[%s1 + $0x18] sm:$0xff]
    %v4815 = vld [vmem:[%s1 + $0x20] sm:$0xff]
    %v4816 = vld [vmem:[%s1 + $0x28] sm:$0xff]
    %v4817 = vld [vmem:[%s1 + $0x30] sm:$0xff]
    %v4818 = vld [vmem:[%s1 + $0x38] sm:$0xff]
    %v4819 = vld [vmem:[%s1 + $0x40] sm:$0xff]
    %vm4820 = vcmask 588800
    %v4822 = vsel %vm4820, %v4795, 0
    %v4825 = vsel %vm4820, %v4796, 0
    %v4828 = vsel %vm4820, %v4797, 0
    %v4831 = vsel %vm4820, %v4798, 0
    %v4834 = vsel %vm4820, %v4799, 0
    %v4837 = vsel %vm4820, %v4800, 0
    %v4840 = vsel %vm4820, %v4801, 0
    %v4843 = vsel %vm4820, %v4802, 0
    %v4846 = vsel %vm4820, %v4803, 0
    %v4849 = vsel %vm4820, %v4804, 0
    %v4852 = vsel %vm4820, %v4805, 0
    %v4855 = vsel %vm4820, %v4806, 0
    %v4858 = vsel %vm4820, %v4807, 0
    %v4861 = vsel %vm4820, %v4808, 0
    %v4864 = vsel %vm4820, %v4809, 0
    %v4867 = vsel %vm4820, %v4810, 0
    %4869 = vmatprep.subr.mxu0 0.0
    %4870 = vmatpush1.msra.mxu0 0.0
    %4871 = vmatprep.subr.mxu0 0.0
    %4872 = vmatpush1.msra.mxu0 0.0
    %4873 = vmatprep.subr.mxu0 0.0
    %4874 = vmatpush1.msra.mxu0 0.0
    %4875 = vmatprep.subr.mxu0 0.0
    %4876 = vmatpush1.msra.mxu0 0.0
    %4877 = vmatprep.subr.mxu0 0.0
    %4878 = vmatpush1.msra.mxu0 0.0
    %4879 = vmatprep.subr.mxu0 0.0
    %4880 = vmatpush1.msra.mxu0 0.0
    %4881 = vmatprep.subr.mxu0 0.0
    %4882 = vmatpush1.msra.mxu0 0.0
    %4883 = vmatprep.subr.mxu0 0.0
    %4884 = vmatpush1.msra.mxu0 %v4819
    %4885 = vmatprep.subr.mxu0 0.0
    %4886 = vmatpush1.msra.mxu0 %v4818
    %4887 = vmatprep.subr.mxu0 0.0
    %4888 = vmatpush1.msra.mxu0 %v4817
    %4889 = vmatprep.subr.mxu0 0.0
    %4890 = vmatpush1.msra.mxu0 %v4816
    %4891 = vmatprep.subr.mxu0 0.0
    %4892 = vmatpush1.msra.mxu0 %v4815
    %4893 = vmatprep.subr.mxu0 0.0
    %4894 = vmatpush1.msra.mxu0 %v4814
    %4895 = vmatprep.subr.mxu0 0.0
    %4896 = vmatpush1.msra.mxu0 %v4813
    %4897 = vmatprep.subr.mxu0 0.0
    %4898 = vmatpush1.msra.mxu0 %v4812
    %4899 = vmatprep.subr.mxu0 0.0
    %4900 = vmatpush1.msra.mxu0 %v4811
    %4901 = vmatprep.subr.mxu0 0.0
    %4902 = vmatpush2.msra.mxu0 0.0
    %4903 = vmatprep.subr.mxu0 0.0
    %4904 = vmatpush2.msra.mxu0 0.0
    %4905 = vmatprep.subr.mxu0 0.0
    %4906 = vmatpush2.msra.mxu0 0.0
    %4907 = vmatprep.subr.mxu0 0.0
    %4908 = vmatpush2.msra.mxu0 0.0
    %4909 = vmatprep.subr.mxu0 0.0
    %4910 = vmatpush2.msra.mxu0 0.0
    %4911 = vmatprep.subr.mxu0 0.0
    %4912 = vmatpush2.msra.mxu0 0.0
    %4913 = vmatprep.subr.mxu0 0.0
    %4914 = vmatpush2.msra.mxu0 0.0
    %4915 = vmatprep.subr.mxu0 0.0
    %4916 = vmatpush2.msra.mxu0 0.0
    %4917 = vmatprep.subr.mxu0 0.0
    %4918 = vmatpush2.msra.mxu0 0.0
    %4919 = vmatprep.subr.mxu0 0.0
    %4920 = vmatpush2.msra.mxu0 0.0
    %4921 = vmatprep.subr.mxu0 0.0
    %4922 = vmatpush2.msra.mxu0 0.0
    %4923 = vmatprep.subr.mxu0 0.0
    %4924 = vmatpush2.msra.mxu0 0.0
    %4925 = vmatprep.subr.mxu0 0.0
    %4926 = vmatpush2.msra.mxu0 0.0
    %4927 = vmatprep.subr.mxu0 0.0
    %4928 = vmatpush2.msra.mxu0 0.0
    %4929 = vmatprep.subr.mxu0 0.0
    %4930 = vmatpush2.msra.mxu0 0.0
    %4931 = vmatprep.subr.mxu0 0.0
    %4932 = vmatpush2.msra.mxu0 0.0
    %4933 = vmatprep.mubr.f32.mxu0 0.0
    %4934 = vmatmul.mubr.f32.gmra.mxu0 %v4822
    %v4935 = vpop.f32.mrf.mxu0
    %v4936 = vadd.f32 0.0, %v4935
    %v4937 = vpop.f32.mrf.mxu0
    %4938 = vmatprep.mubr.f32.mxu0 0.0
    %4939 = vmatmul.mubr.f32.gmra.mxu0 %v4825
    %v4940 = vpop.f32.mrf.mxu0
    %v4941 = vadd.f32 0.0, %v4940
    %v4942 = vpop.f32.mrf.mxu0
    %4943 = vmatprep.mubr.f32.mxu0 0.0
    %4944 = vmatmul.mubr.f32.gmra.mxu0 %v4828
    %v4945 = vpop.f32.mrf.mxu0
    %v4946 = vadd.f32 0.0, %v4945
    %v4947 = vpop.f32.mrf.mxu0
    %4948 = vmatprep.mubr.f32.mxu0 0.0
    %4949 = vmatmul.mubr.f32.gmra.mxu0 %v4831
    %v4950 = vpop.f32.mrf.mxu0
    %v4951 = vadd.f32 0.0, %v4950
    %v4952 = vpop.f32.mrf.mxu0
    %4953 = vmatprep.mubr.f32.mxu0 0.0
    %4954 = vmatmul.mubr.f32.gmra.mxu0 %v4834
    %v4955 = vpop.f32.mrf.mxu0
    %v4956 = vadd.f32 0.0, %v4955
    %v4957 = vpop.f32.mrf.mxu0
    %4958 = vmatprep.mubr.f32.mxu0 0.0
    %4959 = vmatmul.mubr.f32.gmra.mxu0 %v4837
    %v4960 = vpop.f32.mrf.mxu0
    %v4961 = vadd.f32 0.0, %v4960
    %v4962 = vpop.f32.mrf.mxu0
    %4963 = vmatprep.mubr.f32.mxu0 0.0
    %4964 = vmatmul.mubr.f32.gmra.mxu0 %v4840
    %v4965 = vpop.f32.mrf.mxu0
    %v4966 = vadd.f32 0.0, %v4965
    %v4967 = vpop.f32.mrf.mxu0
    %4968 = vmatprep.mubr.f32.mxu0 0.0
    %4969 = vmatmul.mubr.f32.gmra.mxu0 %v4843
    %v4970 = vpop.f32.mrf.mxu0
    %v4971 = vadd.f32 0.0, %v4970
    %v4972 = vpop.f32.mrf.mxu0
    %4973 = vmatprep.mubr.f32.mxu0 0.0
    %4974 = vmatmul.mubr.f32.gmra.mxu0 %v4846
    %v4975 = vpop.f32.mrf.mxu0
    %v4976 = vadd.f32 0.0, %v4975
    %v4977 = vpop.f32.mrf.mxu0
    %4978 = vmatprep.mubr.f32.mxu0 0.0
    %4979 = vmatmul.mubr.f32.gmra.mxu0 %v4849
    %v4980 = vpop.f32.mrf.mxu0
    %v4981 = vadd.f32 0.0, %v4980
    %v4982 = vpop.f32.mrf.mxu0
    %4983 = vmatprep.mubr.f32.mxu0 0.0
    %4984 = vmatmul.mubr.f32.gmra.mxu0 %v4852
    %v4985 = vpop.f32.mrf.mxu0
    %v4986 = vadd.f32 0.0, %v4985
    %v4987 = vpop.f32.mrf.mxu0
    %4988 = vmatprep.mubr.f32.mxu0 0.0
    %4989 = vmatmul.mubr.f32.gmra.mxu0 %v4855
    %v4990 = vpop.f32.mrf.mxu0
    %v4991 = vadd.f32 0.0, %v4990
    %v4992 = vpop.f32.mrf.mxu0
    %4993 = vmatprep.mubr.f32.mxu0 0.0
    %4994 = vmatmul.mubr.f32.gmra.mxu0 %v4858
    %v4995 = vpop.f32.mrf.mxu0
    %v4996 = vadd.f32 0.0, %v4995
    %v4997 = vpop.f32.mrf.mxu0
    %4998 = vmatprep.mubr.f32.mxu0 0.0
    %4999 = vmatmul.mubr.f32.gmra.mxu0 %v4861
    %v5000 = vpop.f32.mrf.mxu0
    %v5001 = vadd.f32 0.0, %v5000
    %v5002 = vpop.f32.mrf.mxu0
    %5003 = vmatprep.mubr.f32.mxu0 0.0
    %5004 = vmatmul.mubr.f32.gmra.mxu0 %v4864
    %v5005 = vpop.f32.mrf.mxu0
    %v5006 = vadd.f32 0.0, %v5005
    %v5007 = vpop.f32.mrf.mxu0
    %5008 = vmatprep.mubr.f32.mxu0 0.0
    %5009 = vmatmul.mubr.f32.gmra.mxu0 %v4867
    %v5010 = vpop.f32.mrf.mxu0
    %v5011 = vadd.f32 0.0, %v5010
    %v5012 = vpop.f32.mrf.mxu0
    %5013 = vdwg.mxu0
    %v5014 = vlaneseq
    %v5015 = vshrl.u32 %v5014, 7
    %v5016 = vsub.s32 4, %v5015
    %v5017 = vrot.slane %v399, %v5016
    %v5018 = vadd.f32 %v4936, %v5017
    %v5019 = vadd.f32 %v4941, %v5017
    %v5020 = vadd.f32 %v4946, %v5017
    %v5021 = vadd.f32 %v4951, %v5017
    %v5022 = vadd.f32 %v4956, %v5017
    %v5023 = vadd.f32 %v4961, %v5017
    %v5024 = vadd.f32 %v4966, %v5017
    %v5025 = vadd.f32 %v4971, %v5017
    %v5026 = vadd.f32 %v4976, %v5017
    %v5027 = vadd.f32 %v4981, %v5017
    %v5028 = vadd.f32 %v4986, %v5017
    %v5029 = vadd.f32 %v4991, %v5017
    %v5030 = vadd.f32 %v4996, %v5017
    %v5031 = vadd.f32 %v5001, %v5017
    %v5032 = vadd.f32 %v5006, %v5017
    %v5033 = vadd.f32 %v5011, %v5017
    %v5034 = vlaneseq
    %v5035 = vshrl.u32 %v5034, 7
    %v5036 = vsub.s32 5, %v5035
    %v5037 = vrot.slane %v399, %v5036
    %5039 = vrot.lane.b32.xlu0 %v5037, 8
    %v5040 = vpop.permute.xlu0 %5039
    %v5042 = vadd.f32 %v4936, %v5040
    %v5043 = vadd.f32 %v4941, %v5040
    %v5044 = vadd.f32 %v4946, %v5040
    %v5045 = vadd.f32 %v4951, %v5040
    %v5046 = vadd.f32 %v4956, %v5040
    %v5047 = vadd.f32 %v4961, %v5040
    %v5048 = vadd.f32 %v4966, %v5040
    %v5049 = vadd.f32 %v4971, %v5040
    %v5050 = vadd.f32 %v4976, %v5040
    %v5051 = vadd.f32 %v4981, %v5040
    %v5052 = vadd.f32 %v4986, %v5040
    %v5053 = vadd.f32 %v4991, %v5040
    %v5054 = vadd.f32 %v4996, %v5040
    %v5055 = vadd.f32 %v5001, %v5040
    %v5056 = vadd.f32 %v5006, %v5040
    %v5057 = vadd.f32 %v5011, %v5040
    %v5058 = vxor.u32 %v5042, 2147483648
    %v5059 = vxor.u32 %v5043, 2147483648
    %v5060 = vxor.u32 %v5044, 2147483648
    %v5061 = vxor.u32 %v5045, 2147483648
    %v5062 = vxor.u32 %v5046, 2147483648
    %v5063 = vxor.u32 %v5047, 2147483648
    %v5064 = vxor.u32 %v5048, 2147483648
    %v5065 = vxor.u32 %v5049, 2147483648
    %v5066 = vxor.u32 %v5050, 2147483648
    %v5067 = vxor.u32 %v5051, 2147483648
    %v5068 = vxor.u32 %v5052, 2147483648
    %v5069 = vxor.u32 %v5053, 2147483648
    %v5070 = vxor.u32 %v5054, 2147483648
    %v5071 = vxor.u32 %v5055, 2147483648
    %v5072 = vxor.u32 %v5056, 2147483648
    %v5073 = vxor.u32 %v5057, 2147483648
    %v5074 = vmul.f32 %v5058, 1.442695
    %v5075 = vpow.pop %v5074
    %v5076 = vmul.f32 %v5059, 1.442695
    %v5077 = vpow.pop %v5076
    %v5078 = vmul.f32 %v5060, 1.442695
    %v5079 = vpow.pop %v5078
    %v5080 = vmul.f32 %v5061, 1.442695
    %v5081 = vpow.pop %v5080
    %v5082 = vmul.f32 %v5062, 1.442695
    %v5083 = vpow.pop %v5082
    %v5084 = vmul.f32 %v5063, 1.442695
    %v5085 = vpow.pop %v5084
    %v5086 = vmul.f32 %v5064, 1.442695
    %v5087 = vpow.pop %v5086
    %v5088 = vmul.f32 %v5065, 1.442695
    %v5089 = vpow.pop %v5088
    %v5090 = vmul.f32 %v5066, 1.442695
    %v5091 = vpow.pop %v5090
    %v5092 = vmul.f32 %v5067, 1.442695
    %v5093 = vpow.pop %v5092
    %v5094 = vmul.f32 %v5068, 1.442695
    %v5095 = vpow.pop %v5094
    %v5096 = vmul.f32 %v5069, 1.442695
    %v5097 = vpow.pop %v5096
    %v5098 = vmul.f32 %v5070, 1.442695
    %v5099 = vpow.pop %v5098
    %v5100 = vmul.f32 %v5071, 1.442695
    %v5101 = vpow.pop %v5100
    %v5102 = vmul.f32 %v5072, 1.442695
    %v5103 = vpow.pop %v5102
    %v5104 = vmul.f32 %v5073, 1.442695
    %v5105 = vpow.pop %v5104
    %v5106 = vadd.f32 %v5075, 1.0
    %v5107 = vadd.f32 %v5077, 1.0
    %v5108 = vadd.f32 %v5079, 1.0
    %v5109 = vadd.f32 %v5081, 1.0
    %v5110 = vadd.f32 %v5083, 1.0
    %v5111 = vadd.f32 %v5085, 1.0
    %v5112 = vadd.f32 %v5087, 1.0
    %v5113 = vadd.f32 %v5089, 1.0
    %v5114 = vadd.f32 %v5091, 1.0
    %v5115 = vadd.f32 %v5093, 1.0
    %v5116 = vadd.f32 %v5095, 1.0
    %v5117 = vadd.f32 %v5097, 1.0
    %v5118 = vadd.f32 %v5099, 1.0
    %v5119 = vadd.f32 %v5101, 1.0
    %v5120 = vadd.f32 %v5103, 1.0
    %v5121 = vadd.f32 %v5105, 1.0
    %v5122 = vrcp.pop %v5106
    %v5123 = vmul.f32 1.0, %v5122
    %v5124 = vrcp.pop %v5107
    %v5125 = vmul.f32 1.0, %v5124
    %v5126 = vrcp.pop %v5108
    %v5127 = vmul.f32 1.0, %v5126
    %v5128 = vrcp.pop %v5109
    %v5129 = vmul.f32 1.0, %v5128
    %v5130 = vrcp.pop %v5110
    %v5131 = vmul.f32 1.0, %v5130
    %v5132 = vrcp.pop %v5111
    %v5133 = vmul.f32 1.0, %v5132
    %v5134 = vrcp.pop %v5112
    %v5135 = vmul.f32 1.0, %v5134
    %v5136 = vrcp.pop %v5113
    %v5137 = vmul.f32 1.0, %v5136
    %v5138 = vrcp.pop %v5114
    %v5139 = vmul.f32 1.0, %v5138
    %v5140 = vrcp.pop %v5115
    %v5141 = vmul.f32 1.0, %v5140
    %v5142 = vrcp.pop %v5116
    %v5143 = vmul.f32 1.0, %v5142
    %v5144 = vrcp.pop %v5117
    %v5145 = vmul.f32 1.0, %v5144
    %v5146 = vrcp.pop %v5118
    %v5147 = vmul.f32 1.0, %v5146
    %v5148 = vrcp.pop %v5119
    %v5149 = vmul.f32 1.0, %v5148
    %v5150 = vrcp.pop %v5120
    %v5151 = vmul.f32 1.0, %v5150
    %v5152 = vrcp.pop %v5121
    %v5153 = vmul.f32 1.0, %v5152
    %5170 = vrot.lane.b32.xlu0 %v5123, 120
    %v5171 = vpop.permute.xlu0 %5170
    %5172 = vrot.lane.b32.xlu0 %v5125, 120
    %v5173 = vpop.permute.xlu0 %5172
    %5174 = vrot.lane.b32.xlu0 %v5127, 120
    %v5175 = vpop.permute.xlu0 %5174
    %5176 = vrot.lane.b32.xlu0 %v5129, 120
    %v5177 = vpop.permute.xlu0 %5176
    %5178 = vrot.lane.b32.xlu0 %v5131, 120
    %v5179 = vpop.permute.xlu0 %5178
    %5180 = vrot.lane.b32.xlu0 %v5133, 120
    %v5181 = vpop.permute.xlu0 %5180
    %5182 = vrot.lane.b32.xlu0 %v5135, 120
    %v5183 = vpop.permute.xlu0 %5182
    %5184 = vrot.lane.b32.xlu0 %v5137, 120
    %v5185 = vpop.permute.xlu0 %5184
    %5186 = vrot.lane.b32.xlu0 %v5139, 120
    %v5187 = vpop.permute.xlu0 %5186
    %5188 = vrot.lane.b32.xlu0 %v5141, 120
    %v5189 = vpop.permute.xlu0 %5188
    %5190 = vrot.lane.b32.xlu0 %v5143, 120
    %v5191 = vpop.permute.xlu0 %5190
    %5192 = vrot.lane.b32.xlu0 %v5145, 120
    %v5193 = vpop.permute.xlu0 %5192
    %5194 = vrot.lane.b32.xlu0 %v5147, 120
    %v5195 = vpop.permute.xlu0 %5194
    %5196 = vrot.lane.b32.xlu0 %v5149, 120
    %v5197 = vpop.permute.xlu0 %5196
    %5198 = vrot.lane.b32.xlu0 %v5151, 120
    %v5199 = vpop.permute.xlu0 %5198
    %5200 = vrot.lane.b32.xlu0 %v5153, 120
    %v5201 = vpop.permute.xlu0 %5200
    %v5218 = vmul.f32 %v5018, %v5171
    %v5219 = vmul.f32 %v5019, %v5173
    %v5220 = vmul.f32 %v5020, %v5175
    %v5221 = vmul.f32 %v5021, %v5177
    %v5222 = vmul.f32 %v5022, %v5179
    %v5223 = vmul.f32 %v5023, %v5181
    %v5224 = vmul.f32 %v5024, %v5183
    %v5225 = vmul.f32 %v5025, %v5185
    %v5226 = vmul.f32 %v5026, %v5187
    %v5227 = vmul.f32 %v5027, %v5189
    %v5228 = vmul.f32 %v5028, %v5191
    %v5229 = vmul.f32 %v5029, %v5193
    %v5230 = vmul.f32 %v5030, %v5195
    %v5231 = vmul.f32 %v5031, %v5197
    %v5232 = vmul.f32 %v5032, %v5199
    %v5233 = vmul.f32 %v5033, %v5201
    %v5234 = vsel %vm3229, %v5218, 0.0
    %v5235 = vsel %vm3229, %v5219, 0.0
    %v5236 = vadd.f32 %v5234, %v5235
    %v5237 = vsel %vm3229, %v5220, 0.0
    %v5238 = vadd.f32 %v5236, %v5237
    %v5239 = vsel %vm3229, %v5221, 0.0
    %v5240 = vadd.f32 %v5238, %v5239
    %v5241 = vsel %vm3229, %v5222, 0.0
    %v5242 = vadd.f32 %v5240, %v5241
    %v5243 = vsel %vm3229, %v5223, 0.0
    %v5244 = vadd.f32 %v5242, %v5243
    %v5245 = vsel %vm3229, %v5224, 0.0
    %v5246 = vadd.f32 %v5244, %v5245
    %v5247 = vsel %vm3229, %v5225, 0.0
    %v5248 = vadd.f32 %v5246, %v5247
    %v5249 = vsel %vm3229, %v5226, 0.0
    %v5250 = vadd.f32 %v5248, %v5249
    %v5251 = vsel %vm3229, %v5227, 0.0
    %v5252 = vadd.f32 %v5250, %v5251
    %v5253 = vsel %vm3229, %v5228, 0.0
    %v5254 = vadd.f32 %v5252, %v5253
    %v5255 = vsel %vm3229, %v5229, 0.0
    %v5256 = vadd.f32 %v5254, %v5255
    %v5257 = vsel %vm3229, %v5230, 0.0
    %v5258 = vadd.f32 %v5256, %v5257
    %v5259 = vsel %vm3229, %v5231, 0.0
    %v5260 = vadd.f32 %v5258, %v5259
    %v5261 = vsel %vm3229, %v5232, 0.0
    %v5262 = vadd.f32 %v5260, %v5261
    %v5263 = vsel %vm3229, %v5233, 0.0
    %v5264 = vadd.f32 %v5262, %v5263
    %v5265 = vrot.slane %v5264, 4
    %v5266 = vadd.f32 %v5264, %v5265
    %v5267 = vrot.slane %v5266, 2
    %v5268 = vadd.f32 %v5266, %v5267
    %v5269 = vrot.slane %v5268, 1
    %v5270 = vadd.f32 %v5268, %v5269
    %v5271 = vmul.f32 %v5270, %v3808
    %v5272 = vsub.f32 %v5218, %v5271
    %v5273 = vsub.f32 %v5219, %v5271
    %v5274 = vsub.f32 %v5220, %v5271
    %v5275 = vsub.f32 %v5221, %v5271
    %v5276 = vsub.f32 %v5222, %v5271
    %v5277 = vsub.f32 %v5223, %v5271
    %v5278 = vsub.f32 %v5224, %v5271
    %v5279 = vsub.f32 %v5225, %v5271
    %v5280 = vsub.f32 %v5226, %v5271
    %v5281 = vsub.f32 %v5227, %v5271
    %v5282 = vsub.f32 %v5228, %v5271
    %v5283 = vsub.f32 %v5229, %v5271
    %v5284 = vsub.f32 %v5230, %v5271
    %v5285 = vsub.f32 %v5231, %v5271
    %v5286 = vsub.f32 %v5232, %v5271
    %v5287 = vsub.f32 %v5233, %v5271
    %v5288 = vmul.f32 %v5272, %v5272
    %v5289 = vmul.f32 %v5273, %v5273
    %v5290 = vmul.f32 %v5274, %v5274
    %v5291 = vmul.f32 %v5275, %v5275
    %v5292 = vmul.f32 %v5276, %v5276
    %v5293 = vmul.f32 %v5277, %v5277
    %v5294 = vmul.f32 %v5278, %v5278
    %v5295 = vmul.f32 %v5279, %v5279
    %v5296 = vmul.f32 %v5280, %v5280
    %v5297 = vmul.f32 %v5281, %v5281
    %v5298 = vmul.f32 %v5282, %v5282
    %v5299 = vmul.f32 %v5283, %v5283
    %v5300 = vmul.f32 %v5284, %v5284
    %v5301 = vmul.f32 %v5285, %v5285
    %v5302 = vmul.f32 %v5286, %v5286
    %v5303 = vmul.f32 %v5287, %v5287
    %v5304 = vsel %vm3229, %v5288, 0.0
    %v5305 = vsel %vm3229, %v5289, 0.0
    %v5306 = vadd.f32 %v5304, %v5305
    %v5307 = vsel %vm3229, %v5290, 0.0
    %v5308 = vadd.f32 %v5306, %v5307
    %v5309 = vsel %vm3229, %v5291, 0.0
    %v5310 = vadd.f32 %v5308, %v5309
    %v5311 = vsel %vm3229, %v5292, 0.0
    %v5312 = vadd.f32 %v5310, %v5311
    %v5313 = vsel %vm3229, %v5293, 0.0
    %v5314 = vadd.f32 %v5312, %v5313
    %v5315 = vsel %vm3229, %v5294, 0.0
    %v5316 = vadd.f32 %v5314, %v5315
    %v5317 = vsel %vm3229, %v5295, 0.0
    %v5318 = vadd.f32 %v5316, %v5317
    %v5319 = vsel %vm3229, %v5296, 0.0
    %v5320 = vadd.f32 %v5318, %v5319
    %v5321 = vsel %vm3229, %v5297, 0.0
    %v5322 = vadd.f32 %v5320, %v5321
    %v5323 = vsel %vm3229, %v5298, 0.0
    %v5324 = vadd.f32 %v5322, %v5323
    %v5325 = vsel %vm3229, %v5299, 0.0
    %v5326 = vadd.f32 %v5324, %v5325
    %v5327 = vsel %vm3229, %v5300, 0.0
    %v5328 = vadd.f32 %v5326, %v5327
    %v5329 = vsel %vm3229, %v5301, 0.0
    %v5330 = vadd.f32 %v5328, %v5329
    %v5331 = vsel %vm3229, %v5302, 0.0
    %v5332 = vadd.f32 %v5330, %v5331
    %v5333 = vsel %vm3229, %v5303, 0.0
    %v5334 = vadd.f32 %v5332, %v5333
    %v5335 = vrot.slane %v5334, 4
    %v5336 = vadd.f32 %v5334, %v5335
    %v5337 = vrot.slane %v5336, 2
    %v5338 = vadd.f32 %v5336, %v5337
    %v5339 = vrot.slane %v5338, 1
    %v5340 = vadd.f32 %v5338, %v5339
    %v5341 = vmul.f32 %v5340, %v3808
    %v5342 = vadd.f32 %v5341, 1e-05
    %v5343 = vrsqrt.pop %v5342
    %v5344 = vmul.f32 %v5272, %v5343
    %v5345 = vmul.f32 %v5273, %v5343
    %v5346 = vmul.f32 %v5274, %v5343
    %v5347 = vmul.f32 %v5275, %v5343
    %v5348 = vmul.f32 %v5276, %v5343
    %v5349 = vmul.f32 %v5277, %v5343
    %v5350 = vmul.f32 %v5278, %v5343
    %v5351 = vmul.f32 %v5279, %v5343
    %v5352 = vmul.f32 %v5280, %v5343
    %v5353 = vmul.f32 %v5281, %v5343
    %v5354 = vmul.f32 %v5282, %v5343
    %v5355 = vmul.f32 %v5283, %v5343
    %v5356 = vmul.f32 %v5284, %v5343
    %v5357 = vmul.f32 %v5285, %v5343
    %v5358 = vmul.f32 %v5286, %v5343
    %v5359 = vmul.f32 %v5287, %v5343
    %v5360 = vlaneseq
    %v5361 = vshrl.u32 %v5360, 7
    %v5362 = vsub.s32 6, %v5361
    %v5363 = vrot.slane %v399, %v5362
    %v5364 = vmul.f32 %v5344, %v5363
    %v5365 = vmul.f32 %v5345, %v5363
    %v5366 = vmul.f32 %v5346, %v5363
    %v5367 = vmul.f32 %v5347, %v5363
    %v5368 = vmul.f32 %v5348, %v5363
    %v5369 = vmul.f32 %v5349, %v5363
    %v5370 = vmul.f32 %v5350, %v5363
    %v5371 = vmul.f32 %v5351, %v5363
    %v5372 = vmul.f32 %v5352, %v5363
    %v5373 = vmul.f32 %v5353, %v5363
    %v5374 = vmul.f32 %v5354, %v5363
    %v5375 = vmul.f32 %v5355, %v5363
    %v5376 = vmul.f32 %v5356, %v5363
    %v5377 = vmul.f32 %v5357, %v5363
    %v5378 = vmul.f32 %v5358, %v5363
    %v5379 = vmul.f32 %v5359, %v5363
    %v5380 = vlaneseq
    %v5381 = vshrl.u32 %v5380, 7
    %v5382 = vsub.s32 7, %v5381
    %v5383 = vrot.slane %v399, %v5382
    %v5384 = vadd.f32 %v5364, %v5383
    %v5385 = vadd.f32 %v5365, %v5383
    %v5386 = vadd.f32 %v5366, %v5383
    %v5387 = vadd.f32 %v5367, %v5383
    %v5388 = vadd.f32 %v5368, %v5383
    %v5389 = vadd.f32 %v5369, %v5383
    %v5390 = vadd.f32 %v5370, %v5383
    %v5391 = vadd.f32 %v5371, %v5383
    %v5392 = vadd.f32 %v5372, %v5383
    %v5393 = vadd.f32 %v5373, %v5383
    %v5394 = vadd.f32 %v5374, %v5383
    %v5395 = vadd.f32 %v5375, %v5383
    %v5396 = vadd.f32 %v5376, %v5383
    %v5397 = vadd.f32 %v5377, %v5383
    %v5398 = vadd.f32 %v5378, %v5383
    %v5399 = vadd.f32 %v5379, %v5383
    %v5400 = vmax.f32 %v5384, 0.0
    %v5401 = vmax.f32 %v5385, 0.0
    %v5402 = vmax.f32 %v5386, 0.0
    %v5403 = vmax.f32 %v5387, 0.0
    %v5404 = vmax.f32 %v5388, 0.0
    %v5405 = vmax.f32 %v5389, 0.0
    %v5406 = vmax.f32 %v5390, 0.0
    %v5407 = vmax.f32 %v5391, 0.0
    %v5408 = vmax.f32 %v5392, 0.0
    %v5409 = vmax.f32 %v5393, 0.0
    %v5410 = vmax.f32 %v5394, 0.0
    %v5411 = vmax.f32 %v5395, 0.0
    %v5412 = vmax.f32 %v5396, 0.0
    %v5413 = vmax.f32 %v5397, 0.0
    %v5414 = vmax.f32 %v5398, 0.0
    %v5415 = vmax.f32 %v5399, 0.0
    %5416 = vxpose.xlu0.b32.start [1/16] %v5400, 128
    %5417 = vxpose.xlu0.b32.cont [2/16] %v5401, 128
    %5418 = vxpose.xlu0.b32.cont [3/16] %v5402, 128
    %5419 = vxpose.xlu0.b32.cont [4/16] %v5403, 128
    %5420 = vxpose.xlu0.b32.cont [5/16] %v5404, 128
    %5421 = vxpose.xlu0.b32.cont [6/16] %v5405, 128
    %5422 = vxpose.xlu0.b32.cont [7/16] %v5406, 128
    %5423 = vxpose.xlu0.b32.cont [8/16] %v5407, 128
    %5424 = vxpose.xlu0.b32.cont [9/16] 0.0, 128
    %5425 = vxpose.xlu0.b32.cont [10/16] 0.0, 128
    %5426 = vxpose.xlu0.b32.cont [11/16] 0.0, 128
    %5427 = vxpose.xlu0.b32.cont [12/16] 0.0, 128
    %5428 = vxpose.xlu0.b32.cont [13/16] 0.0, 128
    %5429 = vxpose.xlu0.b32.cont [14/16] 0.0, 128
    %5430 = vxpose.xlu0.b32.cont [15/16] 0.0, 128
    %5431 = vxpose.xlu0.b32.end [16/16] 0.0, 128
    %v5432 = vpop.trf.xlu0
    %v5433 = vpop.trf.xlu0
    %v5434 = vpop.trf.xlu0
    %v5435 = vpop.trf.xlu0
    %v5436 = vpop.trf.xlu0
    %v5437 = vpop.trf.xlu0
    %v5438 = vpop.trf.xlu0
    %v5439 = vpop.trf.xlu0
    %v5440 = vpop.trf.xlu0
    %v5441 = vpop.trf.xlu0
    %v5442 = vpop.trf.xlu0
    %v5443 = vpop.trf.xlu0
    %v5444 = vpop.trf.xlu0
    %v5445 = vpop.trf.xlu0
    %v5446 = vpop.trf.xlu0
    %v5447 = vpop.trf.xlu0
    %5448 = vxpose.xlu0.b32.start [1/16] %v5408, 128
    %5449 = vxpose.xlu0.b32.cont [2/16] %v5409, 128
    %5450 = vxpose.xlu0.b32.cont [3/16] %v5410, 128
    %5451 = vxpose.xlu0.b32.cont [4/16] %v5411, 128
    %5452 = vxpose.xlu0.b32.cont [5/16] %v5412, 128
    %5453 = vxpose.xlu0.b32.cont [6/16] %v5413, 128
    %5454 = vxpose.xlu0.b32.cont [7/16] %v5414, 128
    %5455 = vxpose.xlu0.b32.cont [8/16] %v5415, 128
    %5456 = vxpose.xlu0.b32.cont [9/16] 0.0, 128
    %5457 = vxpose.xlu0.b32.cont [10/16] 0.0, 128
    %5458 = vxpose.xlu0.b32.cont [11/16] 0.0, 128
    %5459 = vxpose.xlu0.b32.cont [12/16] 0.0, 128
    %5460 = vxpose.xlu0.b32.cont [13/16] 0.0, 128
    %5461 = vxpose.xlu0.b32.cont [14/16] 0.0, 128
    %5462 = vxpose.xlu0.b32.cont [15/16] 0.0, 128
    %5463 = vxpose.xlu0.b32.end [16/16] 0.0, 128
    %v5464 = vpop.trf.xlu0
    %v5465 = vpop.trf.xlu0
    %v5466 = vpop.trf.xlu0
    %v5467 = vpop.trf.xlu0
    %v5468 = vpop.trf.xlu0
    %v5469 = vpop.trf.xlu0
    %v5470 = vpop.trf.xlu0
    %v5471 = vpop.trf.xlu0
    %v5472 = vpop.trf.xlu0
    %v5473 = vpop.trf.xlu0
    %v5474 = vpop.trf.xlu0
    %v5475 = vpop.trf.xlu0
    %v5476 = vpop.trf.xlu0
    %v5477 = vpop.trf.xlu0
    %v5478 = vpop.trf.xlu0
    %v5479 = vpop.trf.xlu0
    %5480 = vst.msk [vmem:[%s4] sm:$0xff] %vm4794, %v5432
    %5481 = vst.msk [vmem:[%s4 + $0x8] sm:$0xff] %vm4794, %v5464
    // Predicated region
    $region18: #{gated_down.2} parent=1 // pred_check
      _
    $region19: #{gated_down.2} parent=1 // pred_check_branch
      %5483 = sbr.rel (0) target = $region21
    $region20: #{gated_down.2} parent=1 // pred_region
      _
    $region21: #{gated_down.2} parent=1 // pred_fallthru
      _
    // Predicated region
    $region22: #{gated_down.2} parent=1 // pred_check
      _
    $region23: #{gated_down.2} parent=1 // pred_check_branch
      %5485 = sbr.rel (0) target = $region25
    $region24: #{gated_down.2} parent=1 // pred_region
      _
    $region25: #{gated_down.2} parent=1 // pred_fallthru
      _

</llo_original>
